<compile_context>
chip_gen: v7x
topology: tpu7x:2x2x1
jax: 0.10.0
libtpu: 0.0.40
codegen_flags: <defaults>
</compile_context>

<pallas_src>
import functools

import jax
import jax.numpy as jnp
from jax import lax
from jax.experimental import pallas as pl
from jax.experimental.pallas import tpu as pltpu

LANE = 128
SUBLANE = 8
_BN_EPS = 1e-5


def _round_up(x, m):
    return (x + m - 1) // m * m


def _pad_axis(a, axis, size):
    pad = size - a.shape[axis]
    if pad <= 0:
        return a
    widths = [(0, 0)] * a.ndim
    widths[axis] = (0, pad)
    return jnp.pad(a, widths)


def _pick_strip(h, w, requested, max_rows=4096):
    """Largest divisor of H that is <= requested and keeps th*W (f32 accumulator) bounded."""
    th = max(1, min(requested, h, max(1, max_rows // max(w, 1))))
    while h % th:
        th -= 1
    return th


# --------------------------------------------------------------------------------------
# Fused Pallas kernel: head + 3x3 body + tail on one (batch, H-strip) grid cell
# --------------------------------------------------------------------------------------

def _residual_fused_kernel(*refs, th, w_img, h_img, wp2, need_skip):
    if need_skip:
        (xp_hbm, s1, t1, w1, s2, t2, w2, s3, t3, w3, bt, ws,
         o_ref, xbuf, sem) = refs
    else:
        (xp_hbm, s1, t1, w1, s2, t2, w2, s3, t3, w3, bt,
         o_ref, xbuf, sem) = refs
        ws = None

    n = pl.program_id(0)
    t = pl.program_id(1)
    nstrips = pl.num_programs(1)
    cin = xbuf.shape[-1]
    cmid = w1.shape[1]
    cout = w3.shape[1]
    halo_rows = (th + 2) * wp2

    def _copy(strip, slot):
        return pltpu.make_async_copy(
            xp_hbm.at[n, pl.ds(strip * th, th + 2)], xbuf.at[slot], sem.at[slot])

    # Prime the double buffer at the start of each image.
    @pl.when(t == 0)
    def _():
        _copy(0, 0).start()

    slot = t % 2
    _copy(t, slot).wait()

    # Prefetch next strip of this image while computing on the current one.
    @pl.when(t + 1 < nstrips)
    def _():
        _copy(t + 1, (t + 1) % 2).start()

    xs = xbuf[slot]                                            # (th+2, wp2, cin) bf16

    # ---- head: bn1 -> relu -> conv1 (1x1) -> bn2 (b1 folded) -> relu --------------
    xf = xs.reshape(halo_rows, cin).astype(jnp.float32)
    a1 = jnp.maximum(xf * s1[...] + t1[...], 0.0).astype(jnp.bfloat16)
    z1 = jnp.dot(a1, w1[...], preferred_element_type=jnp.float32)
    hmid = jnp.maximum(z1 * s2[...] + t2[...], 0.0)
    hmid = hmid.reshape(th + 2, wp2, cmid)

    # Zero the halo positions that fall outside the image: conv2's spatial zero-pad
    # applies to this activation, so out-of-image positions must be 0, not head(0).
    row = t * th + lax.broadcasted_iota(jnp.int32, (th + 2, wp2, cmid), 0)
    col = lax.broadcasted_iota(jnp.int32, (th + 2, wp2, cmid), 1)
    outside = (row == 0) | (row == h_img + 1) | (col == 0) | (col >= w_img + 1)
    hmid = jnp.where(outside, 0.0, hmid).astype(jnp.bfloat16)

    # ---- body: 3x3 conv as 3 deep matmuls (K = 3*cmid), bn3 (b2 folded), relu -----
    acc = jnp.zeros((th * w_img, cmid), jnp.float32)
    for kh in range(3):
        slab = hmid[kh:kh + th]                                # (th, wp2, cmid)
        op = jnp.concatenate(
            [slab[:, 0:w_img, :], slab[:, 1:w_img + 1, :], slab[:, 2:w_img + 2, :]],
            axis=-1).reshape(th * w_img, 3 * cmid)
        acc = acc + jnp.dot(op, w2[kh], preferred_element_type=jnp.float32)
    hb = jnp.maximum(acc * s3[...] + t3[...], 0.0).astype(jnp.bfloat16)

    # ---- tail: conv3 (1x1) + residual (1x1 skip conv or identity) ------------------
    y = jnp.dot(hb, w3[...], preferred_element_type=jnp.float32) + bt[...]
    x_in = xs[1:th + 1, 1:w_img + 1, :].reshape(th * w_img, cin)
    if need_skip:
        y = y + jnp.dot(x_in, ws[...], preferred_element_type=jnp.float32)
    else:
        y = y + x_in.astype(jnp.float32)
    o_ref[0] = y.reshape(th, w_img, cout).astype(o_ref.dtype)


# --------------------------------------------------------------------------------------
# Forward pass (matches Residual.forward semantics, eval-mode BN)
# --------------------------------------------------------------------------------------

def residual_forward(params, x_nchw, *, need_skip, out_dim, strip_rows=64):
    n, _, h, w = x_nchw.shape
    cin_p = params["w1"].shape[0]
    cmid_p = params["w1"].shape[1]
    cout_p = params["w3"].shape[1]

    th = _pick_strip(h, w, strip_rows)
    nstrips = h // th
    wp2 = _round_up(w + 2, SUBLANE)   # keep merged (rows*cols, C) reshapes sublane-aligned

    # NCHW -> NHWC, lane-pad channels, spatial halo pad, cast bf16 (one XLA layout chain).
    x = jnp.transpose(x_nchw, (0, 2, 3, 1))
    x = _pad_axis(x, 3, cin_p)
    xp = jnp.pad(x, ((0, 0), (1, 1), (1, wp2 - (w + 1)), (0, 0))).astype(jnp.bfloat16)

    row = lambda a: pl.BlockSpec((1, a.shape[1]), lambda i, j: (0, 0))
    in_specs = [
        pl.BlockSpec(memory_space=pl.ANY),                              # x (HBM, manual DMA)
        row(params["s1"]), row(params["t1"]),
        pl.BlockSpec((cin_p, cmid_p), lambda i, j: (0, 0)),             # w1
        row(params["s2"]), row(params["t2"]),
        pl.BlockSpec((3, 3 * cmid_p, cmid_p), lambda i, j: (0, 0, 0)),  # w2 (per-kh, K=3C)
        row(params["s3"]), row(params["t3"]),
        pl.BlockSpec((cmid_p, cout_p), lambda i, j: (0, 0)),            # w3
        row(params["bt"]),
    ]
    inputs = [xp, params["s1"], params["t1"], params["w1"], params["s2"],
              params["t2"], params["w2"], params["s3"], params["t3"],
              params["w3"], params["bt"]]
    if need_skip:
        in_specs.append(pl.BlockSpec((cin_p, cout_p), lambda i, j: (0, 0)))
        inputs.append(params["ws"])

    out = pl.pallas_call(
        functools.partial(_residual_fused_kernel, th=th, w_img=w, h_img=h,
                          wp2=wp2, need_skip=need_skip),
        out_shape=jax.ShapeDtypeStruct((n, h, w, cout_p), jnp.float32),
        grid_spec=pltpu.PrefetchScalarGridSpec(
            num_scalar_prefetch=0,
            grid=(n, nstrips),
            in_specs=in_specs,
            out_specs=pl.BlockSpec((1, th, w, cout_p), lambda i, j: (i, j, 0, 0)),
            scratch_shapes=[
                pltpu.VMEM((2, th + 2, wp2, cin_p), jnp.bfloat16),   # strip+halo double buffer
                pltpu.SemaphoreType.DMA((2,)),
            ]),
        compiler_params=pltpu.CompilerParams(
            dimension_semantics=("parallel", "arbitrary")),
    )(*inputs)

    out = out[..., :out_dim]
    return jnp.transpose(out, (0, 3, 1, 2))                            # NHWC -> NCHW


# --------------------------------------------------------------------------------------
# Parameters (deterministic synthetic init) + packing + pure-JAX reference
# --------------------------------------------------------------------------------------

def init_residual_raw(key, inp_dim, out_dim):
    cmid = out_dim // 2
    ks = jax.random.split(key, 7)

    def conv_init(k, kh, kw, cin, cout):
        k1, k2 = jax.random.split(k)
        fan_in = kh * kw * cin
        wgt = jax.random.normal(k1, (kh, kw, cin, cout), jnp.float32) / jnp.sqrt(float(fan_in))
        b = 0.02 * jax.random.normal(k2, (cout,), jnp.float32)
        return wgt, b

    def bn_init(k, c):
        k1, k2, k3, k4 = jax.random.split(k, 4)
        gamma = 1.0 + 0.1 * jax.random.normal(k1, (c,), jnp.float32)
        beta = 0.05 * jax.random.normal(k2, (c,), jnp.float32)
        mean = 0.1 * jax.random.normal(k3, (c,), jnp.float32)
        var = 1.0 + 0.2 * jax.random.uniform(k4, (c,), jnp.float32)
        return gamma, beta, mean, var

    raw = {}
    raw["w1"], raw["b1"] = conv_init(ks[0], 1, 1, inp_dim, cmid)
    raw["w2"], raw["b2"] = conv_init(ks[1], 3, 3, cmid, cmid)
    raw["w3"], raw["b3"] = conv_init(ks[2], 1, 1, cmid, out_dim)
    raw["ws"], raw["bs"] = conv_init(ks[3], 1, 1, inp_dim, out_dim)
    raw["bn1"] = bn_init(ks[4], inp_dim)
    raw["bn2"] = bn_init(ks[5], cmid)
    raw["bn3"] = bn_init(ks[6], cmid)
    return raw


def pack_params(raw, *, need_skip):
    """Fold BN into affine scale/shift, fold conv biases into the following shift,
    zero-pad all channel axes to a multiple of 128 (lane-dense), cast weights to bf16."""
    cin = raw["w1"].shape[2]
    cmid = raw["w1"].shape[3]
    cout = raw["w3"].shape[3]
    cin_p, cmid_p, cout_p = (_round_up(c, LANE) for c in (cin, cmid, cout))

    def vec(v, cp):
        return _pad_axis(v, 0, cp).reshape(1, cp).astype(jnp.float32)

    def bn_affine(bn):
        g, b, m, v = bn
        s = g / jnp.sqrt(v + _BN_EPS)
        return s, b - m * s

    s1, t1 = bn_affine(raw["bn1"])
    s2, t2 = bn_affine(raw["bn2"])
    s3, t3 = bn_affine(raw["bn3"])
    t2 = raw["b1"] * s2 + t2                       # fold conv1 bias into bn2 shift
    t3 = raw["b2"] * s3 + t3                       # fold conv2 bias into bn3 shift
    bt = raw["b3"] + (raw["bs"] if need_skip else 0.0)   # fold skip bias into tail bias

    def mat1x1(wgt, ci_p, co_p):
        wgt = wgt.reshape(wgt.shape[2], wgt.shape[3])
        return _pad_axis(_pad_axis(wgt, 0, ci_p), 1, co_p).astype(jnp.bfloat16)

    w2 = _pad_axis(_pad_axis(raw["w2"], 2, cmid_p), 3, cmid_p)
    w2 = w2.reshape(3, 3 * cmid_p, cmid_p).astype(jnp.bfloat16)   # rows ordered (kw, cin)

    return {
        "s1": vec(s1, cin_p), "t1": vec(t1, cin_p),
        "s2": vec(s2, cmid_p), "t2": vec(t2, cmid_p),
        "s3": vec(s3, cmid_p), "t3": vec(t3, cmid_p),
        "bt": vec(bt, cout_p),
        "w1": mat1x1(raw["w1"], cin_p, cmid_p),
        "w2": w2,
        "w3": mat1x1(raw["w3"], cmid_p, cout_p),
        "ws": mat1x1(raw["ws"], cin_p, cout_p),
    }


def residual_reference(raw, x, *, need_skip):
    """Pure-JAX f32 reference of the PyTorch Residual forward (eval-mode BN)."""
    def bn(z, stats):
        g, b, m, v = stats
        s = g / jnp.sqrt(v + _BN_EPS)
        return z * s[None, :, None, None] + (b - m * s)[None, :, None, None]

    def conv(z, wgt, b, pad):
        y = jax.lax.conv_general_dilated(
            z, wgt, window_strides=(1, 1), padding=[(pad, pad), (pad, pad)],
            dimension_numbers=("NCHW", "HWIO", "NCHW"))
        return y + b[None, :, None, None]

    res = conv(x, raw["ws"], raw["bs"], 0) if need_skip else x
    out = conv(jax.nn.relu(bn(x, raw["bn1"])), raw["w1"], raw["b1"], 0)
    out = conv(jax.nn.relu(bn(out, raw["bn2"])), raw["w2"], raw["b2"], 1)
    out = conv(jax.nn.relu(bn(out, raw["bn3"])), raw["w3"], raw["b3"], 0)
    return out + res


if __name__ == "__main__":
    key = jax.random.PRNGKey(0)
    k1, k2, k3, k4 = jax.random.split(key, 4)

    def run_case(inp_dim, out_dim, pkey, xkey):
        need_skip = inp_dim != out_dim
        raw = init_residual_raw(pkey, inp_dim, out_dim)
        params = pack_params(raw, need_skip=need_skip)
        x = jax.random.normal(xkey, (2, inp_dim, 16, 16), jnp.float32)

        fwd = jax.jit(functools.partial(residual_forward,
                                        need_skip=need_skip, out_dim=out_dim))
        out = jax.block_until_ready(fwd(params, x))
        assert out.shape == (2, out_dim, 16, 16), out.shape
        assert bool(jnp.all(jnp.isfinite(out)))

        ref = residual_reference(raw, x, need_skip=need_skip)
        err = float(jnp.max(jnp.abs(out - ref)) / (jnp.max(jnp.abs(ref)) + 1e-6))
        assert err < 5e-2, f"normalized max error {err}"

    run_case(32, 64, k1, k2)   # inp != out: exercises the 1x1 skip-conv path
    run_case(64, 64, k3, k4)   # inp == out: exercises the identity-residual path
    print("KERNEL_OK")
</pallas_src>

<mosaic_0001>
module attributes {stable_mosaic.version = 11 : i64} {
  func.func @_residual_fused_kernel(%arg0: i32, %arg1: i32, %arg2: memref<2x18x24x128xbf16, #tpu.memory_space<any>>, %arg3: memref<1x128xf32, #tpu.memory_space<vmem>>, %arg4: memref<1x128xf32, #tpu.memory_space<vmem>>, %arg5: memref<128x128xbf16, #tpu.memory_space<vmem>>, %arg6: memref<1x128xf32, #tpu.memory_space<vmem>>, %arg7: memref<1x128xf32, #tpu.memory_space<vmem>>, %arg8: memref<3x384x128xbf16, #tpu.memory_space<vmem>>, %arg9: memref<1x128xf32, #tpu.memory_space<vmem>>, %arg10: memref<1x128xf32, #tpu.memory_space<vmem>>, %arg11: memref<128x128xbf16, #tpu.memory_space<vmem>>, %arg12: memref<1x128xf32, #tpu.memory_space<vmem>>, %arg13: memref<128x128xbf16, #tpu.memory_space<vmem>>, %arg14: memref<1x16x16x128xf32, #tpu.memory_space<vmem>>, %arg15: memref<2x18x24x128xbf16, #tpu.memory_space<vmem>>, %arg16: memref<2x!tpu.dma_semaphore, #tpu.memory_space<semaphore_mem>>) attributes {dimension_semantics = [#tpu.dimension_semantics<parallel>, #tpu.dimension_semantics<arbitrary>], iteration_bounds = array<i64: 2, 1>, scalar_prefetch = 0 : i64, scratch_operands = 2 : i64, tpu.core_type = #tpu.core_type<tc>, window_params = [{}, {pipeline_mode = #tpu.pipeline_mode<synchronous>, transform_indices = @transform_1, window_bounds = array<i64: 1, 128>}, {pipeline_mode = #tpu.pipeline_mode<synchronous>, transform_indices = @transform_2, window_bounds = array<i64: 1, 128>}, {pipeline_mode = #tpu.pipeline_mode<synchronous>, transform_indices = @transform_3, window_bounds = array<i64: 128, 128>}, {pipeline_mode = #tpu.pipeline_mode<synchronous>, transform_indices = @transform_4, window_bounds = array<i64: 1, 128>}, {pipeline_mode = #tpu.pipeline_mode<synchronous>, transform_indices = @transform_5, window_bounds = array<i64: 1, 128>}, {pipeline_mode = #tpu.pipeline_mode<synchronous>, transform_indices = @transform_6, window_bounds = array<i64: 3, 384, 128>}, {pipeline_mode = #tpu.pipeline_mode<synchronous>, transform_indices = @transform_7, window_bounds = array<i64: 1, 128>}, {pipeline_mode = #tpu.pipeline_mode<synchronous>, transform_indices = @transform_8, window_bounds = array<i64: 1, 128>}, {pipeline_mode = #tpu.pipeline_mode<synchronous>, transform_indices = @transform_9, window_bounds = array<i64: 128, 128>}, {pipeline_mode = #tpu.pipeline_mode<synchronous>, transform_indices = @transform_10, window_bounds = array<i64: 1, 128>}, {pipeline_mode = #tpu.pipeline_mode<synchronous>, transform_indices = @transform_11, window_bounds = array<i64: 128, 128>}, {transform_indices = @transform_12, window_bounds = array<i64: 1, 16, 16, 128>}]} {
    %c0_i32 = arith.constant 0 : i32
    %0 = arith.cmpi eq, %arg1, %c0_i32 : i32
    %1 = arith.extui %0 : i1 to i32
    %c0_i32_0 = arith.constant 0 : i32
    %2 = arith.cmpi ne, %1, %c0_i32_0 : i32
    scf.if %2 {
      %c0_i32_60 = arith.constant 0 : i32
      %c0_i32_61 = arith.constant 0 : i32
      %c0_i32_62 = arith.constant 0 : i32
      %c0_i32_63 = arith.constant 0 : i32
      %c0_i32_64 = arith.constant 0 : i32
      %122 = tpu.memref_slice %arg2[%arg0, %c0_i32_62, %c0_i32_63, %c0_i32_64] : memref<2x18x24x128xbf16, #tpu.memory_space<any>> -> memref<1x18x24x128xbf16, #tpu.memory_space<any>>
      %123 = tpu.memref_squeeze %122 : memref<1x18x24x128xbf16, #tpu.memory_space<any>> -> memref<18x24x128xbf16, #tpu.memory_space<any>>
      %c0_i32_65 = arith.constant 0 : i32
      %c0_i32_66 = arith.constant 0 : i32
      %c0_i32_67 = arith.constant 0 : i32
      %124 = tpu.memref_slice %arg15[%c0_i32_60, %c0_i32_65, %c0_i32_66, %c0_i32_67] : memref<2x18x24x128xbf16, #tpu.memory_space<vmem>> -> memref<1x18x24x128xbf16, #tpu.memory_space<vmem>>
      %125 = tpu.memref_squeeze %124 : memref<1x18x24x128xbf16, #tpu.memory_space<vmem>> -> memref<18x24x128xbf16, #tpu.memory_space<vmem>>
      %126 = tpu.memref_slice %arg16[%c0_i32_61] : memref<2x!tpu.dma_semaphore, #tpu.memory_space<semaphore_mem>> -> memref<1x!tpu.dma_semaphore, #tpu.memory_space<semaphore_mem>>
      %127 = tpu.memref_squeeze %126 : memref<1x!tpu.dma_semaphore, #tpu.memory_space<semaphore_mem>> -> memref<!tpu.dma_semaphore, #tpu.memory_space<semaphore_mem>>
      tpu.enqueue_dma source(%123 : memref<18x24x128xbf16, #tpu.memory_space<any>>) target(%125 : memref<18x24x128xbf16, #tpu.memory_space<vmem>>) target_semaphore(%127 : memref<!tpu.dma_semaphore, #tpu.memory_space<semaphore_mem>>)
    } else {
    }
    %c2_i32 = arith.constant 2 : i32
    %c0_i32_1 = arith.constant 0 : i32
    %3 = arith.cmpi eq, %c2_i32, %c0_i32_1 : i32
    %c1_i32 = arith.constant 1 : i32
    %4 = arith.select %3, %c1_i32, %c2_i32 : i32
    %5 = arith.remsi %arg1, %4 : i32
    %c0_i32_2 = arith.constant 0 : i32
    %6 = arith.cmpi ne, %5, %c0_i32_2 : i32
    %c0_i32_3 = arith.constant 0 : i32
    %7 = arith.cmpi slt, %5, %c0_i32_3 : i32
    %c0_i32_4 = arith.constant 0 : i32
    %8 = arith.cmpi slt, %4, %c0_i32_4 : i32
    %9 = arith.xori %7, %8 : i1
    %10 = arith.andi %9, %6 : i1
    %11 = arith.addi %5, %4 : i32
    %12 = arith.select %10, %11, %5 : i32
    %c16_i32 = arith.constant 16 : i32
    %13 = arith.muli %arg1, %c16_i32 : i32
    %c0_i32_5 = arith.constant 0 : i32
    %c0_i32_6 = arith.constant 0 : i32
    %14 = tpu.memref_slice %arg2[%arg0, %13, %c0_i32_5, %c0_i32_6] : memref<2x18x24x128xbf16, #tpu.memory_space<any>> -> memref<1x18x24x128xbf16, #tpu.memory_space<any>>
    %15 = tpu.memref_squeeze %14 : memref<1x18x24x128xbf16, #tpu.memory_space<any>> -> memref<18x24x128xbf16, #tpu.memory_space<any>>
    %c0_i32_7 = arith.constant 0 : i32
    %c0_i32_8 = arith.constant 0 : i32
    %c0_i32_9 = arith.constant 0 : i32
    %16 = tpu.memref_slice %arg15[%12, %c0_i32_7, %c0_i32_8, %c0_i32_9] : memref<2x18x24x128xbf16, #tpu.memory_space<vmem>> -> memref<1x18x24x128xbf16, #tpu.memory_space<vmem>>
    %17 = tpu.memref_squeeze %16 : memref<1x18x24x128xbf16, #tpu.memory_space<vmem>> -> memref<18x24x128xbf16, #tpu.memory_space<vmem>>
    %18 = tpu.memref_slice %arg16[%12] : memref<2x!tpu.dma_semaphore, #tpu.memory_space<semaphore_mem>> -> memref<1x!tpu.dma_semaphore, #tpu.memory_space<semaphore_mem>>
    %19 = tpu.memref_squeeze %18 : memref<1x!tpu.dma_semaphore, #tpu.memory_space<semaphore_mem>> -> memref<!tpu.dma_semaphore, #tpu.memory_space<semaphore_mem>>
    tpu.wait_dma2 semaphore(%19 : memref<!tpu.dma_semaphore, #tpu.memory_space<semaphore_mem>>) src(%15 : memref<18x24x128xbf16, #tpu.memory_space<any>>) dst(%17 : memref<18x24x128xbf16, #tpu.memory_space<vmem>>)
    %c1_i32_10 = arith.constant 1 : i32
    %20 = arith.addi %arg1, %c1_i32_10 : i32
    %c1_i32_11 = arith.constant 1 : i32
    %21 = arith.cmpi slt, %20, %c1_i32_11 : i32
    %22 = arith.extui %21 : i1 to i32
    %c0_i32_12 = arith.constant 0 : i32
    %23 = arith.cmpi ne, %22, %c0_i32_12 : i32
    scf.if %23 {
      %c1_i32_60 = arith.constant 1 : i32
      %122 = arith.addi %arg1, %c1_i32_60 : i32
      %c1_i32_61 = arith.constant 1 : i32
      %123 = arith.addi %arg1, %c1_i32_61 : i32
      %c2_i32_62 = arith.constant 2 : i32
      %c0_i32_63 = arith.constant 0 : i32
      %124 = arith.cmpi eq, %c2_i32_62, %c0_i32_63 : i32
      %c1_i32_64 = arith.constant 1 : i32
      %125 = arith.select %124, %c1_i32_64, %c2_i32_62 : i32
      %126 = arith.remsi %123, %125 : i32
      %c0_i32_65 = arith.constant 0 : i32
      %127 = arith.cmpi ne, %126, %c0_i32_65 : i32
      %c0_i32_66 = arith.constant 0 : i32
      %128 = arith.cmpi slt, %126, %c0_i32_66 : i32
      %c0_i32_67 = arith.constant 0 : i32
      %129 = arith.cmpi slt, %125, %c0_i32_67 : i32
      %130 = arith.xori %128, %129 : i1
      %131 = arith.andi %130, %127 : i1
      %132 = arith.addi %126, %125 : i32
      %133 = arith.select %131, %132, %126 : i32
      %c16_i32_68 = arith.constant 16 : i32
      %134 = arith.muli %122, %c16_i32_68 : i32
      %c0_i32_69 = arith.constant 0 : i32
      %c0_i32_70 = arith.constant 0 : i32
      %135 = tpu.memref_slice %arg2[%arg0, %134, %c0_i32_69, %c0_i32_70] : memref<2x18x24x128xbf16, #tpu.memory_space<any>> -> memref<1x18x24x128xbf16, #tpu.memory_space<any>>
      %136 = tpu.memref_squeeze %135 : memref<1x18x24x128xbf16, #tpu.memory_space<any>> -> memref<18x24x128xbf16, #tpu.memory_space<any>>
      %c0_i32_71 = arith.constant 0 : i32
      %c0_i32_72 = arith.constant 0 : i32
      %c0_i32_73 = arith.constant 0 : i32
      %137 = tpu.memref_slice %arg15[%133, %c0_i32_71, %c0_i32_72, %c0_i32_73] : memref<2x18x24x128xbf16, #tpu.memory_space<vmem>> -> memref<1x18x24x128xbf16, #tpu.memory_space<vmem>>
      %138 = tpu.memref_squeeze %137 : memref<1x18x24x128xbf16, #tpu.memory_space<vmem>> -> memref<18x24x128xbf16, #tpu.memory_space<vmem>>
      %139 = tpu.memref_slice %arg16[%133] : memref<2x!tpu.dma_semaphore, #tpu.memory_space<semaphore_mem>> -> memref<1x!tpu.dma_semaphore, #tpu.memory_space<semaphore_mem>>
      %140 = tpu.memref_squeeze %139 : memref<1x!tpu.dma_semaphore, #tpu.memory_space<semaphore_mem>> -> memref<!tpu.dma_semaphore, #tpu.memory_space<semaphore_mem>>
      tpu.enqueue_dma source(%136 : memref<18x24x128xbf16, #tpu.memory_space<any>>) target(%138 : memref<18x24x128xbf16, #tpu.memory_space<vmem>>) target_semaphore(%140 : memref<!tpu.dma_semaphore, #tpu.memory_space<semaphore_mem>>)
    } else {
    }
    %24 = arith.index_cast %12 : i32 to index
    %c0 = arith.constant 0 : index
    %c0_13 = arith.constant 0 : index
    %c0_14 = arith.constant 0 : index
    %25 = vector.load %arg15[%24, %c0, %c0_13, %c0_14] : memref<2x18x24x128xbf16, #tpu.memory_space<vmem>>, vector<1x18x24x128xbf16>
    %26 = vector.shape_cast %25 : vector<1x18x24x128xbf16> to vector<18x24x128xbf16>
    %27 = vector.shape_cast %26 : vector<18x24x128xbf16> to vector<432x128xbf16>
    %28 = arith.extf %27 : vector<432x128xbf16> to vector<432x128xf32>
    %c0_15 = arith.constant 0 : index
    %c0_16 = arith.constant 0 : index
    %29 = vector.load %arg3[%c0_15, %c0_16] : memref<1x128xf32, #tpu.memory_space<vmem>>, vector<1x128xf32>
    %30 = vector.broadcast %29 : vector<1x128xf32> to vector<432x128xf32>
    %31 = arith.mulf %28, %30 : vector<432x128xf32>
    %c0_17 = arith.constant 0 : index
    %c0_18 = arith.constant 0 : index
    %32 = vector.load %arg4[%c0_17, %c0_18] : memref<1x128xf32, #tpu.memory_space<vmem>>, vector<1x128xf32>
    %33 = vector.broadcast %32 : vector<1x128xf32> to vector<432x128xf32>
    %34 = arith.addf %31, %33 : vector<432x128xf32>
    %cst = arith.constant 0.000000e+00 : f32
    %35 = vector.broadcast %cst : f32 to vector<432x128xf32>
    %36 = arith.maximumf %34, %35 : vector<432x128xf32>
    %37 = arith.truncf %36 : vector<432x128xf32> to vector<432x128xbf16>
    %c0_19 = arith.constant 0 : index
    %c0_20 = arith.constant 0 : index
    %38 = vector.load %arg5[%c0_19, %c0_20] : memref<128x128xbf16, #tpu.memory_space<vmem>>, vector<128x128xbf16>
    %cst_21 = arith.constant dense<0.000000e+00> : vector<432x128xf32>
    %39 = tpu.matmul %37, %38, %cst_21 {dimension_numbers = #tpu.dot_dimension_numbers<[1], [0], [0], [1], [0, 0, 1, 1], [], []>} : vector<432x128xbf16>, vector<128x128xbf16>, vector<432x128xf32> -> vector<432x128xf32>
    %c0_22 = arith.constant 0 : index
    %c0_23 = arith.constant 0 : index
    %40 = vector.load %arg6[%c0_22, %c0_23] : memref<1x128xf32, #tpu.memory_space<vmem>>, vector<1x128xf32>
    %41 = vector.broadcast %40 : vector<1x128xf32> to vector<432x128xf32>
    %42 = arith.mulf %39, %41 : vector<432x128xf32>
    %c0_24 = arith.constant 0 : index
    %c0_25 = arith.constant 0 : index
    %43 = vector.load %arg7[%c0_24, %c0_25] : memref<1x128xf32, #tpu.memory_space<vmem>>, vector<1x128xf32>
    %44 = vector.broadcast %43 : vector<1x128xf32> to vector<432x128xf32>
    %45 = arith.addf %42, %44 : vector<432x128xf32>
    %cst_26 = arith.constant 0.000000e+00 : f32
    %46 = vector.broadcast %cst_26 : f32 to vector<432x128xf32>
    %47 = arith.maximumf %45, %46 : vector<432x128xf32>
    %48 = vector.shape_cast %47 : vector<432x128xf32> to vector<18x24x128xf32>
    %c16_i32_27 = arith.constant 16 : i32
    %49 = arith.muli %arg1, %c16_i32_27 : i32
    %50 = tpu.iota {dimensions = array<i32: 0>} : vector<18x24x128xi32>
    %51 = vector.broadcast %49 : i32 to vector<18x24x128xi32>
    %52 = arith.addi %51, %50 : vector<18x24x128xi32>
    %53 = tpu.iota {dimensions = array<i32: 1>} : vector<18x24x128xi32>
    %c0_i32_28 = arith.constant 0 : i32
    %54 = vector.broadcast %c0_i32_28 : i32 to vector<18x24x128xi32>
    %55 = arith.cmpi eq, %52, %54 : vector<18x24x128xi32>
    %c17_i32 = arith.constant 17 : i32
    %56 = vector.broadcast %c17_i32 : i32 to vector<18x24x128xi32>
    %57 = arith.cmpi eq, %52, %56 : vector<18x24x128xi32>
    %58 = arith.ori %55, %57 : vector<18x24x128xi1>
    %c0_i32_29 = arith.constant 0 : i32
    %59 = vector.broadcast %c0_i32_29 : i32 to vector<18x24x128xi32>
    %60 = arith.cmpi eq, %53, %59 : vector<18x24x128xi32>
    %61 = arith.ori %58, %60 : vector<18x24x128xi1>
    %c17_i32_30 = arith.constant 17 : i32
    %62 = vector.broadcast %c17_i32_30 : i32 to vector<18x24x128xi32>
    %63 = arith.cmpi sge, %53, %62 : vector<18x24x128xi32>
    %64 = arith.ori %61, %63 : vector<18x24x128xi1>
    %cst_31 = arith.constant 0.000000e+00 : f32
    %65 = vector.broadcast %cst_31 : f32 to vector<18x24x128xf32>
    %66 = arith.select %64, %65, %48 : vector<18x24x128xi1>, vector<18x24x128xf32>
    %67 = arith.truncf %66 : vector<18x24x128xf32> to vector<18x24x128xbf16>
    %cst_32 = arith.constant 0.000000e+00 : f32
    %68 = vector.broadcast %cst_32 : f32 to vector<256x128xf32>
    %69 = vector.extract_strided_slice %67 {offsets = [0, 0, 0], sizes = [16, 24, 128], strides = [1, 1, 1]} : vector<18x24x128xbf16> to vector<16x24x128xbf16>
    %70 = vector.extract_strided_slice %69 {offsets = [0, 0, 0], sizes = [16, 16, 128], strides = [1, 1, 1]} : vector<16x24x128xbf16> to vector<16x16x128xbf16>
    %71 = vector.extract_strided_slice %69 {offsets = [0, 1, 0], sizes = [16, 16, 128], strides = [1, 1, 1]} : vector<16x24x128xbf16> to vector<16x16x128xbf16>
    %72 = vector.extract_strided_slice %69 {offsets = [0, 2, 0], sizes = [16, 16, 128], strides = [1, 1, 1]} : vector<16x24x128xbf16> to vector<16x16x128xbf16>
    %73 = tpu.concatenate %70, %71, %72 in 2 : vector<16x16x128xbf16>, vector<16x16x128xbf16>, vector<16x16x128xbf16> -> vector<16x16x384xbf16>
    %74 = vector.shape_cast %73 : vector<16x16x384xbf16> to vector<256x384xbf16>
    %c0_33 = arith.constant 0 : index
    %c0_34 = arith.constant 0 : index
    %c0_35 = arith.constant 0 : index
    %75 = vector.load %arg8[%c0_33, %c0_34, %c0_35] : memref<3x384x128xbf16, #tpu.memory_space<vmem>>, vector<1x384x128xbf16>
    %76 = vector.shape_cast %75 : vector<1x384x128xbf16> to vector<384x128xbf16>
    %cst_36 = arith.constant dense<0.000000e+00> : vector<256x128xf32>
    %77 = tpu.matmul %74, %76, %cst_36 {dimension_numbers = #tpu.dot_dimension_numbers<[1], [0], [0], [1], [0, 0, 1, 1], [], []>} : vector<256x384xbf16>, vector<384x128xbf16>, vector<256x128xf32> -> vector<256x128xf32>
    %78 = arith.addf %68, %77 : vector<256x128xf32>
    %79 = vector.extract_strided_slice %67 {offsets = [1, 0, 0], sizes = [16, 24, 128], strides = [1, 1, 1]} : vector<18x24x128xbf16> to vector<16x24x128xbf16>
    %80 = vector.extract_strided_slice %79 {offsets = [0, 0, 0], sizes = [16, 16, 128], strides = [1, 1, 1]} : vector<16x24x128xbf16> to vector<16x16x128xbf16>
    %81 = vector.extract_strided_slice %79 {offsets = [0, 1, 0], sizes = [16, 16, 128], strides = [1, 1, 1]} : vector<16x24x128xbf16> to vector<16x16x128xbf16>
    %82 = vector.extract_strided_slice %79 {offsets = [0, 2, 0], sizes = [16, 16, 128], strides = [1, 1, 1]} : vector<16x24x128xbf16> to vector<16x16x128xbf16>
    %83 = tpu.concatenate %80, %81, %82 in 2 : vector<16x16x128xbf16>, vector<16x16x128xbf16>, vector<16x16x128xbf16> -> vector<16x16x384xbf16>
    %84 = vector.shape_cast %83 : vector<16x16x384xbf16> to vector<256x384xbf16>
    %c1 = arith.constant 1 : index
    %c0_37 = arith.constant 0 : index
    %c0_38 = arith.constant 0 : index
    %85 = vector.load %arg8[%c1, %c0_37, %c0_38] : memref<3x384x128xbf16, #tpu.memory_space<vmem>>, vector<1x384x128xbf16>
    %86 = vector.shape_cast %85 : vector<1x384x128xbf16> to vector<384x128xbf16>
    %cst_39 = arith.constant dense<0.000000e+00> : vector<256x128xf32>
    %87 = tpu.matmul %84, %86, %cst_39 {dimension_numbers = #tpu.dot_dimension_numbers<[1], [0], [0], [1], [0, 0, 1, 1], [], []>} : vector<256x384xbf16>, vector<384x128xbf16>, vector<256x128xf32> -> vector<256x128xf32>
    %88 = arith.addf %78, %87 : vector<256x128xf32>
    %89 = vector.extract_strided_slice %67 {offsets = [2, 0, 0], sizes = [16, 24, 128], strides = [1, 1, 1]} : vector<18x24x128xbf16> to vector<16x24x128xbf16>
    %90 = vector.extract_strided_slice %89 {offsets = [0, 0, 0], sizes = [16, 16, 128], strides = [1, 1, 1]} : vector<16x24x128xbf16> to vector<16x16x128xbf16>
    %91 = vector.extract_strided_slice %89 {offsets = [0, 1, 0], sizes = [16, 16, 128], strides = [1, 1, 1]} : vector<16x24x128xbf16> to vector<16x16x128xbf16>
    %92 = vector.extract_strided_slice %89 {offsets = [0, 2, 0], sizes = [16, 16, 128], strides = [1, 1, 1]} : vector<16x24x128xbf16> to vector<16x16x128xbf16>
    %93 = tpu.concatenate %90, %91, %92 in 2 : vector<16x16x128xbf16>, vector<16x16x128xbf16>, vector<16x16x128xbf16> -> vector<16x16x384xbf16>
    %94 = vector.shape_cast %93 : vector<16x16x384xbf16> to vector<256x384xbf16>
    %c2 = arith.constant 2 : index
    %c0_40 = arith.constant 0 : index
    %c0_41 = arith.constant 0 : index
    %95 = vector.load %arg8[%c2, %c0_40, %c0_41] : memref<3x384x128xbf16, #tpu.memory_space<vmem>>, vector<1x384x128xbf16>
    %96 = vector.shape_cast %95 : vector<1x384x128xbf16> to vector<384x128xbf16>
    %cst_42 = arith.constant dense<0.000000e+00> : vector<256x128xf32>
    %97 = tpu.matmul %94, %96, %cst_42 {dimension_numbers = #tpu.dot_dimension_numbers<[1], [0], [0], [1], [0, 0, 1, 1], [], []>} : vector<256x384xbf16>, vector<384x128xbf16>, vector<256x128xf32> -> vector<256x128xf32>
    %98 = arith.addf %88, %97 : vector<256x128xf32>
    %c0_43 = arith.constant 0 : index
    %c0_44 = arith.constant 0 : index
    %99 = vector.load %arg9[%c0_43, %c0_44] : memref<1x128xf32, #tpu.memory_space<vmem>>, vector<1x128xf32>
    %100 = vector.broadcast %99 : vector<1x128xf32> to vector<256x128xf32>
    %101 = arith.mulf %98, %100 : vector<256x128xf32>
    %c0_45 = arith.constant 0 : index
    %c0_46 = arith.constant 0 : index
    %102 = vector.load %arg10[%c0_45, %c0_46] : memref<1x128xf32, #tpu.memory_space<vmem>>, vector<1x128xf32>
    %103 = vector.broadcast %102 : vector<1x128xf32> to vector<256x128xf32>
    %104 = arith.addf %101, %103 : vector<256x128xf32>
    %cst_47 = arith.constant 0.000000e+00 : f32
    %105 = vector.broadcast %cst_47 : f32 to vector<256x128xf32>
    %106 = arith.maximumf %104, %105 : vector<256x128xf32>
    %107 = arith.truncf %106 : vector<256x128xf32> to vector<256x128xbf16>
    %c0_48 = arith.constant 0 : index
    %c0_49 = arith.constant 0 : index
    %108 = vector.load %arg11[%c0_48, %c0_49] : memref<128x128xbf16, #tpu.memory_space<vmem>>, vector<128x128xbf16>
    %cst_50 = arith.constant dense<0.000000e+00> : vector<256x128xf32>
    %109 = tpu.matmul %107, %108, %cst_50 {dimension_numbers = #tpu.dot_dimension_numbers<[1], [0], [0], [1], [0, 0, 1, 1], [], []>} : vector<256x128xbf16>, vector<128x128xbf16>, vector<256x128xf32> -> vector<256x128xf32>
    %c0_51 = arith.constant 0 : index
    %c0_52 = arith.constant 0 : index
    %110 = vector.load %arg12[%c0_51, %c0_52] : memref<1x128xf32, #tpu.memory_space<vmem>>, vector<1x128xf32>
    %111 = vector.broadcast %110 : vector<1x128xf32> to vector<256x128xf32>
    %112 = arith.addf %109, %111 : vector<256x128xf32>
    %113 = vector.extract_strided_slice %26 {offsets = [1, 1, 0], sizes = [16, 16, 128], strides = [1, 1, 1]} : vector<18x24x128xbf16> to vector<16x16x128xbf16>
    %114 = vector.shape_cast %113 : vector<16x16x128xbf16> to vector<256x128xbf16>
    %c0_53 = arith.constant 0 : index
    %c0_54 = arith.constant 0 : index
    %115 = vector.load %arg13[%c0_53, %c0_54] : memref<128x128xbf16, #tpu.memory_space<vmem>>, vector<128x128xbf16>
    %cst_55 = arith.constant dense<0.000000e+00> : vector<256x128xf32>
    %116 = tpu.matmul %114, %115, %cst_55 {dimension_numbers = #tpu.dot_dimension_numbers<[1], [0], [0], [1], [0, 0, 1, 1], [], []>} : vector<256x128xbf16>, vector<128x128xbf16>, vector<256x128xf32> -> vector<256x128xf32>
    %117 = arith.addf %112, %116 : vector<256x128xf32>
    %118 = vector.shape_cast %117 : vector<256x128xf32> to vector<16x16x128xf32>
    %c0_56 = arith.constant 0 : index
    %c0_57 = arith.constant 0 : index
    %c0_58 = arith.constant 0 : index
    %c0_59 = arith.constant 0 : index
    %119 = vector.load %arg14[%c0_56, %c0_57, %c0_58, %c0_59] : memref<1x16x16x128xf32, #tpu.memory_space<vmem>>, vector<1x16x16x128xf32>
    %120 = vector.shape_cast %119 : vector<1x16x16x128xf32> to vector<16x16x128xf32>
    %121 = vector.shape_cast %118 : vector<16x16x128xf32> to vector<1x16x16x128xf32>
    tpu.vector_store %arg14[%c0_56, %c0_57, %c0_58, %c0_59], %121 {strides = array<i32>} : memref<1x16x16x128xf32, #tpu.memory_space<vmem>>, vector<1x16x16x128xf32>,
    return
  }
  func.func @transform_1(%arg0: i32, %arg1: i32) -> (i32, i32) {
    %c0_i32 = arith.constant 0 : i32
    %c0_i32_0 = arith.constant 0 : i32
    %c0_i32_1 = arith.constant 0 : i32
    return %c0_i32, %c0_i32_0 : i32, i32
  }
  func.func @transform_2(%arg0: i32, %arg1: i32) -> (i32, i32) {
    %c0_i32 = arith.constant 0 : i32
    %c0_i32_0 = arith.constant 0 : i32
    %c0_i32_1 = arith.constant 0 : i32
    return %c0_i32, %c0_i32_0 : i32, i32
  }
  func.func @transform_3(%arg0: i32, %arg1: i32) -> (i32, i32) {
    %c0_i32 = arith.constant 0 : i32
    %c0_i32_0 = arith.constant 0 : i32
    %c0_i32_1 = arith.constant 0 : i32
    return %c0_i32, %c0_i32_0 : i32, i32
  }
  func.func @transform_4(%arg0: i32, %arg1: i32) -> (i32, i32) {
    %c0_i32 = arith.constant 0 : i32
    %c0_i32_0 = arith.constant 0 : i32
    %c0_i32_1 = arith.constant 0 : i32
    return %c0_i32, %c0_i32_0 : i32, i32
  }
  func.func @transform_5(%arg0: i32, %arg1: i32) -> (i32, i32) {
    %c0_i32 = arith.constant 0 : i32
    %c0_i32_0 = arith.constant 0 : i32
    %c0_i32_1 = arith.constant 0 : i32
    return %c0_i32, %c0_i32_0 : i32, i32
  }
  func.func @transform_6(%arg0: i32, %arg1: i32) -> (i32, i32, i32) {
    %c0_i32 = arith.constant 0 : i32
    %c0_i32_0 = arith.constant 0 : i32
    %c0_i32_1 = arith.constant 0 : i32
    %c0_i32_2 = arith.constant 0 : i32
    return %c0_i32, %c0_i32_0, %c0_i32_1 : i32, i32, i32
  }
  func.func @transform_7(%arg0: i32, %arg1: i32) -> (i32, i32) {
    %c0_i32 = arith.constant 0 : i32
    %c0_i32_0 = arith.constant 0 : i32
    %c0_i32_1 = arith.constant 0 : i32
    return %c0_i32, %c0_i32_0 : i32, i32
  }
  func.func @transform_8(%arg0: i32, %arg1: i32) -> (i32, i32) {
    %c0_i32 = arith.constant 0 : i32
    %c0_i32_0 = arith.constant 0 : i32
    %c0_i32_1 = arith.constant 0 : i32
    return %c0_i32, %c0_i32_0 : i32, i32
  }
  func.func @transform_9(%arg0: i32, %arg1: i32) -> (i32, i32) {
    %c0_i32 = arith.constant 0 : i32
    %c0_i32_0 = arith.constant 0 : i32
    %c0_i32_1 = arith.constant 0 : i32
    return %c0_i32, %c0_i32_0 : i32, i32
  }
  func.func @transform_10(%arg0: i32, %arg1: i32) -> (i32, i32) {
    %c0_i32 = arith.constant 0 : i32
    %c0_i32_0 = arith.constant 0 : i32
    %c0_i32_1 = arith.constant 0 : i32
    return %c0_i32, %c0_i32_0 : i32, i32
  }
  func.func @transform_11(%arg0: i32, %arg1: i32) -> (i32, i32) {
    %c0_i32 = arith.constant 0 : i32
    %c0_i32_0 = arith.constant 0 : i32
    %c0_i32_1 = arith.constant 0 : i32
    return %c0_i32, %c0_i32_0 : i32, i32
  }
  func.func @transform_12(%arg0: i32, %arg1: i32) -> (i32, i32, i32, i32) {
    %c0_i32 = arith.constant 0 : i32
    %c0_i32_0 = arith.constant 0 : i32
    %c0_i32_1 = arith.constant 0 : i32
    return %arg0, %arg1, %c0_i32, %c0_i32_0 : i32, i32, i32, i32
  }
}

</mosaic_0001>

<llo_original>
// kernel: residual_forward.1
$region0: #{residual_forward.1}
  #allocation0 [shape = 'u32[]', space=smem, size = 0x4, offset = 0x4, fixed_abs, tag = 'smem constant byte address 0x4 - core index']
  #allocation1 [shape = 'u32[144,128]{1,0:T(1,128)}', space=vmem, size = 0x12000, scoped, tag = 'internal scratch']
  #allocation2 [shape = 'bf16[2,18,24,128]{3,2,1,0:T(8,128)(2,1)}', space=vmem, size = 0x36000, scoped, tag = 'scratch operand']
  #allocation3 [shape = 's32[2]{0}', space=sflag, size = 0x8, scoped, tag = 'scratch operand']
  #allocation4 [shape = 's32[]', space=sflag, size = 0x4, offset = 0, fixed_abs, tag = 'sflag constant byte address 0x0 - dummy sync flag']
  #allocation5 [shape = 's32[]', space=sflag, size = 0x4, offset = 0, fixed_abs, tag = 'sflag constant byte address 0x0 - dummy sync flag']
  %s0 = inlined_call_operand.vmem [shape: bf16[2,18,24,128], index: 0, kind: input, shape index: {}]
  %s1 = inlined_call_operand.vmem [shape: f32[1,128], index: 1, kind: input, shape index: {}]
  %s2 = inlined_call_operand.vmem [shape: f32[1,128], index: 2, kind: input, shape index: {}]
  %s3 = inlined_call_operand.vmem [shape: bf16[128,128], index: 3, kind: input, shape index: {}]
  %s4 = inlined_call_operand.vmem [shape: f32[1,128], index: 4, kind: input, shape index: {}]
  %s5 = inlined_call_operand.vmem [shape: f32[1,128], index: 5, kind: input, shape index: {}]
  %s6 = inlined_call_operand.vmem [shape: bf16[3,384,128], index: 6, kind: input, shape index: {}]
  %s7 = inlined_call_operand.vmem [shape: f32[1,128], index: 7, kind: input, shape index: {}]
  %s8 = inlined_call_operand.vmem [shape: f32[1,128], index: 8, kind: input, shape index: {}]
  %s9 = inlined_call_operand.vmem [shape: bf16[128,128], index: 9, kind: input, shape index: {}]
  %s10 = inlined_call_operand.vmem [shape: f32[1,128], index: 10, kind: input, shape index: {}]
  %s11 = inlined_call_operand.vmem [shape: bf16[128,128], index: 11, kind: input, shape index: {}]
  %s12 = inlined_call_operand.vmem [shape: f32[2,16,16,128], index: 12, kind: output, shape index: {}]
  %s13 = sld [smem:[#allocation0]]
  $region153: #{residual_forward.1} parent=0
    _
  %s15 = ssub.s32 1, %s13
  %s16 = scalar_select 0, %s15, %s13
  loop: start=0, step=1, limit=4
  $region2: #{residual_forward.1} parent=0 // loop_pre_header
    _
  $region3: #{residual_forward.1} parent=0 // loop_header
    %s18 = sphi 0, %s22
    %p19 = scmp.ge.s32.totalorder %s18, 4
    %s25 = sphi 0, %s37
    %s26 = sphi 0, %s33
    %s27 = sphi 0, %s25
    %s28 = sphi 0, %s26
    %s29 = sphi 0, %s27
    %s30 = sphi 0, %s28
    %s38 = sphi 0, %s38
    %s40 = sphi 0, %s38
    %s41 = sphi 0, %s40
    %s55 = sphi 0, %s41
    %s59 = sphi 0, %s59
    %s61 = sphi 0, %s59
    %s62 = sphi 0, %s61
    %s76 = sphi 0, %s62
    %s80 = sphi 0, %s80
    %s82 = sphi 0, %s80
    %s83 = sphi 0, %s82
    %s97 = sphi 0, %s83
    %s101 = sphi 0, %s101
    %s103 = sphi 0, %s101
    %s104 = sphi 0, %s103
    %s118 = sphi 0, %s104
    %s122 = sphi 0, %s122
    %s124 = sphi 0, %s122
    %s125 = sphi 0, %s124
    %s139 = sphi 0, %s125
    %s143 = sphi 0, %s143
    %s145 = sphi 0, %s143
    %s146 = sphi 0, %s145
    %s160 = sphi 0, %s146
    %s164 = sphi 0, %s164
    %s166 = sphi 0, %s164
    %s167 = sphi 0, %s166
    %s181 = sphi 0, %s167
    %s185 = sphi 0, %s185
    %s187 = sphi 0, %s185
    %s188 = sphi 0, %s187
    %s202 = sphi 0, %s188
    %s206 = sphi 0, %s206
    %s208 = sphi 0, %s206
    %s209 = sphi 0, %s208
    %s223 = sphi 0, %s209
    %s227 = sphi 0, %s227
    %s229 = sphi 0, %s227
    %s230 = sphi 0, %s229
    %s244 = sphi 0, %s230
    %s248 = sphi 0, %s248
    %s250 = sphi 0, %s248
    %s251 = sphi 0, %s250
    %s265 = sphi 0, %s251
    %s273 = sphi 0, %s275
    %s276 = sphi 0, %s273
    %s277 = sphi 0, %s276
    %s293 = sphi 0, %s277
  $region4: #{residual_forward.1} parent=0 // loop_header_branch
    %21 = sbr.rel (%p19) target = $region8
  $region5: #{residual_forward.1} parent=0 // loop_body
    %s23 = ssub.s32 %s18, 1
    %s24 = ssub.s32 %s18, 2
    %s31 = sadd.s32 1, %s26
    %p32 = scmp.ge.s32.totalorder %s31, 1
    %s33 = scalar_select %p32, 0, %s31
    %s34 = sadd.s32 1, %s25
    %s35 = scalar_select %p32, %s34, %s25
    %p36 = scmp.ge.s32.totalorder %s35, 2
    %s37 = scalar_select %p36, 0, %s35
    %s39 = sadd.s32 %s38, 1
    %p42 = scmp.eq.s32.totalorder %s18, 1
    %p43 = scmp.ne.s32.totalorder %s38, %s40
    %p44 = scmp.eq.s32.totalorder %s18, 0
    %p45 = por %p43, %p44
    %p46 = scmp.ne.s32.totalorder %s38, %s40
    %p47 = scmp.eq.s32.totalorder %s23, 1
    %p48 = por %p46, %p47
    %p49 = scmp.ne.s32.totalorder %s40, %s41
    %p50 = scmp.eq.s32.totalorder %s23, 0
    %p51 = por %p49, %p50
    %p52 = scmp.ne.s32.totalorder %s40, %s41
    %p53 = scmp.eq.s32.totalorder %s24, 1
    %p54 = por %p52, %p53
    %p56 = scmp.ne.s32.totalorder %s41, %s55
    %p57 = scmp.eq.s32.totalorder %s24, 0
    %p58 = por %p56, %p57
    %s60 = sadd.s32 %s59, 1
    %p63 = scmp.eq.s32.totalorder %s18, 1
    %p64 = scmp.ne.s32.totalorder %s59, %s61
    %p65 = scmp.eq.s32.totalorder %s18, 0
    %p66 = por %p64, %p65
    %p67 = scmp.ne.s32.totalorder %s59, %s61
    %p68 = scmp.eq.s32.totalorder %s23, 1
    %p69 = por %p67, %p68
    %p70 = scmp.ne.s32.totalorder %s61, %s62
    %p71 = scmp.eq.s32.totalorder %s23, 0
    %p72 = por %p70, %p71
    %p73 = scmp.ne.s32.totalorder %s61, %s62
    %p74 = scmp.eq.s32.totalorder %s24, 1
    %p75 = por %p73, %p74
    %p77 = scmp.ne.s32.totalorder %s62, %s76
    %p78 = scmp.eq.s32.totalorder %s24, 0
    %p79 = por %p77, %p78
    %s81 = sadd.s32 %s80, 1
    %p84 = scmp.eq.s32.totalorder %s18, 1
    %p85 = scmp.ne.s32.totalorder %s80, %s82
    %p86 = scmp.eq.s32.totalorder %s18, 0
    %p87 = por %p85, %p86
    %p88 = scmp.ne.s32.totalorder %s80, %s82
    %p89 = scmp.eq.s32.totalorder %s23, 1
    %p90 = por %p88, %p89
    %p91 = scmp.ne.s32.totalorder %s82, %s83
    %p92 = scmp.eq.s32.totalorder %s23, 0
    %p93 = por %p91, %p92
    %p94 = scmp.ne.s32.totalorder %s82, %s83
    %p95 = scmp.eq.s32.totalorder %s24, 1
    %p96 = por %p94, %p95
    %p98 = scmp.ne.s32.totalorder %s83, %s97
    %p99 = scmp.eq.s32.totalorder %s24, 0
    %p100 = por %p98, %p99
    %s102 = sadd.s32 %s101, 1
    %p105 = scmp.eq.s32.totalorder %s18, 1
    %p106 = scmp.ne.s32.totalorder %s101, %s103
    %p107 = scmp.eq.s32.totalorder %s18, 0
    %p108 = por %p106, %p107
    %p109 = scmp.ne.s32.totalorder %s101, %s103
    %p110 = scmp.eq.s32.totalorder %s23, 1
    %p111 = por %p109, %p110
    %p112 = scmp.ne.s32.totalorder %s103, %s104
    %p113 = scmp.eq.s32.totalorder %s23, 0
    %p114 = por %p112, %p113
    %p115 = scmp.ne.s32.totalorder %s103, %s104
    %p116 = scmp.eq.s32.totalorder %s24, 1
    %p117 = por %p115, %p116
    %p119 = scmp.ne.s32.totalorder %s104, %s118
    %p120 = scmp.eq.s32.totalorder %s24, 0
    %p121 = por %p119, %p120
    %s123 = sadd.s32 %s122, 1
    %p126 = scmp.eq.s32.totalorder %s18, 1
    %p127 = scmp.ne.s32.totalorder %s122, %s124
    %p128 = scmp.eq.s32.totalorder %s18, 0
    %p129 = por %p127, %p128
    %p130 = scmp.ne.s32.totalorder %s122, %s124
    %p131 = scmp.eq.s32.totalorder %s23, 1
    %p132 = por %p130, %p131
    %p133 = scmp.ne.s32.totalorder %s124, %s125
    %p134 = scmp.eq.s32.totalorder %s23, 0
    %p135 = por %p133, %p134
    %p136 = scmp.ne.s32.totalorder %s124, %s125
    %p137 = scmp.eq.s32.totalorder %s24, 1
    %p138 = por %p136, %p137
    %p140 = scmp.ne.s32.totalorder %s125, %s139
    %p141 = scmp.eq.s32.totalorder %s24, 0
    %p142 = por %p140, %p141
    %s144 = sadd.s32 %s143, 1
    %p147 = scmp.eq.s32.totalorder %s18, 1
    %p148 = scmp.ne.s32.totalorder %s143, %s145
    %p149 = scmp.eq.s32.totalorder %s18, 0
    %p150 = por %p148, %p149
    %p151 = scmp.ne.s32.totalorder %s143, %s145
    %p152 = scmp.eq.s32.totalorder %s23, 1
    %p153 = por %p151, %p152
    %p154 = scmp.ne.s32.totalorder %s145, %s146
    %p155 = scmp.eq.s32.totalorder %s23, 0
    %p156 = por %p154, %p155
    %p157 = scmp.ne.s32.totalorder %s145, %s146
    %p158 = scmp.eq.s32.totalorder %s24, 1
    %p159 = por %p157, %p158
    %p161 = scmp.ne.s32.totalorder %s146, %s160
    %p162 = scmp.eq.s32.totalorder %s24, 0
    %p163 = por %p161, %p162
    %s165 = sadd.s32 %s164, 1
    %p168 = scmp.eq.s32.totalorder %s18, 1
    %p169 = scmp.ne.s32.totalorder %s164, %s166
    %p170 = scmp.eq.s32.totalorder %s18, 0
    %p171 = por %p169, %p170
    %p172 = scmp.ne.s32.totalorder %s164, %s166
    %p173 = scmp.eq.s32.totalorder %s23, 1
    %p174 = por %p172, %p173
    %p175 = scmp.ne.s32.totalorder %s166, %s167
    %p176 = scmp.eq.s32.totalorder %s23, 0
    %p177 = por %p175, %p176
    %p178 = scmp.ne.s32.totalorder %s166, %s167
    %p179 = scmp.eq.s32.totalorder %s24, 1
    %p180 = por %p178, %p179
    %p182 = scmp.ne.s32.totalorder %s167, %s181
    %p183 = scmp.eq.s32.totalorder %s24, 0
    %p184 = por %p182, %p183
    %s186 = sadd.s32 %s185, 1
    %p189 = scmp.eq.s32.totalorder %s18, 1
    %p190 = scmp.ne.s32.totalorder %s185, %s187
    %p191 = scmp.eq.s32.totalorder %s18, 0
    %p192 = por %p190, %p191
    %p193 = scmp.ne.s32.totalorder %s185, %s187
    %p194 = scmp.eq.s32.totalorder %s23, 1
    %p195 = por %p193, %p194
    %p196 = scmp.ne.s32.totalorder %s187, %s188
    %p197 = scmp.eq.s32.totalorder %s23, 0
    %p198 = por %p196, %p197
    %p199 = scmp.ne.s32.totalorder %s187, %s188
    %p200 = scmp.eq.s32.totalorder %s24, 1
    %p201 = por %p199, %p200
    %p203 = scmp.ne.s32.totalorder %s188, %s202
    %p204 = scmp.eq.s32.totalorder %s24, 0
    %p205 = por %p203, %p204
    %s207 = sadd.s32 %s206, 1
    %p210 = scmp.eq.s32.totalorder %s18, 1
    %p211 = scmp.ne.s32.totalorder %s206, %s208
    %p212 = scmp.eq.s32.totalorder %s18, 0
    %p213 = por %p211, %p212
    %p214 = scmp.ne.s32.totalorder %s206, %s208
    %p215 = scmp.eq.s32.totalorder %s23, 1
    %p216 = por %p214, %p215
    %p217 = scmp.ne.s32.totalorder %s208, %s209
    %p218 = scmp.eq.s32.totalorder %s23, 0
    %p219 = por %p217, %p218
    %p220 = scmp.ne.s32.totalorder %s208, %s209
    %p221 = scmp.eq.s32.totalorder %s24, 1
    %p222 = por %p220, %p221
    %p224 = scmp.ne.s32.totalorder %s209, %s223
    %p225 = scmp.eq.s32.totalorder %s24, 0
    %p226 = por %p224, %p225
    %s228 = sadd.s32 %s227, 1
    %p231 = scmp.eq.s32.totalorder %s18, 1
    %p232 = scmp.ne.s32.totalorder %s227, %s229
    %p233 = scmp.eq.s32.totalorder %s18, 0
    %p234 = por %p232, %p233
    %p235 = scmp.ne.s32.totalorder %s227, %s229
    %p236 = scmp.eq.s32.totalorder %s23, 1
    %p237 = por %p235, %p236
    %p238 = scmp.ne.s32.totalorder %s229, %s230
    %p239 = scmp.eq.s32.totalorder %s23, 0
    %p240 = por %p238, %p239
    %p241 = scmp.ne.s32.totalorder %s229, %s230
    %p242 = scmp.eq.s32.totalorder %s24, 1
    %p243 = por %p241, %p242
    %p245 = scmp.ne.s32.totalorder %s230, %s244
    %p246 = scmp.eq.s32.totalorder %s24, 0
    %p247 = por %p245, %p246
    %s249 = sadd.s32 %s248, 1
    %p252 = scmp.eq.s32.totalorder %s18, 1
    %p253 = scmp.ne.s32.totalorder %s248, %s250
    %p254 = scmp.eq.s32.totalorder %s18, 0
    %p255 = por %p253, %p254
    %p256 = scmp.ne.s32.totalorder %s248, %s250
    %p257 = scmp.eq.s32.totalorder %s23, 1
    %p258 = por %p256, %p257
    %p259 = scmp.ne.s32.totalorder %s250, %s251
    %p260 = scmp.eq.s32.totalorder %s23, 0
    %p261 = por %p259, %p260
    %p262 = scmp.ne.s32.totalorder %s250, %s251
    %p263 = scmp.eq.s32.totalorder %s24, 1
    %p264 = por %p262, %p263
    %p266 = scmp.ne.s32.totalorder %s251, %s265
    %p267 = scmp.eq.s32.totalorder %s24, 0
    %p268 = por %p266, %p267
    %s269 = ssub.s32 %s25, %s37
    %s270 = ssub.s32 %s26, %s33
    %s271 = sor.u32 %s269, %s270
    %p272 = scmp.eq.s32.totalorder %s271, 0
    %s274 = sadd.s32 %s273, 1
    %s275 = scalar_select %p272, %s273, %s274
    %p278 = pneg %p272
    %p279 = scmp.eq.s32.totalorder %s18, 1
    %p280 = por %p278, %p279
    %p281 = scmp.ne.s32.totalorder %s273, %s276
    %p282 = scmp.eq.s32.totalorder %s18, 0
    %p283 = por %p281, %p282
    %p284 = scmp.ne.s32.totalorder %s273, %s276
    %p285 = scmp.eq.s32.totalorder %s23, 1
    %p286 = por %p284, %p285
    %p287 = scmp.ne.s32.totalorder %s276, %s277
    %p288 = scmp.eq.s32.totalorder %s23, 0
    %p289 = por %p287, %p288
    %p290 = scmp.ne.s32.totalorder %s276, %s277
    %p291 = scmp.eq.s32.totalorder %s24, 1
    %p292 = por %p290, %p291
    %p294 = scmp.ne.s32.totalorder %s277, %s293
    %p295 = scmp.eq.s32.totalorder %s24, 0
    %p296 = por %p294, %p295
    %p297 = scmp.le.s32.totalorder 1, %s18
    %p298 = scmp.lt.s32.totalorder %s18, 3
    %p299 = pnand %p297, %p298
    %p300 = pneg %p299
    // Predicated region
    $region9: #{residual_forward.1} parent=5 // pred_check
      _
    $region10: #{residual_forward.1} parent=5 // pred_check_branch
      %302 = sbr.rel (%p299) target = $region12
    $region11: #{residual_forward.1} parent=5 // pred_region
      %s303 = ssub.s32 %s18, 1
      // Predicated region
      $region13: #{residual_forward.1} parent=11 // pred_check
        %p304 = pneg %p51
      $region14: #{residual_forward.1} parent=11 // pred_check_branch
        %306 = sbr.rel (%p304) target = $region16
      $region15: #{residual_forward.1} parent=11 // pred_region
        _
      $region16: #{residual_forward.1} parent=11 // pred_fallthru
        _
      // Predicated region
      $region17: #{residual_forward.1} parent=11 // pred_check
        %p307 = pneg %p72
      $region18: #{residual_forward.1} parent=11 // pred_check_branch
        %309 = sbr.rel (%p307) target = $region20
      $region19: #{residual_forward.1} parent=11 // pred_region
        _
      $region20: #{residual_forward.1} parent=11 // pred_fallthru
        _
      // Predicated region
      $region21: #{residual_forward.1} parent=11 // pred_check
        %p310 = pneg %p93
      $region22: #{residual_forward.1} parent=11 // pred_check_branch
        %312 = sbr.rel (%p310) target = $region24
      $region23: #{residual_forward.1} parent=11 // pred_region
        _
      $region24: #{residual_forward.1} parent=11 // pred_fallthru
        _
      // Predicated region
      $region25: #{residual_forward.1} parent=11 // pred_check
        %p313 = pneg %p114
      $region26: #{residual_forward.1} parent=11 // pred_check_branch
        %315 = sbr.rel (%p313) target = $region28
      $region27: #{residual_forward.1} parent=11 // pred_region
        _
      $region28: #{residual_forward.1} parent=11 // pred_fallthru
        _
      // Predicated region
      $region29: #{residual_forward.1} parent=11 // pred_check
        %p316 = pneg %p135
      $region30: #{residual_forward.1} parent=11 // pred_check_branch
        %318 = sbr.rel (%p316) target = $region32
      $region31: #{residual_forward.1} parent=11 // pred_region
        _
      $region32: #{residual_forward.1} parent=11 // pred_fallthru
        _
      // Predicated region
      $region33: #{residual_forward.1} parent=11 // pred_check
        %p319 = pneg %p156
      $region34: #{residual_forward.1} parent=11 // pred_check_branch
        %321 = sbr.rel (%p319) target = $region36
      $region35: #{residual_forward.1} parent=11 // pred_region
        _
      $region36: #{residual_forward.1} parent=11 // pred_fallthru
        _
      // Predicated region
      $region37: #{residual_forward.1} parent=11 // pred_check
        %p322 = pneg %p177
      $region38: #{residual_forward.1} parent=11 // pred_check_branch
        %324 = sbr.rel (%p322) target = $region40
      $region39: #{residual_forward.1} parent=11 // pred_region
        _
      $region40: #{residual_forward.1} parent=11 // pred_fallthru
        _
      // Predicated region
      $region41: #{residual_forward.1} parent=11 // pred_check
        %p325 = pneg %p198
      $region42: #{residual_forward.1} parent=11 // pred_check_branch
        %327 = sbr.rel (%p325) target = $region44
      $region43: #{residual_forward.1} parent=11 // pred_region
        _
      $region44: #{residual_forward.1} parent=11 // pred_fallthru
        _
      // Predicated region
      $region45: #{residual_forward.1} parent=11 // pred_check
        %p328 = pneg %p219
      $region46: #{residual_forward.1} parent=11 // pred_check_branch
        %330 = sbr.rel (%p328) target = $region48
      $region47: #{residual_forward.1} parent=11 // pred_region
        _
      $region48: #{residual_forward.1} parent=11 // pred_fallthru
        _
      // Predicated region
      $region49: #{residual_forward.1} parent=11 // pred_check
        %p331 = pneg %p240
      $region50: #{residual_forward.1} parent=11 // pred_check_branch
        %333 = sbr.rel (%p331) target = $region52
      $region51: #{residual_forward.1} parent=11 // pred_region
        _
      $region52: #{residual_forward.1} parent=11 // pred_fallthru
        _
      // Predicated region
      $region53: #{residual_forward.1} parent=11 // pred_check
        %p334 = pneg %p261
      $region54: #{residual_forward.1} parent=11 // pred_check_branch
        %336 = sbr.rel (%p334) target = $region56
      $region55: #{residual_forward.1} parent=11 // pred_region
        _
      $region56: #{residual_forward.1} parent=11 // pred_fallthru
        _
    $region12: #{residual_forward.1} parent=5 // pred_fallthru
      _
    %p337 = scmp.lt.s32.totalorder %s18, 2
    // Predicated region
    $region57: #{residual_forward.1} parent=5 // pred_check
      %p338 = pneg %p337
    $region58: #{residual_forward.1} parent=5 // pred_check_branch
      %340 = sbr.rel (%p338) target = $region60
    $region59: #{residual_forward.1} parent=5 // pred_region
      _
    $region60: #{residual_forward.1} parent=5 // pred_fallthru
      _
    %p341 = scmp.le.s32.totalorder 1, %s18
    %p342 = scmp.lt.s32.totalorder %s18, 3
    %p343 = pnand %p341, %p342
    %p344 = pneg %p343
    // Predicated region
    $region61: #{residual_forward.1} parent=5 // pred_check
      _
    $region62: #{residual_forward.1} parent=5 // pred_check_branch
      %346 = sbr.rel (%p343) target = $region64
    $region63: #{residual_forward.1} parent=5 // pred_region
      %s347 = ssub.s32 %s18, 1
      %p348 = pneg %p51
      %p349 = pneg %p48
      %p350 = pneg %p72
      %p351 = pneg %p69
      %p352 = pneg %p93
      %p353 = pneg %p90
      %p354 = pneg %p114
      %p355 = pneg %p111
      %p356 = pneg %p135
      %p357 = pneg %p132
      %p358 = pneg %p156
      %p359 = pneg %p153
      %p360 = pneg %p177
      %p361 = pneg %p174
      %p362 = pneg %p198
      %p363 = pneg %p195
      %p364 = pneg %p219
      %p365 = pneg %p216
      %p366 = pneg %p240
      %p367 = pneg %p237
      %p368 = pneg %p261
      %p369 = pneg %p258
      %p370 = pneg %p289
      %p371 = pneg %p286
      %s372 = smul.u32 16, %s28
      %p373 = scmp.lt.s32.totalorder %s27, 1
      %s374 = scalar_select %p373, %s27, 1
      %p375 = scmp.lt.s32.totalorder %s372, 15
      %s376 = scalar_select %p375, %s372, 15
      %s377 = smul.addr %s376, 2
      %s378 = smul.addr %s374, 32
      %s379 = sadd.s32 %s377, %s378
      %s380 = smul.addr %s379, 8
      %s381 = scalar_lea.vmem %s12, %s380
      %s382 = smul.u32 16, %s28
      %p383 = scmp.lt.s32.totalorder %s27, 1
      %s384 = scalar_select %p383, %s27, 1
      %p385 = scmp.lt.s32.totalorder %s382, 15
      %s386 = scalar_select %p385, %s382, 15
      %s387 = smul.addr %s386, 2
      %s388 = smul.addr %s384, 32
      %s389 = sadd.s32 %s387, %s388
      %s390 = smul.addr %s389, 8
      %s391 = scalar_lea.vmem %s12, %s390
      %s392 = smul.u32 16, %s28
      %p394 = scmp.eq.s32.totalorder %s28, 0
      // Predicated region
      $region65: #{residual_forward.1} parent=63 // pred_check
        %p395 = pneg %p394
      $region66: #{residual_forward.1} parent=63 // pred_check_branch
        %397 = sbr.rel (%p395) target = $region68
      $region67: #{residual_forward.1} parent=63 // pred_region
        %s398 = smul.u32 %s27, 54
        %s399 = smul.addr %s398, 4
        %s400 = scalar_lea.vmem %s0, %s399
        %p402 = scmp.lt.u32.totalorder 216, 8
        %p403 = pneg %p402
        // Predicated region
        $region69: #{residual_forward.1} parent=67 // pred_check
          _
        $region70: #{residual_forward.1} parent=67 // pred_check_branch
          %405 = sbr.rel (%p402) target = $region72
        $region71: #{residual_forward.1} parent=67 // pred_region
          %s420 = sand.u32 216, 7
          %p421 = scmp.eq.s32.totalorder %s420, 0
          // Predicated region
          $region84: #{residual_forward.1} parent=71 // pred_check
            %p422 = pneg %p421
          $region85: #{residual_forward.1} parent=71 // pred_check_branch
            %424 = sbr.rel (%p422) target = $region87
          $region86: #{residual_forward.1} parent=71 // pred_region
            loop: start=0, step=1, limit=1
            $region88: #{residual_forward.1} parent=86 // loop_pre_header
              _
            $region89: #{residual_forward.1} parent=86 // loop_header
              %s426 = sphi 0, %s430
              %p427 = scmp.ge.s32.totalorder %s426, 1
              %s431 = sphi %s400, %s400
              %s432 = sphi [#allocation2], [#allocation2]
            $region90: #{residual_forward.1} parent=86 // loop_header_branch
              %429 = sbr.rel (%p427) target = $region94
            $region91: #{residual_forward.1} parent=86 // loop_body
              %v433 = vld [vmem:[%s431] sm:$0xff]
              %434 = vst [vmem:[%s432] sm:$0xff] %v433
              %v435 = vld [vmem:[%s431 + $0x8] sm:$0xff]
              %436 = vst [vmem:[%s432 + $0x8] sm:$0xff] %v435
              %v437 = vld [vmem:[%s431 + $0x10] sm:$0xff]
              %438 = vst [vmem:[%s432 + $0x10] sm:$0xff] %v437
              %v439 = vld [vmem:[%s431 + $0x18] sm:$0xff]
              %440 = vst [vmem:[%s432 + $0x18] sm:$0xff] %v439
              %v441 = vld [vmem:[%s431 + $0x20] sm:$0xff]
              %442 = vst [vmem:[%s432 + $0x20] sm:$0xff] %v441
              %v443 = vld [vmem:[%s431 + $0x28] sm:$0xff]
              %444 = vst [vmem:[%s432 + $0x28] sm:$0xff] %v443
              %v445 = vld [vmem:[%s431 + $0x30] sm:$0xff]
              %446 = vst [vmem:[%s432 + $0x30] sm:$0xff] %v445
              %v447 = vld [vmem:[%s431 + $0x38] sm:$0xff]
              %448 = vst [vmem:[%s432 + $0x38] sm:$0xff] %v447
              %v449 = vld [vmem:[%s431 + $0x40] sm:$0xff]
              %450 = vst [vmem:[%s432 + $0x40] sm:$0xff] %v449
              %v451 = vld [vmem:[%s431 + $0x48] sm:$0xff]
              %452 = vst [vmem:[%s432 + $0x48] sm:$0xff] %v451
              %v453 = vld [vmem:[%s431 + $0x50] sm:$0xff]
              %454 = vst [vmem:[%s432 + $0x50] sm:$0xff] %v453
              %v455 = vld [vmem:[%s431 + $0x58] sm:$0xff]
              %456 = vst [vmem:[%s432 + $0x58] sm:$0xff] %v455
              %v457 = vld [vmem:[%s431 + $0x60] sm:$0xff]
              %458 = vst [vmem:[%s432 + $0x60] sm:$0xff] %v457
              %v459 = vld [vmem:[%s431 + $0x68] sm:$0xff]
              %460 = vst [vmem:[%s432 + $0x68] sm:$0xff] %v459
              %v461 = vld [vmem:[%s431 + $0x70] sm:$0xff]
              %462 = vst [vmem:[%s432 + $0x70] sm:$0xff] %v461
              %v463 = vld [vmem:[%s431 + $0x78] sm:$0xff]
              %464 = vst [vmem:[%s432 + $0x78] sm:$0xff] %v463
              %v465 = vld [vmem:[%s431 + $0x80] sm:$0xff]
              %466 = vst [vmem:[%s432 + $0x80] sm:$0xff] %v465
              %v467 = vld [vmem:[%s431 + $0x88] sm:$0xff]
              %468 = vst [vmem:[%s432 + $0x88] sm:$0xff] %v467
              %v469 = vld [vmem:[%s431 + $0x90] sm:$0xff]
              %470 = vst [vmem:[%s432 + $0x90] sm:$0xff] %v469
              %v471 = vld [vmem:[%s431 + $0x98] sm:$0xff]
              %472 = vst [vmem:[%s432 + $0x98] sm:$0xff] %v471
              %v473 = vld [vmem:[%s431 + $0xa0] sm:$0xff]
              %474 = vst [vmem:[%s432 + $0xa0] sm:$0xff] %v473
              %v475 = vld [vmem:[%s431 + $0xa8] sm:$0xff]
              %476 = vst [vmem:[%s432 + $0xa8] sm:$0xff] %v475
              %v477 = vld [vmem:[%s431 + $0xb0] sm:$0xff]
              %478 = vst [vmem:[%s432 + $0xb0] sm:$0xff] %v477
              %v479 = vld [vmem:[%s431 + $0xb8] sm:$0xff]
              %480 = vst [vmem:[%s432 + $0xb8] sm:$0xff] %v479
              %v481 = vld [vmem:[%s431 + $0xc0] sm:$0xff]
              %482 = vst [vmem:[%s432 + $0xc0] sm:$0xff] %v481
              %v483 = vld [vmem:[%s431 + $0xc8] sm:$0xff]
              %484 = vst [vmem:[%s432 + $0xc8] sm:$0xff] %v483
              %v485 = vld [vmem:[%s431 + $0xd0] sm:$0xff]
              %486 = vst [vmem:[%s432 + $0xd0] sm:$0xff] %v485
            $region92: #{residual_forward.1} parent=86 // loop_footer
              %s430 = sadd.s32 1, %s426
            $region93: #{residual_forward.1} parent=86 // loop_footer_branch
              %425 = sbr.rel target = $region89
            $region94: #{residual_forward.1} parent=86 // loop_exit
              _
          $region87: #{residual_forward.1} parent=71 // pred_fallthru
            _
          %p487 = pneg %p421
          // Predicated region
          $region95: #{residual_forward.1} parent=71 // pred_check
            _
          $region96: #{residual_forward.1} parent=71 // pred_check_branch
            %489 = sbr.rel (%p421) target = $region98
          $region97: #{residual_forward.1} parent=71 // pred_region
            %s490 = sand.u32 216, 7
          $region98: #{residual_forward.1} parent=71 // pred_fallthru
            _
        $region72: #{residual_forward.1} parent=67 // pred_fallthru
          _
        // Predicated region
        $region73: #{residual_forward.1} parent=67 // pred_check
          %p406 = pneg %p402
        $region74: #{residual_forward.1} parent=67 // pred_check_branch
          %408 = sbr.rel (%p406) target = $region76
        $region75: #{residual_forward.1} parent=67 // pred_region
          %s409 = sshllo.u32 0, 216
          loop: start=0, step=1, limit=1
          $region77: #{residual_forward.1} parent=75 // loop_pre_header
            _
          $region78: #{residual_forward.1} parent=75 // loop_header
            %s411 = sphi 0, %s415
            %p412 = scmp.ge.s32.totalorder %s411, 1
            %s416 = sphi %s400, %s400
            %s417 = sphi [#allocation2], [#allocation2]
          $region79: #{residual_forward.1} parent=75 // loop_header_branch
            %414 = sbr.rel (%p412) target = $region83
          $region80: #{residual_forward.1} parent=75 // loop_body
            %v418 = vld [vmem:[%s416] sm:%s409]
            %419 = vst [vmem:[%s417] sm:%s409] %v418
          $region81: #{residual_forward.1} parent=75 // loop_footer
            %s415 = sadd.s32 1, %s411
          $region82: #{residual_forward.1} parent=75 // loop_footer_branch
            %410 = sbr.rel target = $region78
          $region83: #{residual_forward.1} parent=75 // loop_exit
            _
        $region76: #{residual_forward.1} parent=67 // pred_fallthru
          _
        // Predicated region
        $region99: #{residual_forward.1} parent=67 // pred_check
          _
        $region100: #{residual_forward.1} parent=67 // pred_check_branch
          %493 = sbr.rel (0) target = $region102
        $region101: #{residual_forward.1} parent=67 // pred_region
          %494 = vsyncadd [#allocation3], 3456
        $region102: #{residual_forward.1} parent=67 // pred_fallthru
          _
      $region68: #{residual_forward.1} parent=63 // pred_fallthru
        _
      %p495 = scmp.lt.s32.totalorder %s28, 0
      %s496 = ssub.s32 0, %s28
      %s497 = scalar_select %p495, %s496, %s28
      %s498 = sand.u32 %s497, 1
      %s499 = ssub.s32 0, %s498
      %s500 = scalar_select %p495, %s499, %s498
      %p501 = scmp.ne.s32.totalorder %s500, 0
      %p502 = scmp.lt.s32.totalorder %s500, 0
      %p503 = pnand %p502, %p501
      %p504 = pneg %p503
      %s505 = sadd.s32 %s500, 2
      %s506 = scalar_select %p504, %s505, %s500
      %s507 = smul.u32 %s28, 16
      %s508 = smul.u32 %s506, 54
      %s509 = smul.addr %s508, 4
      %s510 = scalar_lea.vmem [#allocation2], %s509
      %s511 = scalar_lea.sflag [#allocation3], %s506
      %s512 = smul.u32 4, 18
      %s513 = smul.u32 %s512, 3
      %s514 = smul.u32 %s513, 1
      %s515 = sshll.u32 %s514, 4
      %516 = dma.done %s511, %s515
      %s517 = sadd.s32 %s28, 1
      %p518 = scmp.lt.s32.totalorder %s517, 1
      // Predicated region
      $region103: #{residual_forward.1} parent=63 // pred_check
        %p519 = pneg %p518
      $region104: #{residual_forward.1} parent=63 // pred_check_branch
        %521 = sbr.rel (%p519) target = $region106
      $region105: #{residual_forward.1} parent=63 // pred_region
        %p522 = scmp.lt.s32.totalorder %s517, 0
        %s523 = ssub.s32 0, %s517
        %s524 = scalar_select %p522, %s523, %s517
        %s525 = sand.u32 %s524, 1
        %s526 = ssub.s32 0, %s525
        %s527 = scalar_select %p522, %s526, %s525
        %p528 = scmp.ne.s32.totalorder %s527, 0
        %p529 = scmp.lt.s32.totalorder %s527, 0
        %p530 = pnand %p529, %p528
        %p531 = pneg %p530
        %s532 = sadd.s32 %s527, 2
        %s533 = scalar_select %p531, %s532, %s527
        %s534 = smul.u32 %s517, 16
        %s535 = smul.u32 %s534, 3
        %s536 = smul.u32 %s27, 54
        %s537 = sadd.s32 %s535, %s536
        %s538 = smul.addr %s537, 4
        %s539 = scalar_lea.vmem %s0, %s538
        %s540 = smul.u32 %s533, 54
        %s541 = smul.addr %s540, 4
        %s542 = scalar_lea.vmem [#allocation2], %s541
        %s543 = scalar_lea.sflag [#allocation3], %s533
        %p545 = scmp.lt.u32.totalorder 216, 8
        %p546 = pneg %p545
        // Predicated region
        $region107: #{residual_forward.1} parent=105 // pred_check
          _
        $region108: #{residual_forward.1} parent=105 // pred_check_branch
          %548 = sbr.rel (%p545) target = $region110
        $region109: #{residual_forward.1} parent=105 // pred_region
          %s563 = sand.u32 216, 7
          %p564 = scmp.eq.s32.totalorder %s563, 0
          // Predicated region
          $region122: #{residual_forward.1} parent=109 // pred_check
            %p565 = pneg %p564
          $region123: #{residual_forward.1} parent=109 // pred_check_branch
            %567 = sbr.rel (%p565) target = $region125
          $region124: #{residual_forward.1} parent=109 // pred_region
            loop: start=0, step=1, limit=1
            $region126: #{residual_forward.1} parent=124 // loop_pre_header
              _
            $region127: #{residual_forward.1} parent=124 // loop_header
              %s569 = sphi 0, %s573
              %p570 = scmp.ge.s32.totalorder %s569, 1
              %s574 = sphi %s539, %s539
              %s575 = sphi %s542, %s542
            $region128: #{residual_forward.1} parent=124 // loop_header_branch
              %572 = sbr.rel (%p570) target = $region132
            $region129: #{residual_forward.1} parent=124 // loop_body
              %v576 = vld [vmem:[%s574] sm:$0xff]
              %577 = vst [vmem:[%s575] sm:$0xff] %v576
              %v578 = vld [vmem:[%s574 + $0x8] sm:$0xff]
              %579 = vst [vmem:[%s575 + $0x8] sm:$0xff] %v578
              %v580 = vld [vmem:[%s574 + $0x10] sm:$0xff]
              %581 = vst [vmem:[%s575 + $0x10] sm:$0xff] %v580
              %v582 = vld [vmem:[%s574 + $0x18] sm:$0xff]
              %583 = vst [vmem:[%s575 + $0x18] sm:$0xff] %v582
              %v584 = vld [vmem:[%s574 + $0x20] sm:$0xff]
              %585 = vst [vmem:[%s575 + $0x20] sm:$0xff] %v584
              %v586 = vld [vmem:[%s574 + $0x28] sm:$0xff]
              %587 = vst [vmem:[%s575 + $0x28] sm:$0xff] %v586
              %v588 = vld [vmem:[%s574 + $0x30] sm:$0xff]
              %589 = vst [vmem:[%s575 + $0x30] sm:$0xff] %v588
              %v590 = vld [vmem:[%s574 + $0x38] sm:$0xff]
              %591 = vst [vmem:[%s575 + $0x38] sm:$0xff] %v590
              %v592 = vld [vmem:[%s574 + $0x40] sm:$0xff]
              %593 = vst [vmem:[%s575 + $0x40] sm:$0xff] %v592
              %v594 = vld [vmem:[%s574 + $0x48] sm:$0xff]
              %595 = vst [vmem:[%s575 + $0x48] sm:$0xff] %v594
              %v596 = vld [vmem:[%s574 + $0x50] sm:$0xff]
              %597 = vst [vmem:[%s575 + $0x50] sm:$0xff] %v596
              %v598 = vld [vmem:[%s574 + $0x58] sm:$0xff]
              %599 = vst [vmem:[%s575 + $0x58] sm:$0xff] %v598
              %v600 = vld [vmem:[%s574 + $0x60] sm:$0xff]
              %601 = vst [vmem:[%s575 + $0x60] sm:$0xff] %v600
              %v602 = vld [vmem:[%s574 + $0x68] sm:$0xff]
              %603 = vst [vmem:[%s575 + $0x68] sm:$0xff] %v602
              %v604 = vld [vmem:[%s574 + $0x70] sm:$0xff]
              %605 = vst [vmem:[%s575 + $0x70] sm:$0xff] %v604
              %v606 = vld [vmem:[%s574 + $0x78] sm:$0xff]
              %607 = vst [vmem:[%s575 + $0x78] sm:$0xff] %v606
              %v608 = vld [vmem:[%s574 + $0x80] sm:$0xff]
              %609 = vst [vmem:[%s575 + $0x80] sm:$0xff] %v608
              %v610 = vld [vmem:[%s574 + $0x88] sm:$0xff]
              %611 = vst [vmem:[%s575 + $0x88] sm:$0xff] %v610
              %v612 = vld [vmem:[%s574 + $0x90] sm:$0xff]
              %613 = vst [vmem:[%s575 + $0x90] sm:$0xff] %v612
              %v614 = vld [vmem:[%s574 + $0x98] sm:$0xff]
              %615 = vst [vmem:[%s575 + $0x98] sm:$0xff] %v614
              %v616 = vld [vmem:[%s574 + $0xa0] sm:$0xff]
              %617 = vst [vmem:[%s575 + $0xa0] sm:$0xff] %v616
              %v618 = vld [vmem:[%s574 + $0xa8] sm:$0xff]
              %619 = vst [vmem:[%s575 + $0xa8] sm:$0xff] %v618
              %v620 = vld [vmem:[%s574 + $0xb0] sm:$0xff]
              %621 = vst [vmem:[%s575 + $0xb0] sm:$0xff] %v620
              %v622 = vld [vmem:[%s574 + $0xb8] sm:$0xff]
              %623 = vst [vmem:[%s575 + $0xb8] sm:$0xff] %v622
              %v624 = vld [vmem:[%s574 + $0xc0] sm:$0xff]
              %625 = vst [vmem:[%s575 + $0xc0] sm:$0xff] %v624
              %v626 = vld [vmem:[%s574 + $0xc8] sm:$0xff]
              %627 = vst [vmem:[%s575 + $0xc8] sm:$0xff] %v626
              %v628 = vld [vmem:[%s574 + $0xd0] sm:$0xff]
              %629 = vst [vmem:[%s575 + $0xd0] sm:$0xff] %v628
            $region130: #{residual_forward.1} parent=124 // loop_footer
              %s573 = sadd.s32 1, %s569
            $region131: #{residual_forward.1} parent=124 // loop_footer_branch
              %568 = sbr.rel target = $region127
            $region132: #{residual_forward.1} parent=124 // loop_exit
              _
          $region125: #{residual_forward.1} parent=109 // pred_fallthru
            _
          %p630 = pneg %p564
          // Predicated region
          $region133: #{residual_forward.1} parent=109 // pred_check
            _
          $region134: #{residual_forward.1} parent=109 // pred_check_branch
            %632 = sbr.rel (%p564) target = $region136
          $region135: #{residual_forward.1} parent=109 // pred_region
            %s633 = sand.u32 216, 7
          $region136: #{residual_forward.1} parent=109 // pred_fallthru
            _
        $region110: #{residual_forward.1} parent=105 // pred_fallthru
          _
        // Predicated region
        $region111: #{residual_forward.1} parent=105 // pred_check
          %p549 = pneg %p545
        $region112: #{residual_forward.1} parent=105 // pred_check_branch
          %551 = sbr.rel (%p549) target = $region114
        $region113: #{residual_forward.1} parent=105 // pred_region
          %s552 = sshllo.u32 0, 216
          loop: start=0, step=1, limit=1
          $region115: #{residual_forward.1} parent=113 // loop_pre_header
            _
          $region116: #{residual_forward.1} parent=113 // loop_header
            %s554 = sphi 0, %s558
            %p555 = scmp.ge.s32.totalorder %s554, 1
            %s559 = sphi %s539, %s539
            %s560 = sphi %s542, %s542
          $region117: #{residual_forward.1} parent=113 // loop_header_branch
            %557 = sbr.rel (%p555) target = $region121
          $region118: #{residual_forward.1} parent=113 // loop_body
            %v561 = vld [vmem:[%s559] sm:%s552]
            %562 = vst [vmem:[%s560] sm:%s552] %v561
          $region119: #{residual_forward.1} parent=113 // loop_footer
            %s558 = sadd.s32 1, %s554
          $region120: #{residual_forward.1} parent=113 // loop_footer_branch
            %553 = sbr.rel target = $region116
          $region121: #{residual_forward.1} parent=113 // loop_exit
            _
        $region114: #{residual_forward.1} parent=105 // pred_fallthru
          _
        // Predicated region
        $region137: #{residual_forward.1} parent=105 // pred_check
          _
        $region138: #{residual_forward.1} parent=105 // pred_check_branch
          %636 = sbr.rel (0) target = $region140
        $region139: #{residual_forward.1} parent=105 // pred_region
          %637 = vsyncadd %s543, 3456
        $region140: #{residual_forward.1} parent=105 // pred_fallthru
          _
      $region106: #{residual_forward.1} parent=63 // pred_fallthru
        _
      %v638 = vld [vmem:[%s510] sm:$0xf]
      %v639 = vld [vmem:[%s510 + $0x4] sm:$0xf]
      %v640 = vld [vmem:[%s510 + $0x8] sm:$0xf]
      %v641 = vld [vmem:[%s510 + $0xc] sm:$0xf]
      %v642 = vld [vmem:[%s510 + $0x10] sm:$0xf]
      %v643 = vld [vmem:[%s510 + $0x14] sm:$0xf]
      %v644 = vld [vmem:[%s510 + $0x18] sm:$0xf]
      %v645 = vld [vmem:[%s510 + $0x1c] sm:$0xf]
      %v646 = vld [vmem:[%s510 + $0x20] sm:$0xf]
      %v647 = vld [vmem:[%s510 + $0x24] sm:$0xf]
      %v648 = vld [vmem:[%s510 + $0x28] sm:$0xf]
      %v649 = vld [vmem:[%s510 + $0x2c] sm:$0xf]
      %v650 = vld [vmem:[%s510 + $0x30] sm:$0xf]
      %v651 = vld [vmem:[%s510 + $0x34] sm:$0xf]
      %v652 = vld [vmem:[%s510 + $0x38] sm:$0xf]
      %v653 = vld [vmem:[%s510 + $0x3c] sm:$0xf]
      %v654 = vld [vmem:[%s510 + $0x40] sm:$0xf]
      %v655 = vld [vmem:[%s510 + $0x44] sm:$0xf]
      %v656 = vld [vmem:[%s510 + $0x48] sm:$0xf]
      %v657 = vld [vmem:[%s510 + $0x4c] sm:$0xf]
      %v658 = vld [vmem:[%s510 + $0x50] sm:$0xf]
      %v659 = vld [vmem:[%s510 + $0x54] sm:$0xf]
      %v660 = vld [vmem:[%s510 + $0x58] sm:$0xf]
      %v661 = vld [vmem:[%s510 + $0x5c] sm:$0xf]
      %v662 = vld [vmem:[%s510 + $0x60] sm:$0xf]
      %v663 = vld [vmem:[%s510 + $0x64] sm:$0xf]
      %v664 = vld [vmem:[%s510 + $0x68] sm:$0xf]
      %v665 = vld [vmem:[%s510 + $0x6c] sm:$0xf]
      %v666 = vld [vmem:[%s510 + $0x70] sm:$0xf]
      %v667 = vld [vmem:[%s510 + $0x74] sm:$0xf]
      %v668 = vld [vmem:[%s510 + $0x78] sm:$0xf]
      %v669 = vld [vmem:[%s510 + $0x7c] sm:$0xf]
      %v670 = vld [vmem:[%s510 + $0x80] sm:$0xf]
      %v671 = vld [vmem:[%s510 + $0x84] sm:$0xf]
      %v672 = vld [vmem:[%s510 + $0x88] sm:$0xf]
      %v673 = vld [vmem:[%s510 + $0x8c] sm:$0xf]
      %v674 = vld [vmem:[%s510 + $0x90] sm:$0xf]
      %v675 = vld [vmem:[%s510 + $0x94] sm:$0xf]
      %v676 = vld [vmem:[%s510 + $0x98] sm:$0xf]
      %v677 = vld [vmem:[%s510 + $0x9c] sm:$0xf]
      %v678 = vld [vmem:[%s510 + $0xa0] sm:$0xf]
      %v679 = vld [vmem:[%s510 + $0xa4] sm:$0xf]
      %v680 = vld [vmem:[%s510 + $0xa8] sm:$0xf]
      %v681 = vld [vmem:[%s510 + $0xac] sm:$0xf]
      %v682 = vld [vmem:[%s510 + $0xb0] sm:$0xf]
      %v683 = vld [vmem:[%s510 + $0xb4] sm:$0xf]
      %v684 = vld [vmem:[%s510 + $0xb8] sm:$0xf]
      %v685 = vld [vmem:[%s510 + $0xbc] sm:$0xf]
      %v686 = vld [vmem:[%s510 + $0xc0] sm:$0xf]
      %v687 = vld [vmem:[%s510 + $0xc4] sm:$0xf]
      %v688 = vld [vmem:[%s510 + $0xc8] sm:$0xf]
      %v689 = vld [vmem:[%s510 + $0xcc] sm:$0xf]
      %v690 = vld [vmem:[%s510 + $0xd0] sm:$0xf]
      %v691 = vld [vmem:[%s510 + $0xd4] sm:$0xf]
      %v692 = vunpack.c.l.bf16 %v638
      %v693 = vunpack.c.l.bf16 %v639
      %v694 = vunpack.c.l.bf16 %v640
      %v695 = vunpack.c.l.bf16 %v641
      %v696 = vunpack.c.l.bf16 %v642
      %v697 = vunpack.c.l.bf16 %v643
      %v698 = vunpack.c.l.bf16 %v644
      %v699 = vunpack.c.l.bf16 %v645
      %v700 = vunpack.c.l.bf16 %v646
      %v701 = vunpack.c.l.bf16 %v647
      %v702 = vunpack.c.l.bf16 %v648
      %v703 = vunpack.c.l.bf16 %v649
      %v704 = vunpack.c.l.bf16 %v650
      %v705 = vunpack.c.l.bf16 %v651
      %v706 = vunpack.c.l.bf16 %v652
      %v707 = vunpack.c.l.bf16 %v653
      %v708 = vunpack.c.l.bf16 %v654
      %v709 = vunpack.c.l.bf16 %v655
      %v710 = vunpack.c.l.bf16 %v656
      %v711 = vunpack.c.l.bf16 %v657
      %v712 = vunpack.c.l.bf16 %v658
      %v713 = vunpack.c.l.bf16 %v659
      %v714 = vunpack.c.l.bf16 %v660
      %v715 = vunpack.c.l.bf16 %v661
      %v716 = vunpack.c.l.bf16 %v662
      %v717 = vunpack.c.l.bf16 %v663
      %v718 = vunpack.c.l.bf16 %v664
      %v719 = vunpack.c.l.bf16 %v665
      %v720 = vunpack.c.l.bf16 %v666
      %v721 = vunpack.c.l.bf16 %v667
      %v722 = vunpack.c.l.bf16 %v668
      %v723 = vunpack.c.l.bf16 %v669
      %v724 = vunpack.c.l.bf16 %v670
      %v725 = vunpack.c.l.bf16 %v671
      %v726 = vunpack.c.l.bf16 %v672
      %v727 = vunpack.c.l.bf16 %v673
      %v728 = vunpack.c.l.bf16 %v674
      %v729 = vunpack.c.l.bf16 %v675
      %v730 = vunpack.c.l.bf16 %v676
      %v731 = vunpack.c.l.bf16 %v677
      %v732 = vunpack.c.l.bf16 %v678
      %v733 = vunpack.c.l.bf16 %v679
      %v734 = vunpack.c.l.bf16 %v680
      %v735 = vunpack.c.l.bf16 %v681
      %v736 = vunpack.c.l.bf16 %v682
      %v737 = vunpack.c.l.bf16 %v683
      %v738 = vunpack.c.l.bf16 %v684
      %v739 = vunpack.c.l.bf16 %v685
      %v740 = vunpack.c.l.bf16 %v686
      %v741 = vunpack.c.l.bf16 %v687
      %v742 = vunpack.c.l.bf16 %v688
      %v743 = vunpack.c.l.bf16 %v689
      %v744 = vunpack.c.l.bf16 %v690
      %v745 = vunpack.c.l.bf16 %v691
      %v746 = vld [vmem:[%s1] sm:$0x1]
      %v748 = vlaneseq
      %v749 = vshrl.u32 %v748, 7
      %v750 = vsub.s32 0, %v749
      %v751 = vrot.slane %v746, %v750
      %v753 = vmul.f32 %v692, %v751
      %v754 = vmul.f32 %v693, %v751
      %v755 = vmul.f32 %v694, %v751
      %v756 = vmul.f32 %v695, %v751
      %v757 = vmul.f32 %v696, %v751
      %v758 = vmul.f32 %v697, %v751
      %v759 = vmul.f32 %v698, %v751
      %v760 = vmul.f32 %v699, %v751
      %v761 = vmul.f32 %v700, %v751
      %v762 = vmul.f32 %v701, %v751
      %v763 = vmul.f32 %v702, %v751
      %v764 = vmul.f32 %v703, %v751
      %v765 = vmul.f32 %v704, %v751
      %v766 = vmul.f32 %v705, %v751
      %v767 = vmul.f32 %v706, %v751
      %v768 = vmul.f32 %v707, %v751
      %v769 = vmul.f32 %v708, %v751
      %v770 = vmul.f32 %v709, %v751
      %v771 = vmul.f32 %v710, %v751
      %v772 = vmul.f32 %v711, %v751
      %v773 = vmul.f32 %v712, %v751
      %v774 = vmul.f32 %v713, %v751
      %v775 = vmul.f32 %v714, %v751
      %v776 = vmul.f32 %v715, %v751
      %v777 = vmul.f32 %v716, %v751
      %v778 = vmul.f32 %v717, %v751
      %v779 = vmul.f32 %v718, %v751
      %v780 = vmul.f32 %v719, %v751
      %v781 = vmul.f32 %v720, %v751
      %v782 = vmul.f32 %v721, %v751
      %v783 = vmul.f32 %v722, %v751
      %v784 = vmul.f32 %v723, %v751
      %v785 = vmul.f32 %v724, %v751
      %v786 = vmul.f32 %v725, %v751
      %v787 = vmul.f32 %v726, %v751
      %v788 = vmul.f32 %v727, %v751
      %v789 = vmul.f32 %v728, %v751
      %v790 = vmul.f32 %v729, %v751
      %v791 = vmul.f32 %v730, %v751
      %v792 = vmul.f32 %v731, %v751
      %v793 = vmul.f32 %v732, %v751
      %v794 = vmul.f32 %v733, %v751
      %v795 = vmul.f32 %v734, %v751
      %v796 = vmul.f32 %v735, %v751
      %v797 = vmul.f32 %v736, %v751
      %v798 = vmul.f32 %v737, %v751
      %v799 = vmul.f32 %v738, %v751
      %v800 = vmul.f32 %v739, %v751
      %v801 = vmul.f32 %v740, %v751
      %v802 = vmul.f32 %v741, %v751
      %v803 = vmul.f32 %v742, %v751
      %v804 = vmul.f32 %v743, %v751
      %v805 = vmul.f32 %v744, %v751
      %v806 = vmul.f32 %v745, %v751
      %v807 = vld [vmem:[%s2] sm:$0x1]
      %v809 = vlaneseq
      %v810 = vshrl.u32 %v809, 7
      %v811 = vsub.s32 0, %v810
      %v812 = vrot.slane %v807, %v811
      %v814 = vadd.f32 %v753, %v812
      %v815 = vadd.f32 %v754, %v812
      %v816 = vadd.f32 %v755, %v812
      %v817 = vadd.f32 %v756, %v812
      %v818 = vadd.f32 %v757, %v812
      %v819 = vadd.f32 %v758, %v812
      %v820 = vadd.f32 %v759, %v812
      %v821 = vadd.f32 %v760, %v812
      %v822 = vadd.f32 %v761, %v812
      %v823 = vadd.f32 %v762, %v812
      %v824 = vadd.f32 %v763, %v812
      %v825 = vadd.f32 %v764, %v812
      %v826 = vadd.f32 %v765, %v812
      %v827 = vadd.f32 %v766, %v812
      %v828 = vadd.f32 %v767, %v812
      %v829 = vadd.f32 %v768, %v812
      %v830 = vadd.f32 %v769, %v812
      %v831 = vadd.f32 %v770, %v812
      %v832 = vadd.f32 %v771, %v812
      %v833 = vadd.f32 %v772, %v812
      %v834 = vadd.f32 %v773, %v812
      %v835 = vadd.f32 %v774, %v812
      %v836 = vadd.f32 %v775, %v812
      %v837 = vadd.f32 %v776, %v812
      %v838 = vadd.f32 %v777, %v812
      %v839 = vadd.f32 %v778, %v812
      %v840 = vadd.f32 %v779, %v812
      %v841 = vadd.f32 %v780, %v812
      %v842 = vadd.f32 %v781, %v812
      %v843 = vadd.f32 %v782, %v812
      %v844 = vadd.f32 %v783, %v812
      %v845 = vadd.f32 %v784, %v812
      %v846 = vadd.f32 %v785, %v812
      %v847 = vadd.f32 %v786, %v812
      %v848 = vadd.f32 %v787, %v812
      %v849 = vadd.f32 %v788, %v812
      %v850 = vadd.f32 %v789, %v812
      %v851 = vadd.f32 %v790, %v812
      %v852 = vadd.f32 %v791, %v812
      %v853 = vadd.f32 %v792, %v812
      %v854 = vadd.f32 %v793, %v812
      %v855 = vadd.f32 %v794, %v812
      %v856 = vadd.f32 %v795, %v812
      %v857 = vadd.f32 %v796, %v812
      %v858 = vadd.f32 %v797, %v812
      %v859 = vadd.f32 %v798, %v812
      %v860 = vadd.f32 %v799, %v812
      %v861 = vadd.f32 %v800, %v812
      %v862 = vadd.f32 %v801, %v812
      %v863 = vadd.f32 %v802, %v812
      %v864 = vadd.f32 %v803, %v812
      %v865 = vadd.f32 %v804, %v812
      %v866 = vadd.f32 %v805, %v812
      %v867 = vadd.f32 %v806, %v812
      %v868 = vmax.f32 %v814, 0.0
      %v869 = vmax.f32 %v815, 0.0
      %v870 = vmax.f32 %v816, 0.0
      %v871 = vmax.f32 %v817, 0.0
      %v872 = vmax.f32 %v818, 0.0
      %v873 = vmax.f32 %v819, 0.0
      %v874 = vmax.f32 %v820, 0.0
      %v875 = vmax.f32 %v821, 0.0
      %v876 = vmax.f32 %v822, 0.0
      %v877 = vmax.f32 %v823, 0.0
      %v878 = vmax.f32 %v824, 0.0
      %v879 = vmax.f32 %v825, 0.0
      %v880 = vmax.f32 %v826, 0.0
      %v881 = vmax.f32 %v827, 0.0
      %v882 = vmax.f32 %v828, 0.0
      %v883 = vmax.f32 %v829, 0.0
      %v884 = vmax.f32 %v830, 0.0
      %v885 = vmax.f32 %v831, 0.0
      %v886 = vmax.f32 %v832, 0.0
      %v887 = vmax.f32 %v833, 0.0
      %v888 = vmax.f32 %v834, 0.0
      %v889 = vmax.f32 %v835, 0.0
      %v890 = vmax.f32 %v836, 0.0
      %v891 = vmax.f32 %v837, 0.0
      %v892 = vmax.f32 %v838, 0.0
      %v893 = vmax.f32 %v839, 0.0
      %v894 = vmax.f32 %v840, 0.0
      %v895 = vmax.f32 %v841, 0.0
      %v896 = vmax.f32 %v842, 0.0
      %v897 = vmax.f32 %v843, 0.0
      %v898 = vmax.f32 %v844, 0.0
      %v899 = vmax.f32 %v845, 0.0
      %v900 = vmax.f32 %v846, 0.0
      %v901 = vmax.f32 %v847, 0.0
      %v902 = vmax.f32 %v848, 0.0
      %v903 = vmax.f32 %v849, 0.0
      %v904 = vmax.f32 %v850, 0.0
      %v905 = vmax.f32 %v851, 0.0
      %v906 = vmax.f32 %v852, 0.0
      %v907 = vmax.f32 %v853, 0.0
      %v908 = vmax.f32 %v854, 0.0
      %v909 = vmax.f32 %v855, 0.0
      %v910 = vmax.f32 %v856, 0.0
      %v911 = vmax.f32 %v857, 0.0
      %v912 = vmax.f32 %v858, 0.0
      %v913 = vmax.f32 %v859, 0.0
      %v914 = vmax.f32 %v860, 0.0
      %v915 = vmax.f32 %v861, 0.0
      %v916 = vmax.f32 %v862, 0.0
      %v917 = vmax.f32 %v863, 0.0
      %v918 = vmax.f32 %v864, 0.0
      %v919 = vmax.f32 %v865, 0.0
      %v920 = vmax.f32 %v866, 0.0
      %v921 = vmax.f32 %v867, 0.0
      %v922 = vpack.c.bf16 %v869, %v868
      %v923 = vpack.c.bf16 %v871, %v870
      %v924 = vpack.c.bf16 %v873, %v872
      %v925 = vpack.c.bf16 %v875, %v874
      %v926 = vpack.c.bf16 %v877, %v876
      %v927 = vpack.c.bf16 %v879, %v878
      %v928 = vpack.c.bf16 %v881, %v880
      %v929 = vpack.c.bf16 %v883, %v882
      %v930 = vpack.c.bf16 %v885, %v884
      %v931 = vpack.c.bf16 %v887, %v886
      %v932 = vpack.c.bf16 %v889, %v888
      %v933 = vpack.c.bf16 %v891, %v890
      %v934 = vpack.c.bf16 %v893, %v892
      %v935 = vpack.c.bf16 %v895, %v894
      %v936 = vpack.c.bf16 %v897, %v896
      %v937 = vpack.c.bf16 %v899, %v898
      %v938 = vpack.c.bf16 %v901, %v900
      %v939 = vpack.c.bf16 %v903, %v902
      %v940 = vpack.c.bf16 %v905, %v904
      %v941 = vpack.c.bf16 %v907, %v906
      %v942 = vpack.c.bf16 %v909, %v908
      %v943 = vpack.c.bf16 %v911, %v910
      %v944 = vpack.c.bf16 %v913, %v912
      %v945 = vpack.c.bf16 %v915, %v914
      %v946 = vpack.c.bf16 %v917, %v916
      %v947 = vpack.c.bf16 %v919, %v918
      %v948 = vpack.c.bf16 %v921, %v920
      %v949 = vld [vmem:[%s3] sm:$0xf]
      %v950 = vld [vmem:[%s3 + $0x4] sm:$0xf]
      %v951 = vld [vmem:[%s3 + $0x8] sm:$0xf]
      %v952 = vld [vmem:[%s3 + $0xc] sm:$0xf]
      %v953 = vld [vmem:[%s3 + $0x10] sm:$0xf]
      %v954 = vld [vmem:[%s3 + $0x14] sm:$0xf]
      %v955 = vld [vmem:[%s3 + $0x18] sm:$0xf]
      %v956 = vld [vmem:[%s3 + $0x1c] sm:$0xf]
      %v957 = vld [vmem:[%s3 + $0x20] sm:$0xf]
      %v958 = vld [vmem:[%s3 + $0x24] sm:$0xf]
      %v959 = vld [vmem:[%s3 + $0x28] sm:$0xf]
      %v960 = vld [vmem:[%s3 + $0x2c] sm:$0xf]
      %v961 = vld [vmem:[%s3 + $0x30] sm:$0xf]
      %v962 = vld [vmem:[%s3 + $0x34] sm:$0xf]
      %v963 = vld [vmem:[%s3 + $0x38] sm:$0xf]
      %v964 = vld [vmem:[%s3 + $0x3c] sm:$0xf]
      %v981 = vunpack.c.l.b16 %v949
      %v982 = vunpack.c.l.b16 %v950
      %v983 = vunpack.c.l.b16 %v951
      %v984 = vunpack.c.l.b16 %v952
      %v985 = vunpack.c.l.b16 %v953
      %v986 = vunpack.c.l.b16 %v954
      %v987 = vunpack.c.l.b16 %v955
      %v988 = vunpack.c.l.b16 %v956
      %v989 = vunpack.c.l.b16 %v957
      %v990 = vunpack.c.l.b16 %v958
      %v991 = vunpack.c.l.b16 %v959
      %v992 = vunpack.c.l.b16 %v960
      %v993 = vunpack.c.l.b16 %v961
      %v994 = vunpack.c.l.b16 %v962
      %v995 = vunpack.c.l.b16 %v963
      %v996 = vunpack.c.l.b16 %v964
      %v997 = vpack.c.b16 %v982, %v981
      %v998 = vpack.c.b16 %v984, %v983
      %v999 = vpack.c.b16 %v986, %v985
      %v1000 = vpack.c.b16 %v988, %v987
      %v1001 = vpack.c.b16 %v990, %v989
      %v1002 = vpack.c.b16 %v992, %v991
      %v1003 = vpack.c.b16 %v994, %v993
      %v1004 = vpack.c.b16 %v996, %v995
      %1013 = vmatprep.subr.bf16.mxu0 0
      %1014 = vmatpush1.bf16.msra.mxu0 %v997
      %1015 = vmatprep.subr.bf16.mxu0 0
      %1016 = vmatpush1.bf16.msra.mxu0 %v998
      %1017 = vmatprep.subr.bf16.mxu0 0
      %1018 = vmatpush1.bf16.msra.mxu0 %v999
      %1019 = vmatprep.subr.bf16.mxu0 0
      %1020 = vmatpush1.bf16.msra.mxu0 %v1000
      %1021 = vmatprep.subr.bf16.mxu0 0
      %1022 = vmatpush1.bf16.msra.mxu0 %v1001
      %1023 = vmatprep.subr.bf16.mxu0 0
      %1024 = vmatpush1.bf16.msra.mxu0 %v1002
      %1025 = vmatprep.subr.bf16.mxu0 0
      %1026 = vmatpush1.bf16.msra.mxu0 %v1003
      %1027 = vmatprep.subr.bf16.mxu0 0
      %1028 = vmatpush1.bf16.msra.mxu0 %v1004
      %1029 = vmatprep.subr.bf16.mxu0 0
      %1030 = vmatpush1.bf16.msra.mxu0 0
      %1031 = vmatprep.subr.bf16.mxu0 0
      %1032 = vmatpush1.bf16.msra.mxu0 0
      %1033 = vmatprep.subr.bf16.mxu0 0
      %1034 = vmatpush1.bf16.msra.mxu0 0
      %1035 = vmatprep.subr.bf16.mxu0 0
      %1036 = vmatpush1.bf16.msra.mxu0 0
      %1037 = vmatprep.subr.bf16.mxu0 0
      %1038 = vmatpush1.bf16.msra.mxu0 0
      %1039 = vmatprep.subr.bf16.mxu0 0
      %1040 = vmatpush1.bf16.msra.mxu0 0
      %1041 = vmatprep.subr.bf16.mxu0 0
      %1042 = vmatpush1.bf16.msra.mxu0 0
      %1043 = vmatprep.subr.bf16.mxu0 0
      %1044 = vmatpush1.bf16.msra.mxu0 0
      %1045 = vmatprep.mubr.bf16.mxu0 0
      %1046 = vmatmul.mubr.bf16.gmra.mrb[0].mxu0 %v922
      %v1047 = vpop.f32.mrb[0].mxu0
      %v1048 = vadd.f32 0.0, %v1047
      %v1049 = vpop.f32.mrb[0].mxu0
      %v1050 = vpop.f32.mrb[0].mxu0
      %v1051 = vadd.f32 0.0, %v1050
      %v1052 = vpop.f32.mrb[0].mxu0
      %1053 = vmatprep.mubr.bf16.mxu0 0
      %1054 = vmatmul.mubr.bf16.gmra.mrb[0].mxu0 %v923
      %v1055 = vpop.f32.mrb[0].mxu0
      %v1056 = vadd.f32 0.0, %v1055
      %v1057 = vpop.f32.mrb[0].mxu0
      %v1058 = vpop.f32.mrb[0].mxu0
      %v1059 = vadd.f32 0.0, %v1058
      %v1060 = vpop.f32.mrb[0].mxu0
      %1061 = vmatprep.mubr.bf16.mxu0 0
      %1062 = vmatmul.mubr.bf16.gmra.mrb[0].mxu0 %v924
      %v1063 = vpop.f32.mrb[0].mxu0
      %v1064 = vadd.f32 0.0, %v1063
      %v1065 = vpop.f32.mrb[0].mxu0
      %v1066 = vpop.f32.mrb[0].mxu0
      %v1067 = vadd.f32 0.0, %v1066
      %v1068 = vpop.f32.mrb[0].mxu0
      %1069 = vmatprep.mubr.bf16.mxu0 0
      %1070 = vmatmul.mubr.bf16.gmra.mrb[0].mxu0 %v925
      %v1071 = vpop.f32.mrb[0].mxu0
      %v1072 = vadd.f32 0.0, %v1071
      %v1073 = vpop.f32.mrb[0].mxu0
      %v1074 = vpop.f32.mrb[0].mxu0
      %v1075 = vadd.f32 0.0, %v1074
      %v1076 = vpop.f32.mrb[0].mxu0
      %1077 = vmatprep.mubr.bf16.mxu0 0
      %1078 = vmatmul.mubr.bf16.gmra.mrb[0].mxu0 %v926
      %v1079 = vpop.f32.mrb[0].mxu0
      %v1080 = vadd.f32 0.0, %v1079
      %v1081 = vpop.f32.mrb[0].mxu0
      %v1082 = vpop.f32.mrb[0].mxu0
      %v1083 = vadd.f32 0.0, %v1082
      %v1084 = vpop.f32.mrb[0].mxu0
      %1085 = vmatprep.mubr.bf16.mxu0 0
      %1086 = vmatmul.mubr.bf16.gmra.mrb[0].mxu0 %v927
      %v1087 = vpop.f32.mrb[0].mxu0
      %v1088 = vadd.f32 0.0, %v1087
      %v1089 = vpop.f32.mrb[0].mxu0
      %v1090 = vpop.f32.mrb[0].mxu0
      %v1091 = vadd.f32 0.0, %v1090
      %v1092 = vpop.f32.mrb[0].mxu0
      %1093 = vmatprep.mubr.bf16.mxu0 0
      %1094 = vmatmul.mubr.bf16.gmra.mrb[0].mxu0 %v928
      %v1095 = vpop.f32.mrb[0].mxu0
      %v1096 = vadd.f32 0.0, %v1095
      %v1097 = vpop.f32.mrb[0].mxu0
      %v1098 = vpop.f32.mrb[0].mxu0
      %v1099 = vadd.f32 0.0, %v1098
      %v1100 = vpop.f32.mrb[0].mxu0
      %1101 = vmatprep.mubr.bf16.mxu0 0
      %1102 = vmatmul.mubr.bf16.gmra.mrb[0].mxu0 %v929
      %v1103 = vpop.f32.mrb[0].mxu0
      %v1104 = vadd.f32 0.0, %v1103
      %v1105 = vpop.f32.mrb[0].mxu0
      %v1106 = vpop.f32.mrb[0].mxu0
      %v1107 = vadd.f32 0.0, %v1106
      %v1108 = vpop.f32.mrb[0].mxu0
      %1109 = vmatprep.mubr.bf16.mxu0 0
      %1110 = vmatmul.mubr.bf16.gmra.mrb[0].mxu0 %v930
      %v1111 = vpop.f32.mrb[0].mxu0
      %v1112 = vadd.f32 0.0, %v1111
      %v1113 = vpop.f32.mrb[0].mxu0
      %v1114 = vpop.f32.mrb[0].mxu0
      %v1115 = vadd.f32 0.0, %v1114
      %v1116 = vpop.f32.mrb[0].mxu0
      %1117 = vmatprep.mubr.bf16.mxu0 0
      %1118 = vmatmul.mubr.bf16.gmra.mrb[0].mxu0 %v931
      %v1119 = vpop.f32.mrb[0].mxu0
      %v1120 = vadd.f32 0.0, %v1119
      %v1121 = vpop.f32.mrb[0].mxu0
      %v1122 = vpop.f32.mrb[0].mxu0
      %v1123 = vadd.f32 0.0, %v1122
      %v1124 = vpop.f32.mrb[0].mxu0
      %1125 = vmatprep.mubr.bf16.mxu0 0
      %1126 = vmatmul.mubr.bf16.gmra.mrb[0].mxu0 %v932
      %v1127 = vpop.f32.mrb[0].mxu0
      %v1128 = vadd.f32 0.0, %v1127
      %v1129 = vpop.f32.mrb[0].mxu0
      %v1130 = vpop.f32.mrb[0].mxu0
      %v1131 = vadd.f32 0.0, %v1130
      %v1132 = vpop.f32.mrb[0].mxu0
      %1133 = vmatprep.mubr.bf16.mxu0 0
      %1134 = vmatmul.mubr.bf16.gmra.mrb[0].mxu0 %v933
      %v1135 = vpop.f32.mrb[0].mxu0
      %v1136 = vadd.f32 0.0, %v1135
      %v1137 = vpop.f32.mrb[0].mxu0
      %v1138 = vpop.f32.mrb[0].mxu0
      %v1139 = vadd.f32 0.0, %v1138
      %v1140 = vpop.f32.mrb[0].mxu0
      %1141 = vmatprep.mubr.bf16.mxu0 0
      %1142 = vmatmul.mubr.bf16.gmra.mrb[0].mxu0 %v934
      %v1143 = vpop.f32.mrb[0].mxu0
      %v1144 = vadd.f32 0.0, %v1143
      %v1145 = vpop.f32.mrb[0].mxu0
      %v1146 = vpop.f32.mrb[0].mxu0
      %v1147 = vadd.f32 0.0, %v1146
      %v1148 = vpop.f32.mrb[0].mxu0
      %1149 = vmatprep.mubr.bf16.mxu0 0
      %1150 = vmatmul.mubr.bf16.gmra.mrb[0].mxu0 %v935
      %v1151 = vpop.f32.mrb[0].mxu0
      %v1152 = vadd.f32 0.0, %v1151
      %v1153 = vpop.f32.mrb[0].mxu0
      %v1154 = vpop.f32.mrb[0].mxu0
      %v1155 = vadd.f32 0.0, %v1154
      %v1156 = vpop.f32.mrb[0].mxu0
      %1157 = vmatprep.mubr.bf16.mxu0 0
      %1158 = vmatmul.mubr.bf16.gmra.mrb[0].mxu0 %v936
      %v1159 = vpop.f32.mrb[0].mxu0
      %v1160 = vadd.f32 0.0, %v1159
      %v1161 = vpop.f32.mrb[0].mxu0
      %v1162 = vpop.f32.mrb[0].mxu0
      %v1163 = vadd.f32 0.0, %v1162
      %v1164 = vpop.f32.mrb[0].mxu0
      %1165 = vmatprep.mubr.bf16.mxu0 0
      %1166 = vmatmul.mubr.bf16.gmra.mrb[0].mxu0 %v937
      %v1167 = vpop.f32.mrb[0].mxu0
      %v1168 = vadd.f32 0.0, %v1167
      %v1169 = vpop.f32.mrb[0].mxu0
      %v1170 = vpop.f32.mrb[0].mxu0
      %v1171 = vadd.f32 0.0, %v1170
      %v1172 = vpop.f32.mrb[0].mxu0
      %1173 = vmatprep.mubr.bf16.mxu0 0
      %1174 = vmatmul.mubr.bf16.gmra.mrb[0].mxu0 %v938
      %v1175 = vpop.f32.mrb[0].mxu0
      %v1176 = vadd.f32 0.0, %v1175
      %v1177 = vpop.f32.mrb[0].mxu0
      %v1178 = vpop.f32.mrb[0].mxu0
      %v1179 = vadd.f32 0.0, %v1178
      %v1180 = vpop.f32.mrb[0].mxu0
      %1181 = vmatprep.mubr.bf16.mxu0 0
      %1182 = vmatmul.mubr.bf16.gmra.mrb[0].mxu0 %v939
      %v1183 = vpop.f32.mrb[0].mxu0
      %v1184 = vadd.f32 0.0, %v1183
      %v1185 = vpop.f32.mrb[0].mxu0
      %v1186 = vpop.f32.mrb[0].mxu0
      %v1187 = vadd.f32 0.0, %v1186
      %v1188 = vpop.f32.mrb[0].mxu0
      %1189 = vmatprep.mubr.bf16.mxu0 0
      %1190 = vmatmul.mubr.bf16.gmra.mrb[0].mxu0 %v940
      %v1191 = vpop.f32.mrb[0].mxu0
      %v1192 = vadd.f32 0.0, %v1191
      %v1193 = vpop.f32.mrb[0].mxu0
      %v1194 = vpop.f32.mrb[0].mxu0
      %v1195 = vadd.f32 0.0, %v1194
      %v1196 = vpop.f32.mrb[0].mxu0
      %1197 = vmatprep.mubr.bf16.mxu0 0
      %1198 = vmatmul.mubr.bf16.gmra.mrb[0].mxu0 %v941
      %v1199 = vpop.f32.mrb[0].mxu0
      %v1200 = vadd.f32 0.0, %v1199
      %v1201 = vpop.f32.mrb[0].mxu0
      %v1202 = vpop.f32.mrb[0].mxu0
      %v1203 = vadd.f32 0.0, %v1202
      %v1204 = vpop.f32.mrb[0].mxu0
      %1205 = vmatprep.mubr.bf16.mxu0 0
      %1206 = vmatmul.mubr.bf16.gmra.mrb[0].mxu0 %v942
      %v1207 = vpop.f32.mrb[0].mxu0
      %v1208 = vadd.f32 0.0, %v1207
      %v1209 = vpop.f32.mrb[0].mxu0
      %v1210 = vpop.f32.mrb[0].mxu0
      %v1211 = vadd.f32 0.0, %v1210
      %v1212 = vpop.f32.mrb[0].mxu0
      %1213 = vmatprep.mubr.bf16.mxu0 0
      %1214 = vmatmul.mubr.bf16.gmra.mrb[0].mxu0 %v943
      %v1215 = vpop.f32.mrb[0].mxu0
      %v1216 = vadd.f32 0.0, %v1215
      %v1217 = vpop.f32.mrb[0].mxu0
      %v1218 = vpop.f32.mrb[0].mxu0
      %v1219 = vadd.f32 0.0, %v1218
      %v1220 = vpop.f32.mrb[0].mxu0
      %1221 = vmatprep.mubr.bf16.mxu0 0
      %1222 = vmatmul.mubr.bf16.gmra.mrb[0].mxu0 %v944
      %v1223 = vpop.f32.mrb[0].mxu0
      %v1224 = vadd.f32 0.0, %v1223
      %v1225 = vpop.f32.mrb[0].mxu0
      %v1226 = vpop.f32.mrb[0].mxu0
      %v1227 = vadd.f32 0.0, %v1226
      %v1228 = vpop.f32.mrb[0].mxu0
      %1229 = vmatprep.mubr.bf16.mxu0 0
      %1230 = vmatmul.mubr.bf16.gmra.mrb[0].mxu0 %v945
      %v1231 = vpop.f32.mrb[0].mxu0
      %v1232 = vadd.f32 0.0, %v1231
      %v1233 = vpop.f32.mrb[0].mxu0
      %v1234 = vpop.f32.mrb[0].mxu0
      %v1235 = vadd.f32 0.0, %v1234
      %v1236 = vpop.f32.mrb[0].mxu0
      %1237 = vmatprep.mubr.bf16.mxu0 0
      %1238 = vmatmul.mubr.bf16.gmra.mrb[0].mxu0 %v946
      %v1239 = vpop.f32.mrb[0].mxu0
      %v1240 = vadd.f32 0.0, %v1239
      %v1241 = vpop.f32.mrb[0].mxu0
      %v1242 = vpop.f32.mrb[0].mxu0
      %v1243 = vadd.f32 0.0, %v1242
      %v1244 = vpop.f32.mrb[0].mxu0
      %1245 = vmatprep.mubr.bf16.mxu0 0
      %1246 = vmatmul.mubr.bf16.gmra.mrb[0].mxu0 %v947
      %v1247 = vpop.f32.mrb[0].mxu0
      %v1248 = vadd.f32 0.0, %v1247
      %v1249 = vpop.f32.mrb[0].mxu0
      %v1250 = vpop.f32.mrb[0].mxu0
      %v1251 = vadd.f32 0.0, %v1250
      %v1252 = vpop.f32.mrb[0].mxu0
      %1253 = vmatprep.mubr.bf16.mxu0 0
      %1254 = vmatmul.mubr.bf16.gmra.mrb[0].mxu0 %v948
      %v1255 = vpop.f32.mrb[0].mxu0
      %v1256 = vadd.f32 0.0, %v1255
      %v1257 = vpop.f32.mrb[0].mxu0
      %v1258 = vpop.f32.mrb[0].mxu0
      %v1259 = vadd.f32 0.0, %v1258
      %v1260 = vpop.f32.mrb[0].mxu0
      %1261 = vdwg.mxu0
      %v1262 = vld [vmem:[%s4] sm:$0x1]
      %v1264 = vlaneseq
      %v1265 = vshrl.u32 %v1264, 7
      %v1266 = vsub.s32 0, %v1265
      %v1267 = vrot.slane %v1262, %v1266
      %v1269 = vmul.f32 %v1048, %v1267
      %v1270 = vmul.f32 %v1051, %v1267
      %v1271 = vmul.f32 %v1056, %v1267
      %v1272 = vmul.f32 %v1059, %v1267
      %v1273 = vmul.f32 %v1064, %v1267
      %v1274 = vmul.f32 %v1067, %v1267
      %v1275 = vmul.f32 %v1072, %v1267
      %v1276 = vmul.f32 %v1075, %v1267
      %v1277 = vmul.f32 %v1080, %v1267
      %v1278 = vmul.f32 %v1083, %v1267
      %v1279 = vmul.f32 %v1088, %v1267
      %v1280 = vmul.f32 %v1091, %v1267
      %v1281 = vmul.f32 %v1096, %v1267
      %v1282 = vmul.f32 %v1099, %v1267
      %v1283 = vmul.f32 %v1104, %v1267
      %v1284 = vmul.f32 %v1107, %v1267
      %v1285 = vmul.f32 %v1112, %v1267
      %v1286 = vmul.f32 %v1115, %v1267
      %v1287 = vmul.f32 %v1120, %v1267
      %v1288 = vmul.f32 %v1123, %v1267
      %v1289 = vmul.f32 %v1128, %v1267
      %v1290 = vmul.f32 %v1131, %v1267
      %v1291 = vmul.f32 %v1136, %v1267
      %v1292 = vmul.f32 %v1139, %v1267
      %v1293 = vmul.f32 %v1144, %v1267
      %v1294 = vmul.f32 %v1147, %v1267
      %v1295 = vmul.f32 %v1152, %v1267
      %v1296 = vmul.f32 %v1155, %v1267
      %v1297 = vmul.f32 %v1160, %v1267
      %v1298 = vmul.f32 %v1163, %v1267
      %v1299 = vmul.f32 %v1168, %v1267
      %v1300 = vmul.f32 %v1171, %v1267
      %v1301 = vmul.f32 %v1176, %v1267
      %v1302 = vmul.f32 %v1179, %v1267
      %v1303 = vmul.f32 %v1184, %v1267
      %v1304 = vmul.f32 %v1187, %v1267
      %v1305 = vmul.f32 %v1192, %v1267
      %v1306 = vmul.f32 %v1195, %v1267
      %v1307 = vmul.f32 %v1200, %v1267
      %v1308 = vmul.f32 %v1203, %v1267
      %v1309 = vmul.f32 %v1208, %v1267
      %v1310 = vmul.f32 %v1211, %v1267
      %v1311 = vmul.f32 %v1216, %v1267
      %v1312 = vmul.f32 %v1219, %v1267
      %v1313 = vmul.f32 %v1224, %v1267
      %v1314 = vmul.f32 %v1227, %v1267
      %v1315 = vmul.f32 %v1232, %v1267
      %v1316 = vmul.f32 %v1235, %v1267
      %v1317 = vmul.f32 %v1240, %v1267
      %v1318 = vmul.f32 %v1243, %v1267
      %v1319 = vmul.f32 %v1248, %v1267
      %v1320 = vmul.f32 %v1251, %v1267
      %v1321 = vmul.f32 %v1256, %v1267
      %v1322 = vmul.f32 %v1259, %v1267
      %v1323 = vld [vmem:[%s5] sm:$0x1]
      %v1325 = vlaneseq
      %v1326 = vshrl.u32 %v1325, 7
      %v1327 = vsub.s32 0, %v1326
      %v1328 = vrot.slane %v1323, %v1327
      %v1330 = vadd.f32 %v1269, %v1328
      %v1331 = vadd.f32 %v1270, %v1328
      %v1332 = vadd.f32 %v1271, %v1328
      %v1333 = vadd.f32 %v1272, %v1328
      %v1334 = vadd.f32 %v1273, %v1328
      %v1335 = vadd.f32 %v1274, %v1328
      %v1336 = vadd.f32 %v1275, %v1328
      %v1337 = vadd.f32 %v1276, %v1328
      %v1338 = vadd.f32 %v1277, %v1328
      %v1339 = vadd.f32 %v1278, %v1328
      %v1340 = vadd.f32 %v1279, %v1328
      %v1341 = vadd.f32 %v1280, %v1328
      %v1342 = vadd.f32 %v1281, %v1328
      %v1343 = vadd.f32 %v1282, %v1328
      %v1344 = vadd.f32 %v1283, %v1328
      %v1345 = vadd.f32 %v1284, %v1328
      %v1346 = vadd.f32 %v1285, %v1328
      %v1347 = vadd.f32 %v1286, %v1328
      %v1348 = vadd.f32 %v1287, %v1328
      %v1349 = vadd.f32 %v1288, %v1328
      %v1350 = vadd.f32 %v1289, %v1328
      %v1351 = vadd.f32 %v1290, %v1328
      %v1352 = vadd.f32 %v1291, %v1328
      %v1353 = vadd.f32 %v1292, %v1328
      %v1354 = vadd.f32 %v1293, %v1328
      %v1355 = vadd.f32 %v1294, %v1328
      %v1356 = vadd.f32 %v1295, %v1328
      %v1357 = vadd.f32 %v1296, %v1328
      %v1358 = vadd.f32 %v1297, %v1328
      %v1359 = vadd.f32 %v1298, %v1328
      %v1360 = vadd.f32 %v1299, %v1328
      %v1361 = vadd.f32 %v1300, %v1328
      %v1362 = vadd.f32 %v1301, %v1328
      %v1363 = vadd.f32 %v1302, %v1328
      %v1364 = vadd.f32 %v1303, %v1328
      %v1365 = vadd.f32 %v1304, %v1328
      %v1366 = vadd.f32 %v1305, %v1328
      %v1367 = vadd.f32 %v1306, %v1328
      %v1368 = vadd.f32 %v1307, %v1328
      %v1369 = vadd.f32 %v1308, %v1328
      %v1370 = vadd.f32 %v1309, %v1328
      %v1371 = vadd.f32 %v1310, %v1328
      %v1372 = vadd.f32 %v1311, %v1328
      %v1373 = vadd.f32 %v1312, %v1328
      %v1374 = vadd.f32 %v1313, %v1328
      %v1375 = vadd.f32 %v1314, %v1328
      %v1376 = vadd.f32 %v1315, %v1328
      %v1377 = vadd.f32 %v1316, %v1328
      %v1378 = vadd.f32 %v1317, %v1328
      %v1379 = vadd.f32 %v1318, %v1328
      %v1380 = vadd.f32 %v1319, %v1328
      %v1381 = vadd.f32 %v1320, %v1328
      %v1382 = vadd.f32 %v1321, %v1328
      %v1383 = vadd.f32 %v1322, %v1328
      %v1384 = vmax.f32 %v1330, 0.0
      %v1385 = vmax.f32 %v1331, 0.0
      %v1386 = vmax.f32 %v1332, 0.0
      %v1387 = vmax.f32 %v1333, 0.0
      %v1388 = vmax.f32 %v1334, 0.0
      %v1389 = vmax.f32 %v1335, 0.0
      %v1390 = vmax.f32 %v1336, 0.0
      %v1391 = vmax.f32 %v1337, 0.0
      %v1392 = vmax.f32 %v1338, 0.0
      %v1393 = vmax.f32 %v1339, 0.0
      %v1394 = vmax.f32 %v1340, 0.0
      %v1395 = vmax.f32 %v1341, 0.0
      %v1396 = vmax.f32 %v1342, 0.0
      %v1397 = vmax.f32 %v1343, 0.0
      %v1398 = vmax.f32 %v1344, 0.0
      %v1399 = vmax.f32 %v1345, 0.0
      %v1400 = vmax.f32 %v1346, 0.0
      %v1401 = vmax.f32 %v1347, 0.0
      %v1402 = vmax.f32 %v1348, 0.0
      %v1403 = vmax.f32 %v1349, 0.0
      %v1404 = vmax.f32 %v1350, 0.0
      %v1405 = vmax.f32 %v1351, 0.0
      %v1406 = vmax.f32 %v1352, 0.0
      %v1407 = vmax.f32 %v1353, 0.0
      %v1408 = vmax.f32 %v1354, 0.0
      %v1409 = vmax.f32 %v1355, 0.0
      %v1410 = vmax.f32 %v1356, 0.0
      %v1411 = vmax.f32 %v1357, 0.0
      %v1412 = vmax.f32 %v1358, 0.0
      %v1413 = vmax.f32 %v1359, 0.0
      %v1414 = vmax.f32 %v1360, 0.0
      %v1415 = vmax.f32 %v1361, 0.0
      %v1416 = vmax.f32 %v1362, 0.0
      %v1417 = vmax.f32 %v1363, 0.0
      %v1418 = vmax.f32 %v1364, 0.0
      %v1419 = vmax.f32 %v1365, 0.0
      %v1420 = vmax.f32 %v1366, 0.0
      %v1421 = vmax.f32 %v1367, 0.0
      %v1422 = vmax.f32 %v1368, 0.0
      %v1423 = vmax.f32 %v1369, 0.0
      %v1424 = vmax.f32 %v1370, 0.0
      %v1425 = vmax.f32 %v1371, 0.0
      %v1426 = vmax.f32 %v1372, 0.0
      %v1427 = vmax.f32 %v1373, 0.0
      %v1428 = vmax.f32 %v1374, 0.0
      %v1429 = vmax.f32 %v1375, 0.0
      %v1430 = vmax.f32 %v1376, 0.0
      %v1431 = vmax.f32 %v1377, 0.0
      %v1432 = vmax.f32 %v1378, 0.0
      %v1433 = vmax.f32 %v1379, 0.0
      %v1434 = vmax.f32 %v1380, 0.0
      %v1435 = vmax.f32 %v1381, 0.0
      %v1436 = vmax.f32 %v1382, 0.0
      %v1437 = vmax.f32 %v1383, 0.0
      %v1438 = vstv %s507
      %v1439 = vadd.s32 %v1438, 1
      %v1440 = vadd.s32 %v1438, 2
      %v1441 = vadd.s32 %v1438, 3
      %v1442 = vadd.s32 %v1438, 4
      %v1443 = vadd.s32 %v1438, 5
      %v1444 = vadd.s32 %v1438, 6
      %v1445 = vadd.s32 %v1438, 7
      %v1446 = vadd.s32 %v1438, 8
      %v1447 = vadd.s32 %v1438, 9
      %v1448 = vadd.s32 %v1438, 10
      %v1449 = vadd.s32 %v1438, 11
      %v1450 = vadd.s32 %v1438, 12
      %v1451 = vadd.s32 %v1438, 13
      %v1452 = vadd.s32 %v1438, 14
      %v1453 = vadd.s32 %v1438, 15
      %v1454 = vadd.s32 %v1438, 16
      %v1455 = vadd.s32 %v1438, 17
      %v1456 = vlaneseq
      %v1457 = vshrl.u32 %v1456, 7
      %v1458 = vadd.s32 %v1457, 8
      %v1459 = vadd.s32 %v1457, 16
      %vm1460 = vcmp.eq.s32.totalorder %v1438, 0
      %vm1461 = vcmp.eq.s32.totalorder %v1439, 0
      %vm1462 = vcmp.eq.s32.totalorder %v1440, 0
      %vm1463 = vcmp.eq.s32.totalorder %v1441, 0
      %vm1464 = vcmp.eq.s32.totalorder %v1442, 0
      %vm1465 = vcmp.eq.s32.totalorder %v1443, 0
      %vm1466 = vcmp.eq.s32.totalorder %v1444, 0
      %vm1467 = vcmp.eq.s32.totalorder %v1445, 0
      %vm1468 = vcmp.eq.s32.totalorder %v1446, 0
      %vm1469 = vcmp.eq.s32.totalorder %v1447, 0
      %vm1470 = vcmp.eq.s32.totalorder %v1448, 0
      %vm1471 = vcmp.eq.s32.totalorder %v1449, 0
      %vm1472 = vcmp.eq.s32.totalorder %v1450, 0
      %vm1473 = vcmp.eq.s32.totalorder %v1451, 0
      %vm1474 = vcmp.eq.s32.totalorder %v1452, 0
      %vm1475 = vcmp.eq.s32.totalorder %v1453, 0
      %vm1476 = vcmp.eq.s32.totalorder %v1454, 0
      %vm1477 = vcmp.eq.s32.totalorder %v1455, 0
      %vm1478 = vcmp.eq.s32.totalorder %v1438, 17
      %vm1479 = vcmp.eq.s32.totalorder %v1439, 17
      %vm1480 = vcmp.eq.s32.totalorder %v1440, 17
      %vm1481 = vcmp.eq.s32.totalorder %v1441, 17
      %vm1482 = vcmp.eq.s32.totalorder %v1442, 17
      %vm1483 = vcmp.eq.s32.totalorder %v1443, 17
      %vm1484 = vcmp.eq.s32.totalorder %v1444, 17
      %vm1485 = vcmp.eq.s32.totalorder %v1445, 17
      %vm1486 = vcmp.eq.s32.totalorder %v1446, 17
      %vm1487 = vcmp.eq.s32.totalorder %v1447, 17
      %vm1488 = vcmp.eq.s32.totalorder %v1448, 17
      %vm1489 = vcmp.eq.s32.totalorder %v1449, 17
      %vm1490 = vcmp.eq.s32.totalorder %v1450, 17
      %vm1491 = vcmp.eq.s32.totalorder %v1451, 17
      %vm1492 = vcmp.eq.s32.totalorder %v1452, 17
      %vm1493 = vcmp.eq.s32.totalorder %v1453, 17
      %vm1494 = vcmp.eq.s32.totalorder %v1454, 17
      %vm1495 = vcmp.eq.s32.totalorder %v1455, 17
      %vm1496 = vmor %vm1460, %vm1478
      %vm1497 = vmor %vm1461, %vm1479
      %vm1498 = vmor %vm1462, %vm1480
      %vm1499 = vmor %vm1463, %vm1481
      %vm1500 = vmor %vm1464, %vm1482
      %vm1501 = vmor %vm1465, %vm1483
      %vm1502 = vmor %vm1466, %vm1484
      %vm1503 = vmor %vm1467, %vm1485
      %vm1504 = vmor %vm1468, %vm1486
      %vm1505 = vmor %vm1469, %vm1487
      %vm1506 = vmor %vm1470, %vm1488
      %vm1507 = vmor %vm1471, %vm1489
      %vm1508 = vmor %vm1472, %vm1490
      %vm1509 = vmor %vm1473, %vm1491
      %vm1510 = vmor %vm1474, %vm1492
      %vm1511 = vmor %vm1475, %vm1493
      %vm1512 = vmor %vm1476, %vm1494
      %vm1513 = vmor %vm1477, %vm1495
      %vm1514 = vcmp.eq.s32.totalorder %v1457, 0
      %vm1515 = vcmp.eq.s32.totalorder %v1458, 0
      %vm1516 = vcmp.eq.s32.totalorder %v1459, 0
      %vm1517 = vmor %vm1496, %vm1514
      %vm1518 = vmor %vm1496, %vm1515
      %vm1519 = vmor %vm1496, %vm1516
      %vm1520 = vmor %vm1497, %vm1514
      %vm1521 = vmor %vm1497, %vm1515
      %vm1522 = vmor %vm1497, %vm1516
      %vm1523 = vmor %vm1498, %vm1514
      %vm1524 = vmor %vm1498, %vm1515
      %vm1525 = vmor %vm1498, %vm1516
      %vm1526 = vmor %vm1499, %vm1514
      %vm1527 = vmor %vm1499, %vm1515
      %vm1528 = vmor %vm1499, %vm1516
      %vm1529 = vmor %vm1500, %vm1514
      %vm1530 = vmor %vm1500, %vm1515
      %vm1531 = vmor %vm1500, %vm1516
      %vm1532 = vmor %vm1501, %vm1514
      %vm1533 = vmor %vm1501, %vm1515
      %vm1534 = vmor %vm1501, %vm1516
      %vm1535 = vmor %vm1502, %vm1514
      %vm1536 = vmor %vm1502, %vm1515
      %vm1537 = vmor %vm1502, %vm1516
      %vm1538 = vmor %vm1503, %vm1514
      %vm1539 = vmor %vm1503, %vm1515
      %vm1540 = vmor %vm1503, %vm1516
      %vm1541 = vmor %vm1504, %vm1514
      %vm1542 = vmor %vm1504, %vm1515
      %vm1543 = vmor %vm1504, %vm1516
      %vm1544 = vmor %vm1505, %vm1514
      %vm1545 = vmor %vm1505, %vm1515
      %vm1546 = vmor %vm1505, %vm1516
      %vm1547 = vmor %vm1506, %vm1514
      %vm1548 = vmor %vm1506, %vm1515
      %vm1549 = vmor %vm1506, %vm1516
      %vm1550 = vmor %vm1507, %vm1514
      %vm1551 = vmor %vm1507, %vm1515
      %vm1552 = vmor %vm1507, %vm1516
      %vm1553 = vmor %vm1508, %vm1514
      %vm1554 = vmor %vm1508, %vm1515
      %vm1555 = vmor %vm1508, %vm1516
      %vm1556 = vmor %vm1509, %vm1514
      %vm1557 = vmor %vm1509, %vm1515
      %vm1558 = vmor %vm1509, %vm1516
      %vm1559 = vmor %vm1510, %vm1514
      %vm1560 = vmor %vm1510, %vm1515
      %vm1561 = vmor %vm1510, %vm1516
      %vm1562 = vmor %vm1511, %vm1514
      %vm1563 = vmor %vm1511, %vm1515
      %vm1564 = vmor %vm1511, %vm1516
      %vm1565 = vmor %vm1512, %vm1514
      %vm1566 = vmor %vm1512, %vm1515
      %vm1567 = vmor %vm1512, %vm1516
      %vm1568 = vmor %vm1513, %vm1514
      %vm1569 = vmor %vm1513, %vm1515
      %vm1570 = vmor %vm1513, %vm1516
      %vm1571 = vcmp.ge.s32.totalorder %v1457, 17
      %vm1572 = vcmp.ge.s32.totalorder %v1458, 17
      %vm1573 = vcmp.ge.s32.totalorder %v1459, 17
      %vm1574 = vmor %vm1517, %vm1571
      %vm1575 = vmor %vm1518, %vm1572
      %vm1576 = vmor %vm1519, %vm1573
      %vm1577 = vmor %vm1520, %vm1571
      %vm1578 = vmor %vm1521, %vm1572
      %vm1579 = vmor %vm1522, %vm1573
      %vm1580 = vmor %vm1523, %vm1571
      %vm1581 = vmor %vm1524, %vm1572
      %vm1582 = vmor %vm1525, %vm1573
      %vm1583 = vmor %vm1526, %vm1571
      %vm1584 = vmor %vm1527, %vm1572
      %vm1585 = vmor %vm1528, %vm1573
      %vm1586 = vmor %vm1529, %vm1571
      %vm1587 = vmor %vm1530, %vm1572
      %vm1588 = vmor %vm1531, %vm1573
      %vm1589 = vmor %vm1532, %vm1571
      %vm1590 = vmor %vm1533, %vm1572
      %vm1591 = vmor %vm1534, %vm1573
      %vm1592 = vmor %vm1535, %vm1571
      %vm1593 = vmor %vm1536, %vm1572
      %vm1594 = vmor %vm1537, %vm1573
      %vm1595 = vmor %vm1538, %vm1571
      %vm1596 = vmor %vm1539, %vm1572
      %vm1597 = vmor %vm1540, %vm1573
      %vm1598 = vmor %vm1541, %vm1571
      %vm1599 = vmor %vm1542, %vm1572
      %vm1600 = vmor %vm1543, %vm1573
      %vm1601 = vmor %vm1544, %vm1571
      %vm1602 = vmor %vm1545, %vm1572
      %vm1603 = vmor %vm1546, %vm1573
      %vm1604 = vmor %vm1547, %vm1571
      %vm1605 = vmor %vm1548, %vm1572
      %vm1606 = vmor %vm1549, %vm1573
      %vm1607 = vmor %vm1550, %vm1571
      %vm1608 = vmor %vm1551, %vm1572
      %vm1609 = vmor %vm1552, %vm1573
      %vm1610 = vmor %vm1553, %vm1571
      %vm1611 = vmor %vm1554, %vm1572
      %vm1612 = vmor %vm1555, %vm1573
      %vm1613 = vmor %vm1556, %vm1571
      %vm1614 = vmor %vm1557, %vm1572
      %vm1615 = vmor %vm1558, %vm1573
      %vm1616 = vmor %vm1559, %vm1571
      %vm1617 = vmor %vm1560, %vm1572
      %vm1618 = vmor %vm1561, %vm1573
      %vm1619 = vmor %vm1562, %vm1571
      %vm1620 = vmor %vm1563, %vm1572
      %vm1621 = vmor %vm1564, %vm1573
      %vm1622 = vmor %vm1565, %vm1571
      %vm1623 = vmor %vm1566, %vm1572
      %vm1624 = vmor %vm1567, %vm1573
      %vm1625 = vmor %vm1568, %vm1571
      %vm1626 = vmor %vm1569, %vm1572
      %vm1627 = vmor %vm1570, %vm1573
      %v1628 = vsel %vm1574, 0.0, %v1384
      %v1629 = vsel %vm1575, 0.0, %v1385
      %v1630 = vsel %vm1576, 0.0, %v1386
      %v1631 = vsel %vm1577, 0.0, %v1387
      %v1632 = vsel %vm1578, 0.0, %v1388
      %v1633 = vsel %vm1579, 0.0, %v1389
      %v1634 = vsel %vm1580, 0.0, %v1390
      %v1635 = vsel %vm1581, 0.0, %v1391
      %v1636 = vsel %vm1582, 0.0, %v1392
      %v1637 = vsel %vm1583, 0.0, %v1393
      %v1638 = vsel %vm1584, 0.0, %v1394
      %v1639 = vsel %vm1585, 0.0, %v1395
      %v1640 = vsel %vm1586, 0.0, %v1396
      %v1641 = vsel %vm1587, 0.0, %v1397
      %v1642 = vsel %vm1588, 0.0, %v1398
      %v1643 = vsel %vm1589, 0.0, %v1399
      %v1644 = vsel %vm1590, 0.0, %v1400
      %v1645 = vsel %vm1591, 0.0, %v1401
      %v1646 = vsel %vm1592, 0.0, %v1402
      %v1647 = vsel %vm1593, 0.0, %v1403
      %v1648 = vsel %vm1594, 0.0, %v1404
      %v1649 = vsel %vm1595, 0.0, %v1405
      %v1650 = vsel %vm1596, 0.0, %v1406
      %v1651 = vsel %vm1597, 0.0, %v1407
      %v1652 = vsel %vm1598, 0.0, %v1408
      %v1653 = vsel %vm1599, 0.0, %v1409
      %v1654 = vsel %vm1600, 0.0, %v1410
      %v1655 = vsel %vm1601, 0.0, %v1411
      %v1656 = vsel %vm1602, 0.0, %v1412
      %v1657 = vsel %vm1603, 0.0, %v1413
      %v1658 = vsel %vm1604, 0.0, %v1414
      %v1659 = vsel %vm1605, 0.0, %v1415
      %v1660 = vsel %vm1606, 0.0, %v1416
      %v1661 = vsel %vm1607, 0.0, %v1417
      %v1662 = vsel %vm1608, 0.0, %v1418
      %v1663 = vsel %vm1609, 0.0, %v1419
      %v1664 = vsel %vm1610, 0.0, %v1420
      %v1665 = vsel %vm1611, 0.0, %v1421
      %v1666 = vsel %vm1612, 0.0, %v1422
      %v1667 = vsel %vm1613, 0.0, %v1423
      %v1668 = vsel %vm1614, 0.0, %v1424
      %v1669 = vsel %vm1615, 0.0, %v1425
      %v1670 = vsel %vm1616, 0.0, %v1426
      %v1671 = vsel %vm1617, 0.0, %v1427
      %v1672 = vsel %vm1618, 0.0, %v1428
      %v1673 = vsel %vm1619, 0.0, %v1429
      %v1674 = vsel %vm1620, 0.0, %v1430
      %v1675 = vsel %vm1621, 0.0, %v1431
      %v1676 = vsel %vm1622, 0.0, %v1432
      %v1677 = vsel %vm1623, 0.0, %v1433
      %v1678 = vsel %vm1624, 0.0, %v1434
      %v1679 = vsel %vm1625, 0.0, %v1435
      %v1680 = vsel %vm1626, 0.0, %v1436
      %v1681 = vsel %vm1627, 0.0, %v1437
      %v1682 = vpack.c.bf16 %v1629, %v1628
      %v1683 = vpack.c.bf16 %v1630, %v1630
      %v1684 = vpack.c.bf16 %v1632, %v1631
      %v1685 = vpack.c.bf16 %v1633, %v1633
      %v1686 = vpack.c.bf16 %v1635, %v1634
      %v1687 = vpack.c.bf16 %v1636, %v1636
      %v1688 = vpack.c.bf16 %v1638, %v1637
      %v1689 = vpack.c.bf16 %v1639, %v1639
      %v1690 = vpack.c.bf16 %v1641, %v1640
      %v1691 = vpack.c.bf16 %v1642, %v1642
      %v1692 = vpack.c.bf16 %v1644, %v1643
      %v1693 = vpack.c.bf16 %v1645, %v1645
      %v1694 = vpack.c.bf16 %v1647, %v1646
      %v1695 = vpack.c.bf16 %v1648, %v1648
      %v1696 = vpack.c.bf16 %v1650, %v1649
      %v1697 = vpack.c.bf16 %v1651, %v1651
      %v1698 = vpack.c.bf16 %v1653, %v1652
      %v1699 = vpack.c.bf16 %v1654, %v1654
      %v1700 = vpack.c.bf16 %v1656, %v1655
      %v1701 = vpack.c.bf16 %v1657, %v1657
      %v1702 = vpack.c.bf16 %v1659, %v1658
      %v1703 = vpack.c.bf16 %v1660, %v1660
      %v1704 = vpack.c.bf16 %v1662, %v1661
      %v1705 = vpack.c.bf16 %v1663, %v1663
      %v1706 = vpack.c.bf16 %v1665, %v1664
      %v1707 = vpack.c.bf16 %v1666, %v1666
      %v1708 = vpack.c.bf16 %v1668, %v1667
      %v1709 = vpack.c.bf16 %v1669, %v1669
      %v1710 = vpack.c.bf16 %v1671, %v1670
      %v1711 = vpack.c.bf16 %v1672, %v1672
      %v1712 = vpack.c.bf16 %v1674, %v1673
      %v1713 = vpack.c.bf16 %v1675, %v1675
      %v1714 = vpack.c.bf16 %v1677, %v1676
      %v1715 = vpack.c.bf16 %v1678, %v1678
      %v1716 = vpack.c.bf16 %v1680, %v1679
      %v1717 = vpack.c.bf16 %v1681, %v1681
      %vm1718 = vsmask.f32 7424
      %v1720 = vshrl.u32 %v1682, 16
      %v1722 = vshll.u32 %v1682, 16
      %v1724 = vrot.slane %v1722, 1
      %v1725 = vor.u32 %v1720, %v1724
      %v1727 = vshll.u32 %v1683, 16
      %v1729 = vrot.slane %v1727, 1
      %v1730 = vsel %vm1718, %v1725, %v1729
      %v1732 = vshrl.u32 %v1684, 16
      %v1734 = vshll.u32 %v1684, 16
      %v1736 = vrot.slane %v1734, 1
      %v1737 = vor.u32 %v1732, %v1736
      %v1739 = vshll.u32 %v1685, 16
      %v1741 = vrot.slane %v1739, 1
      %v1742 = vsel %vm1718, %v1737, %v1741
      %v1744 = vshrl.u32 %v1686, 16
      %v1746 = vshll.u32 %v1686, 16
      %v1748 = vrot.slane %v1746, 1
      %v1749 = vor.u32 %v1744, %v1748
      %v1751 = vshll.u32 %v1687, 16
      %v1753 = vrot.slane %v1751, 1
      %v1754 = vsel %vm1718, %v1749, %v1753
      %v1756 = vshrl.u32 %v1688, 16
      %v1758 = vshll.u32 %v1688, 16
      %v1760 = vrot.slane %v1758, 1
      %v1761 = vor.u32 %v1756, %v1760
      %v1763 = vshll.u32 %v1689, 16
      %v1765 = vrot.slane %v1763, 1
      %v1766 = vsel %vm1718, %v1761, %v1765
      %v1768 = vshrl.u32 %v1690, 16
      %v1770 = vshll.u32 %v1690, 16
      %v1772 = vrot.slane %v1770, 1
      %v1773 = vor.u32 %v1768, %v1772
      %v1775 = vshll.u32 %v1691, 16
      %v1777 = vrot.slane %v1775, 1
      %v1778 = vsel %vm1718, %v1773, %v1777
      %v1780 = vshrl.u32 %v1692, 16
      %v1782 = vshll.u32 %v1692, 16
      %v1784 = vrot.slane %v1782, 1
      %v1785 = vor.u32 %v1780, %v1784
      %v1787 = vshll.u32 %v1693, 16
      %v1789 = vrot.slane %v1787, 1
      %v1790 = vsel %vm1718, %v1785, %v1789
      %v1792 = vshrl.u32 %v1694, 16
      %v1794 = vshll.u32 %v1694, 16
      %v1796 = vrot.slane %v1794, 1
      %v1797 = vor.u32 %v1792, %v1796
      %v1799 = vshll.u32 %v1695, 16
      %v1801 = vrot.slane %v1799, 1
      %v1802 = vsel %vm1718, %v1797, %v1801
      %v1804 = vshrl.u32 %v1696, 16
      %v1806 = vshll.u32 %v1696, 16
      %v1808 = vrot.slane %v1806, 1
      %v1809 = vor.u32 %v1804, %v1808
      %v1811 = vshll.u32 %v1697, 16
      %v1813 = vrot.slane %v1811, 1
      %v1814 = vsel %vm1718, %v1809, %v1813
      %v1816 = vshrl.u32 %v1698, 16
      %v1818 = vshll.u32 %v1698, 16
      %v1820 = vrot.slane %v1818, 1
      %v1821 = vor.u32 %v1816, %v1820
      %v1823 = vshll.u32 %v1699, 16
      %v1825 = vrot.slane %v1823, 1
      %v1826 = vsel %vm1718, %v1821, %v1825
      %v1828 = vshrl.u32 %v1700, 16
      %v1830 = vshll.u32 %v1700, 16
      %v1832 = vrot.slane %v1830, 1
      %v1833 = vor.u32 %v1828, %v1832
      %v1835 = vshll.u32 %v1701, 16
      %v1837 = vrot.slane %v1835, 1
      %v1838 = vsel %vm1718, %v1833, %v1837
      %v1840 = vshrl.u32 %v1702, 16
      %v1842 = vshll.u32 %v1702, 16
      %v1844 = vrot.slane %v1842, 1
      %v1845 = vor.u32 %v1840, %v1844
      %v1847 = vshll.u32 %v1703, 16
      %v1849 = vrot.slane %v1847, 1
      %v1850 = vsel %vm1718, %v1845, %v1849
      %v1852 = vshrl.u32 %v1704, 16
      %v1854 = vshll.u32 %v1704, 16
      %v1856 = vrot.slane %v1854, 1
      %v1857 = vor.u32 %v1852, %v1856
      %v1859 = vshll.u32 %v1705, 16
      %v1861 = vrot.slane %v1859, 1
      %v1862 = vsel %vm1718, %v1857, %v1861
      %v1864 = vshrl.u32 %v1706, 16
      %v1866 = vshll.u32 %v1706, 16
      %v1868 = vrot.slane %v1866, 1
      %v1869 = vor.u32 %v1864, %v1868
      %v1871 = vshll.u32 %v1707, 16
      %v1873 = vrot.slane %v1871, 1
      %v1874 = vsel %vm1718, %v1869, %v1873
      %v1876 = vshrl.u32 %v1708, 16
      %v1878 = vshll.u32 %v1708, 16
      %v1880 = vrot.slane %v1878, 1
      %v1881 = vor.u32 %v1876, %v1880
      %v1883 = vshll.u32 %v1709, 16
      %v1885 = vrot.slane %v1883, 1
      %v1886 = vsel %vm1718, %v1881, %v1885
      %v1888 = vshrl.u32 %v1710, 16
      %v1890 = vshll.u32 %v1710, 16
      %v1892 = vrot.slane %v1890, 1
      %v1893 = vor.u32 %v1888, %v1892
      %v1895 = vshll.u32 %v1711, 16
      %v1897 = vrot.slane %v1895, 1
      %v1898 = vsel %vm1718, %v1893, %v1897
      %v1900 = vshrl.u32 %v1712, 16
      %v1902 = vshll.u32 %v1712, 16
      %v1904 = vrot.slane %v1902, 1
      %v1905 = vor.u32 %v1900, %v1904
      %v1907 = vshll.u32 %v1713, 16
      %v1909 = vrot.slane %v1907, 1
      %v1910 = vsel %vm1718, %v1905, %v1909
      %vm1959 = vcmask 1046528
      %v1960 = vrot.slane %v1682, 1
      %v1961 = vrot.slane %v1683, 1
      %v1962 = vsel %vm1959, %v1960, %v1961
      %v1963 = vrot.slane %v1684, 1
      %v1964 = vrot.slane %v1685, 1
      %v1965 = vsel %vm1959, %v1963, %v1964
      %v1966 = vrot.slane %v1686, 1
      %v1967 = vrot.slane %v1687, 1
      %v1968 = vsel %vm1959, %v1966, %v1967
      %v1969 = vrot.slane %v1688, 1
      %v1970 = vrot.slane %v1689, 1
      %v1971 = vsel %vm1959, %v1969, %v1970
      %v1972 = vrot.slane %v1690, 1
      %v1973 = vrot.slane %v1691, 1
      %v1974 = vsel %vm1959, %v1972, %v1973
      %v1975 = vrot.slane %v1692, 1
      %v1976 = vrot.slane %v1693, 1
      %v1977 = vsel %vm1959, %v1975, %v1976
      %v1978 = vrot.slane %v1694, 1
      %v1979 = vrot.slane %v1695, 1
      %v1980 = vsel %vm1959, %v1978, %v1979
      %v1981 = vrot.slane %v1696, 1
      %v1982 = vrot.slane %v1697, 1
      %v1983 = vsel %vm1959, %v1981, %v1982
      %v1984 = vrot.slane %v1698, 1
      %v1985 = vrot.slane %v1699, 1
      %v1986 = vsel %vm1959, %v1984, %v1985
      %v1987 = vrot.slane %v1700, 1
      %v1988 = vrot.slane %v1701, 1
      %v1989 = vsel %vm1959, %v1987, %v1988
      %v1990 = vrot.slane %v1702, 1
      %v1991 = vrot.slane %v1703, 1
      %v1992 = vsel %vm1959, %v1990, %v1991
      %v1993 = vrot.slane %v1704, 1
      %v1994 = vrot.slane %v1705, 1
      %v1995 = vsel %vm1959, %v1993, %v1994
      %v1996 = vrot.slane %v1706, 1
      %v1997 = vrot.slane %v1707, 1
      %v1998 = vsel %vm1959, %v1996, %v1997
      %v1999 = vrot.slane %v1708, 1
      %v2000 = vrot.slane %v1709, 1
      %v2001 = vsel %vm1959, %v1999, %v2000
      %v2002 = vrot.slane %v1710, 1
      %v2003 = vrot.slane %v1711, 1
      %v2004 = vsel %vm1959, %v2002, %v2003
      %v2005 = vrot.slane %v1712, 1
      %v2006 = vrot.slane %v1713, 1
      %v2007 = vsel %vm1959, %v2005, %v2006
      %v2024 = vld [vmem:[%s6] sm:$0xf]
      %v2025 = vld [vmem:[%s6 + $0x4] sm:$0xf]
      %v2026 = vld [vmem:[%s6 + $0x8] sm:$0xf]
      %v2027 = vld [vmem:[%s6 + $0xc] sm:$0xf]
      %v2028 = vld [vmem:[%s6 + $0x10] sm:$0xf]
      %v2029 = vld [vmem:[%s6 + $0x14] sm:$0xf]
      %v2030 = vld [vmem:[%s6 + $0x18] sm:$0xf]
      %v2031 = vld [vmem:[%s6 + $0x1c] sm:$0xf]
      %v2032 = vld [vmem:[%s6 + $0x20] sm:$0xf]
      %v2033 = vld [vmem:[%s6 + $0x24] sm:$0xf]
      %v2034 = vld [vmem:[%s6 + $0x28] sm:$0xf]
      %v2035 = vld [vmem:[%s6 + $0x2c] sm:$0xf]
      %v2036 = vld [vmem:[%s6 + $0x30] sm:$0xf]
      %v2037 = vld [vmem:[%s6 + $0x34] sm:$0xf]
      %v2038 = vld [vmem:[%s6 + $0x38] sm:$0xf]
      %v2039 = vld [vmem:[%s6 + $0x3c] sm:$0xf]
      %v2040 = vld [vmem:[%s6 + $0x40] sm:$0xf]
      %v2041 = vld [vmem:[%s6 + $0x44] sm:$0xf]
      %v2042 = vld [vmem:[%s6 + $0x48] sm:$0xf]
      %v2043 = vld [vmem:[%s6 + $0x4c] sm:$0xf]
      %v2044 = vld [vmem:[%s6 + $0x50] sm:$0xf]
      %v2045 = vld [vmem:[%s6 + $0x54] sm:$0xf]
      %v2046 = vld [vmem:[%s6 + $0x58] sm:$0xf]
      %v2047 = vld [vmem:[%s6 + $0x5c] sm:$0xf]
      %v2048 = vld [vmem:[%s6 + $0x60] sm:$0xf]
      %v2049 = vld [vmem:[%s6 + $0x64] sm:$0xf]
      %v2050 = vld [vmem:[%s6 + $0x68] sm:$0xf]
      %v2051 = vld [vmem:[%s6 + $0x6c] sm:$0xf]
      %v2052 = vld [vmem:[%s6 + $0x70] sm:$0xf]
      %v2053 = vld [vmem:[%s6 + $0x74] sm:$0xf]
      %v2054 = vld [vmem:[%s6 + $0x78] sm:$0xf]
      %v2055 = vld [vmem:[%s6 + $0x7c] sm:$0xf]
      %v2056 = vld [vmem:[%s6 + $0x80] sm:$0xf]
      %v2057 = vld [vmem:[%s6 + $0x84] sm:$0xf]
      %v2058 = vld [vmem:[%s6 + $0x88] sm:$0xf]
      %v2059 = vld [vmem:[%s6 + $0x8c] sm:$0xf]
      %v2060 = vld [vmem:[%s6 + $0x90] sm:$0xf]
      %v2061 = vld [vmem:[%s6 + $0x94] sm:$0xf]
      %v2062 = vld [vmem:[%s6 + $0x98] sm:$0xf]
      %v2063 = vld [vmem:[%s6 + $0x9c] sm:$0xf]
      %v2064 = vld [vmem:[%s6 + $0xa0] sm:$0xf]
      %v2065 = vld [vmem:[%s6 + $0xa4] sm:$0xf]
      %v2066 = vld [vmem:[%s6 + $0xa8] sm:$0xf]
      %v2067 = vld [vmem:[%s6 + $0xac] sm:$0xf]
      %v2068 = vld [vmem:[%s6 + $0xb0] sm:$0xf]
      %v2069 = vld [vmem:[%s6 + $0xb4] sm:$0xf]
      %v2070 = vld [vmem:[%s6 + $0xb8] sm:$0xf]
      %v2071 = vld [vmem:[%s6 + $0xbc] sm:$0xf]
      %v2073 = vshrl.u32 %v1714, 16
      %v2075 = vshll.u32 %v1714, 16
      %v2077 = vrot.slane %v2075, 1
      %v2078 = vor.u32 %v2073, %v2077
      %v2080 = vshll.u32 %v1715, 16
      %v2082 = vrot.slane %v2080, 1
      %v2083 = vsel %vm1718, %v2078, %v2082
      %v2087 = vrot.slane %v1714, 1
      %v2088 = vrot.slane %v1715, 1
      %v2089 = vsel %vm1959, %v2087, %v2088
      %s2091 = scalar_lea.vmem %s6, 192
      %v2092 = vld [vmem:[%s2091] sm:$0xf]
      %v2093 = vld [vmem:[%s2091 + $0x4] sm:$0xf]
      %v2094 = vld [vmem:[%s2091 + $0x8] sm:$0xf]
      %v2095 = vld [vmem:[%s2091 + $0xc] sm:$0xf]
      %v2096 = vld [vmem:[%s2091 + $0x10] sm:$0xf]
      %v2097 = vld [vmem:[%s2091 + $0x14] sm:$0xf]
      %v2098 = vld [vmem:[%s2091 + $0x18] sm:$0xf]
      %v2099 = vld [vmem:[%s2091 + $0x1c] sm:$0xf]
      %v2100 = vld [vmem:[%s2091 + $0x20] sm:$0xf]
      %v2101 = vld [vmem:[%s2091 + $0x24] sm:$0xf]
      %v2102 = vld [vmem:[%s2091 + $0x28] sm:$0xf]
      %v2103 = vld [vmem:[%s2091 + $0x2c] sm:$0xf]
      %v2104 = vld [vmem:[%s2091 + $0x30] sm:$0xf]
      %v2105 = vld [vmem:[%s2091 + $0x34] sm:$0xf]
      %v2106 = vld [vmem:[%s2091 + $0x38] sm:$0xf]
      %v2107 = vld [vmem:[%s2091 + $0x3c] sm:$0xf]
      %v2108 = vld [vmem:[%s2091 + $0x40] sm:$0xf]
      %v2109 = vld [vmem:[%s2091 + $0x44] sm:$0xf]
      %v2110 = vld [vmem:[%s2091 + $0x48] sm:$0xf]
      %v2111 = vld [vmem:[%s2091 + $0x4c] sm:$0xf]
      %v2112 = vld [vmem:[%s2091 + $0x50] sm:$0xf]
      %v2113 = vld [vmem:[%s2091 + $0x54] sm:$0xf]
      %v2114 = vld [vmem:[%s2091 + $0x58] sm:$0xf]
      %v2115 = vld [vmem:[%s2091 + $0x5c] sm:$0xf]
      %v2116 = vld [vmem:[%s2091 + $0x60] sm:$0xf]
      %v2117 = vld [vmem:[%s2091 + $0x64] sm:$0xf]
      %v2118 = vld [vmem:[%s2091 + $0x68] sm:$0xf]
      %v2119 = vld [vmem:[%s2091 + $0x6c] sm:$0xf]
      %v2120 = vld [vmem:[%s2091 + $0x70] sm:$0xf]
      %v2121 = vld [vmem:[%s2091 + $0x74] sm:$0xf]
      %v2122 = vld [vmem:[%s2091 + $0x78] sm:$0xf]
      %v2123 = vld [vmem:[%s2091 + $0x7c] sm:$0xf]
      %v2124 = vld [vmem:[%s2091 + $0x80] sm:$0xf]
      %v2125 = vld [vmem:[%s2091 + $0x84] sm:$0xf]
      %v2126 = vld [vmem:[%s2091 + $0x88] sm:$0xf]
      %v2127 = vld [vmem:[%s2091 + $0x8c] sm:$0xf]
      %v2128 = vld [vmem:[%s2091 + $0x90] sm:$0xf]
      %v2129 = vld [vmem:[%s2091 + $0x94] sm:$0xf]
      %v2130 = vld [vmem:[%s2091 + $0x98] sm:$0xf]
      %v2131 = vld [vmem:[%s2091 + $0x9c] sm:$0xf]
      %v2132 = vld [vmem:[%s2091 + $0xa0] sm:$0xf]
      %v2133 = vld [vmem:[%s2091 + $0xa4] sm:$0xf]
      %v2134 = vld [vmem:[%s2091 + $0xa8] sm:$0xf]
      %v2135 = vld [vmem:[%s2091 + $0xac] sm:$0xf]
      %v2136 = vld [vmem:[%s2091 + $0xb0] sm:$0xf]
      %v2137 = vld [vmem:[%s2091 + $0xb4] sm:$0xf]
      %v2138 = vld [vmem:[%s2091 + $0xb8] sm:$0xf]
      %v2139 = vld [vmem:[%s2091 + $0xbc] sm:$0xf]
      %v2188 = vunpack.c.l.b16 %v2092
      %v2189 = vunpack.c.l.b16 %v2093
      %v2190 = vunpack.c.l.b16 %v2094
      %v2191 = vunpack.c.l.b16 %v2095
      %v2192 = vunpack.c.l.b16 %v2096
      %v2193 = vunpack.c.l.b16 %v2097
      %v2194 = vunpack.c.l.b16 %v2098
      %v2195 = vunpack.c.l.b16 %v2099
      %v2196 = vunpack.c.l.b16 %v2100
      %v2197 = vunpack.c.l.b16 %v2101
      %v2198 = vunpack.c.l.b16 %v2102
      %v2199 = vunpack.c.l.b16 %v2103
      %v2200 = vunpack.c.l.b16 %v2104
      %v2201 = vunpack.c.l.b16 %v2105
      %v2202 = vunpack.c.l.b16 %v2106
      %v2203 = vunpack.c.l.b16 %v2107
      %v2204 = vunpack.c.l.b16 %v2108
      %v2205 = vunpack.c.l.b16 %v2109
      %v2206 = vunpack.c.l.b16 %v2110
      %v2207 = vunpack.c.l.b16 %v2111
      %v2208 = vunpack.c.l.b16 %v2112
      %v2209 = vunpack.c.l.b16 %v2113
      %v2210 = vunpack.c.l.b16 %v2114
      %v2211 = vunpack.c.l.b16 %v2115
      %v2212 = vunpack.c.l.b16 %v2116
      %v2213 = vunpack.c.l.b16 %v2117
      %v2214 = vunpack.c.l.b16 %v2118
      %v2215 = vunpack.c.l.b16 %v2119
      %v2216 = vunpack.c.l.b16 %v2120
      %v2217 = vunpack.c.l.b16 %v2121
      %v2218 = vunpack.c.l.b16 %v2122
      %v2219 = vunpack.c.l.b16 %v2123
      %v2220 = vunpack.c.l.b16 %v2124
      %v2221 = vunpack.c.l.b16 %v2125
      %v2222 = vunpack.c.l.b16 %v2126
      %v2223 = vunpack.c.l.b16 %v2127
      %v2224 = vunpack.c.l.b16 %v2128
      %v2225 = vunpack.c.l.b16 %v2129
      %v2226 = vunpack.c.l.b16 %v2130
      %v2227 = vunpack.c.l.b16 %v2131
      %v2228 = vunpack.c.l.b16 %v2132
      %v2229 = vunpack.c.l.b16 %v2133
      %v2230 = vunpack.c.l.b16 %v2134
      %v2231 = vunpack.c.l.b16 %v2135
      %v2232 = vunpack.c.l.b16 %v2136
      %v2233 = vunpack.c.l.b16 %v2137
      %v2234 = vunpack.c.l.b16 %v2138
      %v2235 = vunpack.c.l.b16 %v2139
      %v2236 = vpack.c.b16 %v2189, %v2188
      %v2237 = vpack.c.b16 %v2191, %v2190
      %v2238 = vpack.c.b16 %v2193, %v2192
      %v2239 = vpack.c.b16 %v2195, %v2194
      %v2240 = vpack.c.b16 %v2197, %v2196
      %v2241 = vpack.c.b16 %v2199, %v2198
      %v2242 = vpack.c.b16 %v2201, %v2200
      %v2243 = vpack.c.b16 %v2203, %v2202
      %v2244 = vpack.c.b16 %v2205, %v2204
      %v2245 = vpack.c.b16 %v2207, %v2206
      %v2246 = vpack.c.b16 %v2209, %v2208
      %v2247 = vpack.c.b16 %v2211, %v2210
      %v2248 = vpack.c.b16 %v2213, %v2212
      %v2249 = vpack.c.b16 %v2215, %v2214
      %v2250 = vpack.c.b16 %v2217, %v2216
      %v2251 = vpack.c.b16 %v2219, %v2218
      %v2252 = vpack.c.b16 %v2221, %v2220
      %v2253 = vpack.c.b16 %v2223, %v2222
      %v2254 = vpack.c.b16 %v2225, %v2224
      %v2255 = vpack.c.b16 %v2227, %v2226
      %v2256 = vpack.c.b16 %v2229, %v2228
      %v2257 = vpack.c.b16 %v2231, %v2230
      %v2258 = vpack.c.b16 %v2233, %v2232
      %v2259 = vpack.c.b16 %v2235, %v2234
      %2284 = vmatprep.subr.bf16.mxu0 0
      %2285 = vmatpush1.bf16.msra.mxu0 %v2236
      %2286 = vmatprep.subr.bf16.mxu0 0
      %2287 = vmatpush1.bf16.msra.mxu0 %v2237
      %2288 = vmatprep.subr.bf16.mxu0 0
      %2289 = vmatpush1.bf16.msra.mxu0 %v2238
      %2290 = vmatprep.subr.bf16.mxu0 0
      %2291 = vmatpush1.bf16.msra.mxu0 %v2239
      %2292 = vmatprep.subr.bf16.mxu0 0
      %2293 = vmatpush1.bf16.msra.mxu0 %v2240
      %2294 = vmatprep.subr.bf16.mxu0 0
      %2295 = vmatpush1.bf16.msra.mxu0 %v2241
      %2296 = vmatprep.subr.bf16.mxu0 0
      %2297 = vmatpush1.bf16.msra.mxu0 %v2242
      %2298 = vmatprep.subr.bf16.mxu0 0
      %2299 = vmatpush1.bf16.msra.mxu0 %v2243
      %2300 = vmatprep.subr.bf16.mxu0 0
      %2301 = vmatpush1.bf16.msra.mxu0 %v2244
      %2302 = vmatprep.subr.bf16.mxu0 0
      %2303 = vmatpush1.bf16.msra.mxu0 %v2245
      %2304 = vmatprep.subr.bf16.mxu0 0
      %2305 = vmatpush1.bf16.msra.mxu0 %v2246
      %2306 = vmatprep.subr.bf16.mxu0 0
      %2307 = vmatpush1.bf16.msra.mxu0 %v2247
      %2308 = vmatprep.subr.bf16.mxu0 0
      %2309 = vmatpush1.bf16.msra.mxu0 %v2248
      %2310 = vmatprep.subr.bf16.mxu0 0
      %2311 = vmatpush1.bf16.msra.mxu0 %v2249
      %2312 = vmatprep.subr.bf16.mxu0 0
      %2313 = vmatpush1.bf16.msra.mxu0 %v2250
      %2314 = vmatprep.subr.bf16.mxu0 0
      %2315 = vmatpush1.bf16.msra.mxu0 %v2251
      %2316 = vmatprep.mubr.bf16.mxu0 %v1742
      %2317 = vmatmul.mubr.bf16.gmra.mrb[0].mxu0 %v1684
      %v2318 = vpop.f32.mrb[0].mxu0
      %v2319 = vadd.f32 0.0, %v2318
      %v2320 = vpop.f32.mrb[0].mxu0
      %v2321 = vpop.f32.mrb[0].mxu0
      %v2322 = vadd.f32 0.0, %v2321
      %v2323 = vpop.f32.mrb[0].mxu0
      %2324 = vmatprep.mubr.bf16.mxu0 %v1754
      %2325 = vmatmul.mubr.bf16.gmra.mrb[0].mxu0 %v1686
      %v2326 = vpop.f32.mrb[0].mxu0
      %v2327 = vadd.f32 0.0, %v2326
      %v2328 = vpop.f32.mrb[0].mxu0
      %v2329 = vpop.f32.mrb[0].mxu0
      %v2330 = vadd.f32 0.0, %v2329
      %v2331 = vpop.f32.mrb[0].mxu0
      %2332 = vmatprep.mubr.bf16.mxu0 %v1766
      %2333 = vmatmul.mubr.bf16.gmra.mrb[0].mxu0 %v1688
      %v2334 = vpop.f32.mrb[0].mxu0
      %v2335 = vadd.f32 0.0, %v2334
      %v2336 = vpop.f32.mrb[0].mxu0
      %v2337 = vpop.f32.mrb[0].mxu0
      %v2338 = vadd.f32 0.0, %v2337
      %v2339 = vpop.f32.mrb[0].mxu0
      %2340 = vmatprep.mubr.bf16.mxu0 %v1778
      %2341 = vmatmul.mubr.bf16.gmra.mrb[0].mxu0 %v1690
      %v2342 = vpop.f32.mrb[0].mxu0
      %v2343 = vadd.f32 0.0, %v2342
      %v2344 = vpop.f32.mrb[0].mxu0
      %v2345 = vpop.f32.mrb[0].mxu0
      %v2346 = vadd.f32 0.0, %v2345
      %v2347 = vpop.f32.mrb[0].mxu0
      %2348 = vmatprep.mubr.bf16.mxu0 %v1790
      %2349 = vmatmul.mubr.bf16.gmra.mrb[0].mxu0 %v1692
      %v2350 = vpop.f32.mrb[0].mxu0
      %v2351 = vadd.f32 0.0, %v2350
      %v2352 = vpop.f32.mrb[0].mxu0
      %v2353 = vpop.f32.mrb[0].mxu0
      %v2354 = vadd.f32 0.0, %v2353
      %v2355 = vpop.f32.mrb[0].mxu0
      %2356 = vmatprep.mubr.bf16.mxu0 %v1802
      %2357 = vmatmul.mubr.bf16.gmra.mrb[0].mxu0 %v1694
      %v2358 = vpop.f32.mrb[0].mxu0
      %v2359 = vadd.f32 0.0, %v2358
      %v2360 = vpop.f32.mrb[0].mxu0
      %v2361 = vpop.f32.mrb[0].mxu0
      %v2362 = vadd.f32 0.0, %v2361
      %v2363 = vpop.f32.mrb[0].mxu0
      %2364 = vmatprep.mubr.bf16.mxu0 %v1814
      %2365 = vmatmul.mubr.bf16.gmra.mrb[0].mxu0 %v1696
      %v2366 = vpop.f32.mrb[0].mxu0
      %v2367 = vadd.f32 0.0, %v2366
      %v2368 = vpop.f32.mrb[0].mxu0
      %v2369 = vpop.f32.mrb[0].mxu0
      %v2370 = vadd.f32 0.0, %v2369
      %v2371 = vpop.f32.mrb[0].mxu0
      %2372 = vmatprep.mubr.bf16.mxu0 %v1826
      %2373 = vmatmul.mubr.bf16.gmra.mrb[0].mxu0 %v1698
      %v2374 = vpop.f32.mrb[0].mxu0
      %v2375 = vadd.f32 0.0, %v2374
      %v2376 = vpop.f32.mrb[0].mxu0
      %v2377 = vpop.f32.mrb[0].mxu0
      %v2378 = vadd.f32 0.0, %v2377
      %v2379 = vpop.f32.mrb[0].mxu0
      %2380 = vmatprep.mubr.bf16.mxu0 %v1838
      %2381 = vmatmul.mubr.bf16.gmra.mrb[0].mxu0 %v1700
      %v2382 = vpop.f32.mrb[0].mxu0
      %v2383 = vadd.f32 0.0, %v2382
      %v2384 = vpop.f32.mrb[0].mxu0
      %v2385 = vpop.f32.mrb[0].mxu0
      %v2386 = vadd.f32 0.0, %v2385
      %v2387 = vpop.f32.mrb[0].mxu0
      %2388 = vmatprep.mubr.bf16.mxu0 %v1850
      %2389 = vmatmul.mubr.bf16.gmra.mrb[0].mxu0 %v1702
      %v2390 = vpop.f32.mrb[0].mxu0
      %v2391 = vadd.f32 0.0, %v2390
      %v2392 = vpop.f32.mrb[0].mxu0
      %v2393 = vpop.f32.mrb[0].mxu0
      %v2394 = vadd.f32 0.0, %v2393
      %v2395 = vpop.f32.mrb[0].mxu0
      %2396 = vmatprep.mubr.bf16.mxu0 %v1862
      %2397 = vmatmul.mubr.bf16.gmra.mrb[0].mxu0 %v1704
      %v2398 = vpop.f32.mrb[0].mxu0
      %v2399 = vadd.f32 0.0, %v2398
      %v2400 = vpop.f32.mrb[0].mxu0
      %v2401 = vpop.f32.mrb[0].mxu0
      %v2402 = vadd.f32 0.0, %v2401
      %v2403 = vpop.f32.mrb[0].mxu0
      %2404 = vmatprep.mubr.bf16.mxu0 %v1874
      %2405 = vmatmul.mubr.bf16.gmra.mrb[0].mxu0 %v1706
      %v2406 = vpop.f32.mrb[0].mxu0
      %v2407 = vadd.f32 0.0, %v2406
      %v2408 = vpop.f32.mrb[0].mxu0
      %v2409 = vpop.f32.mrb[0].mxu0
      %v2410 = vadd.f32 0.0, %v2409
      %v2411 = vpop.f32.mrb[0].mxu0
      %2412 = vmatprep.mubr.bf16.mxu0 %v1886
      %2413 = vmatmul.mubr.bf16.gmra.mrb[0].mxu0 %v1708
      %v2414 = vpop.f32.mrb[0].mxu0
      %v2415 = vadd.f32 0.0, %v2414
      %v2416 = vpop.f32.mrb[0].mxu0
      %v2417 = vpop.f32.mrb[0].mxu0
      %v2418 = vadd.f32 0.0, %v2417
      %v2419 = vpop.f32.mrb[0].mxu0
      %2420 = vmatprep.mubr.bf16.mxu0 %v1898
      %2421 = vmatmul.mubr.bf16.gmra.mrb[0].mxu0 %v1710
      %v2422 = vpop.f32.mrb[0].mxu0
      %v2423 = vadd.f32 0.0, %v2422
      %v2424 = vpop.f32.mrb[0].mxu0
      %v2425 = vpop.f32.mrb[0].mxu0
      %v2426 = vadd.f32 0.0, %v2425
      %v2427 = vpop.f32.mrb[0].mxu0
      %2428 = vmatprep.mubr.bf16.mxu0 %v1910
      %2429 = vmatmul.mubr.bf16.gmra.mrb[0].mxu0 %v1712
      %v2430 = vpop.f32.mrb[0].mxu0
      %v2431 = vadd.f32 0.0, %v2430
      %v2432 = vpop.f32.mrb[0].mxu0
      %v2433 = vpop.f32.mrb[0].mxu0
      %v2434 = vadd.f32 0.0, %v2433
      %v2435 = vpop.f32.mrb[0].mxu0
      %2436 = vmatprep.mubr.bf16.mxu0 %v2083
      %2437 = vmatmul.mubr.bf16.gmra.mrb[0].mxu0 %v1714
      %v2438 = vpop.f32.mrb[0].mxu0
      %v2439 = vadd.f32 0.0, %v2438
      %v2440 = vpop.f32.mrb[0].mxu0
      %v2441 = vpop.f32.mrb[0].mxu0
      %v2442 = vadd.f32 0.0, %v2441
      %v2443 = vpop.f32.mrb[0].mxu0
      %2444 = vdwg.mxu0
      %2445 = vmatprep.subr.bf16.mxu0 0
      %2446 = vmatpush1.bf16.msra.mxu0 %v2252
      %2447 = vmatprep.subr.bf16.mxu0 0
      %2448 = vmatpush1.bf16.msra.mxu0 %v2253
      %2449 = vmatprep.subr.bf16.mxu0 0
      %2450 = vmatpush1.bf16.msra.mxu0 %v2254
      %2451 = vmatprep.subr.bf16.mxu0 0
      %2452 = vmatpush1.bf16.msra.mxu0 %v2255
      %2453 = vmatprep.subr.bf16.mxu0 0
      %2454 = vmatpush1.bf16.msra.mxu0 %v2256
      %2455 = vmatprep.subr.bf16.mxu0 0
      %2456 = vmatpush1.bf16.msra.mxu0 %v2257
      %2457 = vmatprep.subr.bf16.mxu0 0
      %2458 = vmatpush1.bf16.msra.mxu0 %v2258
      %2459 = vmatprep.subr.bf16.mxu0 0
      %2460 = vmatpush1.bf16.msra.mxu0 %v2259
      %2461 = vmatprep.subr.bf16.mxu0 0
      %2462 = vmatpush1.bf16.msra.mxu0 0
      %2463 = vmatprep.subr.bf16.mxu0 0
      %2464 = vmatpush1.bf16.msra.mxu0 0
      %2465 = vmatprep.subr.bf16.mxu0 0
      %2466 = vmatpush1.bf16.msra.mxu0 0
      %2467 = vmatprep.subr.bf16.mxu0 0
      %2468 = vmatpush1.bf16.msra.mxu0 0
      %2469 = vmatprep.subr.bf16.mxu0 0
      %2470 = vmatpush1.bf16.msra.mxu0 0
      %2471 = vmatprep.subr.bf16.mxu0 0
      %2472 = vmatpush1.bf16.msra.mxu0 0
      %2473 = vmatprep.subr.bf16.mxu0 0
      %2474 = vmatpush1.bf16.msra.mxu0 0
      %2475 = vmatprep.subr.bf16.mxu0 0
      %2476 = vmatpush1.bf16.msra.mxu0 0
      %2477 = vmatprep.mubr.bf16.mxu0 0
      %2478 = vmatmul.mubr.bf16.gmra.mrb[0].mxu0 %v1965
      %v2479 = vpop.f32.mrb[0].mxu0
      %v2480 = vadd.f32 %v2319, %v2479
      %v2481 = vpop.f32.mrb[0].mxu0
      %v2482 = vpop.f32.mrb[0].mxu0
      %v2483 = vadd.f32 %v2322, %v2482
      %v2484 = vpop.f32.mrb[0].mxu0
      %2485 = vmatprep.mubr.bf16.mxu0 0
      %2486 = vmatmul.mubr.bf16.gmra.mrb[0].mxu0 %v1968
      %v2487 = vpop.f32.mrb[0].mxu0
      %v2488 = vadd.f32 %v2327, %v2487
      %v2489 = vpop.f32.mrb[0].mxu0
      %v2490 = vpop.f32.mrb[0].mxu0
      %v2491 = vadd.f32 %v2330, %v2490
      %v2492 = vpop.f32.mrb[0].mxu0
      %2493 = vmatprep.mubr.bf16.mxu0 0
      %2494 = vmatmul.mubr.bf16.gmra.mrb[0].mxu0 %v1971
      %v2495 = vpop.f32.mrb[0].mxu0
      %v2496 = vadd.f32 %v2335, %v2495
      %v2497 = vpop.f32.mrb[0].mxu0
      %v2498 = vpop.f32.mrb[0].mxu0
      %v2499 = vadd.f32 %v2338, %v2498
      %v2500 = vpop.f32.mrb[0].mxu0
      %2501 = vmatprep.mubr.bf16.mxu0 0
      %2502 = vmatmul.mubr.bf16.gmra.mrb[0].mxu0 %v1974
      %v2503 = vpop.f32.mrb[0].mxu0
      %v2504 = vadd.f32 %v2343, %v2503
      %v2505 = vpop.f32.mrb[0].mxu0
      %v2506 = vpop.f32.mrb[0].mxu0
      %v2507 = vadd.f32 %v2346, %v2506
      %v2508 = vpop.f32.mrb[0].mxu0
      %2509 = vmatprep.mubr.bf16.mxu0 0
      %2510 = vmatmul.mubr.bf16.gmra.mrb[0].mxu0 %v1977
      %v2511 = vpop.f32.mrb[0].mxu0
      %v2512 = vadd.f32 %v2351, %v2511
      %v2513 = vpop.f32.mrb[0].mxu0
      %v2514 = vpop.f32.mrb[0].mxu0
      %v2515 = vadd.f32 %v2354, %v2514
      %v2516 = vpop.f32.mrb[0].mxu0
      %2517 = vmatprep.mubr.bf16.mxu0 0
      %2518 = vmatmul.mubr.bf16.gmra.mrb[0].mxu0 %v1980
      %v2519 = vpop.f32.mrb[0].mxu0
      %v2520 = vadd.f32 %v2359, %v2519
      %v2521 = vpop.f32.mrb[0].mxu0
      %v2522 = vpop.f32.mrb[0].mxu0
      %v2523 = vadd.f32 %v2362, %v2522
      %v2524 = vpop.f32.mrb[0].mxu0
      %2525 = vmatprep.mubr.bf16.mxu0 0
      %2526 = vmatmul.mubr.bf16.gmra.mrb[0].mxu0 %v1983
      %v2527 = vpop.f32.mrb[0].mxu0
      %v2528 = vadd.f32 %v2367, %v2527
      %v2529 = vpop.f32.mrb[0].mxu0
      %v2530 = vpop.f32.mrb[0].mxu0
      %v2531 = vadd.f32 %v2370, %v2530
      %v2532 = vpop.f32.mrb[0].mxu0
      %2533 = vmatprep.mubr.bf16.mxu0 0
      %2534 = vmatmul.mubr.bf16.gmra.mrb[0].mxu0 %v1986
      %v2535 = vpop.f32.mrb[0].mxu0
      %v2536 = vadd.f32 %v2375, %v2535
      %v2537 = vpop.f32.mrb[0].mxu0
      %v2538 = vpop.f32.mrb[0].mxu0
      %v2539 = vadd.f32 %v2378, %v2538
      %v2540 = vpop.f32.mrb[0].mxu0
      %2541 = vmatprep.mubr.bf16.mxu0 0
      %2542 = vmatmul.mubr.bf16.gmra.mrb[0].mxu0 %v1989
      %v2543 = vpop.f32.mrb[0].mxu0
      %v2544 = vadd.f32 %v2383, %v2543
      %v2545 = vpop.f32.mrb[0].mxu0
      %v2546 = vpop.f32.mrb[0].mxu0
      %v2547 = vadd.f32 %v2386, %v2546
      %v2548 = vpop.f32.mrb[0].mxu0
      %2549 = vmatprep.mubr.bf16.mxu0 0
      %2550 = vmatmul.mubr.bf16.gmra.mrb[0].mxu0 %v1992
      %v2551 = vpop.f32.mrb[0].mxu0
      %v2552 = vadd.f32 %v2391, %v2551
      %v2553 = vpop.f32.mrb[0].mxu0
      %v2554 = vpop.f32.mrb[0].mxu0
      %v2555 = vadd.f32 %v2394, %v2554
      %v2556 = vpop.f32.mrb[0].mxu0
      %2557 = vmatprep.mubr.bf16.mxu0 0
      %2558 = vmatmul.mubr.bf16.gmra.mrb[0].mxu0 %v1995
      %v2559 = vpop.f32.mrb[0].mxu0
      %v2560 = vadd.f32 %v2399, %v2559
      %v2561 = vpop.f32.mrb[0].mxu0
      %v2562 = vpop.f32.mrb[0].mxu0
      %v2563 = vadd.f32 %v2402, %v2562
      %v2564 = vpop.f32.mrb[0].mxu0
      %2565 = vmatprep.mubr.bf16.mxu0 0
      %2566 = vmatmul.mubr.bf16.gmra.mrb[0].mxu0 %v1998
      %v2567 = vpop.f32.mrb[0].mxu0
      %v2568 = vadd.f32 %v2407, %v2567
      %v2569 = vpop.f32.mrb[0].mxu0
      %v2570 = vpop.f32.mrb[0].mxu0
      %v2571 = vadd.f32 %v2410, %v2570
      %v2572 = vpop.f32.mrb[0].mxu0
      %2573 = vmatprep.mubr.bf16.mxu0 0
      %2574 = vmatmul.mubr.bf16.gmra.mrb[0].mxu0 %v2001
      %v2575 = vpop.f32.mrb[0].mxu0
      %v2576 = vadd.f32 %v2415, %v2575
      %v2577 = vpop.f32.mrb[0].mxu0
      %v2578 = vpop.f32.mrb[0].mxu0
      %v2579 = vadd.f32 %v2418, %v2578
      %v2580 = vpop.f32.mrb[0].mxu0
      %2581 = vmatprep.mubr.bf16.mxu0 0
      %2582 = vmatmul.mubr.bf16.gmra.mrb[0].mxu0 %v2004
      %v2583 = vpop.f32.mrb[0].mxu0
      %v2584 = vadd.f32 %v2423, %v2583
      %v2585 = vpop.f32.mrb[0].mxu0
      %v2586 = vpop.f32.mrb[0].mxu0
      %v2587 = vadd.f32 %v2426, %v2586
      %v2588 = vpop.f32.mrb[0].mxu0
      %2589 = vmatprep.mubr.bf16.mxu0 0
      %2590 = vmatmul.mubr.bf16.gmra.mrb[0].mxu0 %v2007
      %v2591 = vpop.f32.mrb[0].mxu0
      %v2592 = vadd.f32 %v2431, %v2591
      %v2593 = vpop.f32.mrb[0].mxu0
      %v2594 = vpop.f32.mrb[0].mxu0
      %v2595 = vadd.f32 %v2434, %v2594
      %v2596 = vpop.f32.mrb[0].mxu0
      %2597 = vmatprep.mubr.bf16.mxu0 0
      %2598 = vmatmul.mubr.bf16.gmra.mrb[0].mxu0 %v2089
      %v2599 = vpop.f32.mrb[0].mxu0
      %v2600 = vadd.f32 %v2439, %v2599
      %v2601 = vpop.f32.mrb[0].mxu0
      %v2602 = vpop.f32.mrb[0].mxu0
      %v2603 = vadd.f32 %v2442, %v2602
      %v2604 = vpop.f32.mrb[0].mxu0
      %2605 = vdwg.mxu0
      %v2654 = vunpack.c.l.b16 %v2024
      %v2655 = vunpack.c.l.b16 %v2025
      %v2656 = vunpack.c.l.b16 %v2026
      %v2657 = vunpack.c.l.b16 %v2027
      %v2658 = vunpack.c.l.b16 %v2028
      %v2659 = vunpack.c.l.b16 %v2029
      %v2660 = vunpack.c.l.b16 %v2030
      %v2661 = vunpack.c.l.b16 %v2031
      %v2662 = vunpack.c.l.b16 %v2032
      %v2663 = vunpack.c.l.b16 %v2033
      %v2664 = vunpack.c.l.b16 %v2034
      %v2665 = vunpack.c.l.b16 %v2035
      %v2666 = vunpack.c.l.b16 %v2036
      %v2667 = vunpack.c.l.b16 %v2037
      %v2668 = vunpack.c.l.b16 %v2038
      %v2669 = vunpack.c.l.b16 %v2039
      %v2670 = vunpack.c.l.b16 %v2040
      %v2671 = vunpack.c.l.b16 %v2041
      %v2672 = vunpack.c.l.b16 %v2042
      %v2673 = vunpack.c.l.b16 %v2043
      %v2674 = vunpack.c.l.b16 %v2044
      %v2675 = vunpack.c.l.b16 %v2045
      %v2676 = vunpack.c.l.b16 %v2046
      %v2677 = vunpack.c.l.b16 %v2047
      %v2678 = vunpack.c.l.b16 %v2048
      %v2679 = vunpack.c.l.b16 %v2049
      %v2680 = vunpack.c.l.b16 %v2050
      %v2681 = vunpack.c.l.b16 %v2051
      %v2682 = vunpack.c.l.b16 %v2052
      %v2683 = vunpack.c.l.b16 %v2053
      %v2684 = vunpack.c.l.b16 %v2054
      %v2685 = vunpack.c.l.b16 %v2055
      %v2686 = vunpack.c.l.b16 %v2056
      %v2687 = vunpack.c.l.b16 %v2057
      %v2688 = vunpack.c.l.b16 %v2058
      %v2689 = vunpack.c.l.b16 %v2059
      %v2690 = vunpack.c.l.b16 %v2060
      %v2691 = vunpack.c.l.b16 %v2061
      %v2692 = vunpack.c.l.b16 %v2062
      %v2693 = vunpack.c.l.b16 %v2063
      %v2694 = vunpack.c.l.b16 %v2064
      %v2695 = vunpack.c.l.b16 %v2065
      %v2696 = vunpack.c.l.b16 %v2066
      %v2697 = vunpack.c.l.b16 %v2067
      %v2698 = vunpack.c.l.b16 %v2068
      %v2699 = vunpack.c.l.b16 %v2069
      %v2700 = vunpack.c.l.b16 %v2070
      %v2701 = vunpack.c.l.b16 %v2071
      %v2702 = vpack.c.b16 %v2655, %v2654
      %v2703 = vpack.c.b16 %v2657, %v2656
      %v2704 = vpack.c.b16 %v2659, %v2658
      %v2705 = vpack.c.b16 %v2661, %v2660
      %v2706 = vpack.c.b16 %v2663, %v2662
      %v2707 = vpack.c.b16 %v2665, %v2664
      %v2708 = vpack.c.b16 %v2667, %v2666
      %v2709 = vpack.c.b16 %v2669, %v2668
      %v2710 = vpack.c.b16 %v2671, %v2670
      %v2711 = vpack.c.b16 %v2673, %v2672
      %v2712 = vpack.c.b16 %v2675, %v2674
      %v2713 = vpack.c.b16 %v2677, %v2676
      %v2714 = vpack.c.b16 %v2679, %v2678
      %v2715 = vpack.c.b16 %v2681, %v2680
      %v2716 = vpack.c.b16 %v2683, %v2682
      %v2717 = vpack.c.b16 %v2685, %v2684
      %v2718 = vpack.c.b16 %v2687, %v2686
      %v2719 = vpack.c.b16 %v2689, %v2688
      %v2720 = vpack.c.b16 %v2691, %v2690
      %v2721 = vpack.c.b16 %v2693, %v2692
      %v2722 = vpack.c.b16 %v2695, %v2694
      %v2723 = vpack.c.b16 %v2697, %v2696
      %v2724 = vpack.c.b16 %v2699, %v2698
      %v2725 = vpack.c.b16 %v2701, %v2700
      %2750 = vmatprep.subr.bf16.mxu0 0
      %2751 = vmatpush1.bf16.msra.mxu0 %v2702
      %2752 = vmatprep.subr.bf16.mxu0 0
      %2753 = vmatpush1.bf16.msra.mxu0 %v2703
      %2754 = vmatprep.subr.bf16.mxu0 0
      %2755 = vmatpush1.bf16.msra.mxu0 %v2704
      %2756 = vmatprep.subr.bf16.mxu0 0
      %2757 = vmatpush1.bf16.msra.mxu0 %v2705
      %2758 = vmatprep.subr.bf16.mxu0 0
      %2759 = vmatpush1.bf16.msra.mxu0 %v2706
      %2760 = vmatprep.subr.bf16.mxu0 0
      %2761 = vmatpush1.bf16.msra.mxu0 %v2707
      %2762 = vmatprep.subr.bf16.mxu0 0
      %2763 = vmatpush1.bf16.msra.mxu0 %v2708
      %2764 = vmatprep.subr.bf16.mxu0 0
      %2765 = vmatpush1.bf16.msra.mxu0 %v2709
      %2766 = vmatprep.subr.bf16.mxu0 0
      %2767 = vmatpush1.bf16.msra.mxu0 %v2710
      %2768 = vmatprep.subr.bf16.mxu0 0
      %2769 = vmatpush1.bf16.msra.mxu0 %v2711
      %2770 = vmatprep.subr.bf16.mxu0 0
      %2771 = vmatpush1.bf16.msra.mxu0 %v2712
      %2772 = vmatprep.subr.bf16.mxu0 0
      %2773 = vmatpush1.bf16.msra.mxu0 %v2713
      %2774 = vmatprep.subr.bf16.mxu0 0
      %2775 = vmatpush1.bf16.msra.mxu0 %v2714
      %2776 = vmatprep.subr.bf16.mxu0 0
      %2777 = vmatpush1.bf16.msra.mxu0 %v2715
      %2778 = vmatprep.subr.bf16.mxu0 0
      %2779 = vmatpush1.bf16.msra.mxu0 %v2716
      %2780 = vmatprep.subr.bf16.mxu0 0
      %2781 = vmatpush1.bf16.msra.mxu0 %v2717
      %2782 = vmatprep.mubr.bf16.mxu0 %v1730
      %2783 = vmatmul.mubr.bf16.gmra.mrb[0].mxu0 %v1682
      %v2784 = vpop.f32.mrb[0].mxu0
      %v2785 = vadd.f32 %v2480, %v2784
      %v2786 = vpop.f32.mrb[0].mxu0
      %v2787 = vpop.f32.mrb[0].mxu0
      %v2788 = vadd.f32 %v2483, %v2787
      %v2789 = vpop.f32.mrb[0].mxu0
      %2790 = vmatprep.mubr.bf16.mxu0 %v1742
      %2791 = vmatmul.mubr.bf16.gmra.mrb[0].mxu0 %v1684
      %v2792 = vpop.f32.mrb[0].mxu0
      %v2793 = vadd.f32 %v2488, %v2792
      %v2794 = vpop.f32.mrb[0].mxu0
      %v2795 = vpop.f32.mrb[0].mxu0
      %v2796 = vadd.f32 %v2491, %v2795
      %v2797 = vpop.f32.mrb[0].mxu0
      %2798 = vmatprep.mubr.bf16.mxu0 %v1754
      %2799 = vmatmul.mubr.bf16.gmra.mrb[0].mxu0 %v1686
      %v2800 = vpop.f32.mrb[0].mxu0
      %v2801 = vadd.f32 %v2496, %v2800
      %v2802 = vpop.f32.mrb[0].mxu0
      %v2803 = vpop.f32.mrb[0].mxu0
      %v2804 = vadd.f32 %v2499, %v2803
      %v2805 = vpop.f32.mrb[0].mxu0
      %2806 = vmatprep.mubr.bf16.mxu0 %v1766
      %2807 = vmatmul.mubr.bf16.gmra.mrb[0].mxu0 %v1688
      %v2808 = vpop.f32.mrb[0].mxu0
      %v2809 = vadd.f32 %v2504, %v2808
      %v2810 = vpop.f32.mrb[0].mxu0
      %v2811 = vpop.f32.mrb[0].mxu0
      %v2812 = vadd.f32 %v2507, %v2811
      %v2813 = vpop.f32.mrb[0].mxu0
      %2814 = vmatprep.mubr.bf16.mxu0 %v1778
      %2815 = vmatmul.mubr.bf16.gmra.mrb[0].mxu0 %v1690
      %v2816 = vpop.f32.mrb[0].mxu0
      %v2817 = vadd.f32 %v2512, %v2816
      %v2818 = vpop.f32.mrb[0].mxu0
      %v2819 = vpop.f32.mrb[0].mxu0
      %v2820 = vadd.f32 %v2515, %v2819
      %v2821 = vpop.f32.mrb[0].mxu0
      %2822 = vmatprep.mubr.bf16.mxu0 %v1790
      %2823 = vmatmul.mubr.bf16.gmra.mrb[0].mxu0 %v1692
      %v2824 = vpop.f32.mrb[0].mxu0
      %v2825 = vadd.f32 %v2520, %v2824
      %v2826 = vpop.f32.mrb[0].mxu0
      %v2827 = vpop.f32.mrb[0].mxu0
      %v2828 = vadd.f32 %v2523, %v2827
      %v2829 = vpop.f32.mrb[0].mxu0
      %2830 = vmatprep.mubr.bf16.mxu0 %v1802
      %2831 = vmatmul.mubr.bf16.gmra.mrb[0].mxu0 %v1694
      %v2832 = vpop.f32.mrb[0].mxu0
      %v2833 = vadd.f32 %v2528, %v2832
      %v2834 = vpop.f32.mrb[0].mxu0
      %v2835 = vpop.f32.mrb[0].mxu0
      %v2836 = vadd.f32 %v2531, %v2835
      %v2837 = vpop.f32.mrb[0].mxu0
      %2838 = vmatprep.mubr.bf16.mxu0 %v1814
      %2839 = vmatmul.mubr.bf16.gmra.mrb[0].mxu0 %v1696
      %v2840 = vpop.f32.mrb[0].mxu0
      %v2841 = vadd.f32 %v2536, %v2840
      %v2842 = vpop.f32.mrb[0].mxu0
      %v2843 = vpop.f32.mrb[0].mxu0
      %v2844 = vadd.f32 %v2539, %v2843
      %v2845 = vpop.f32.mrb[0].mxu0
      %2846 = vmatprep.mubr.bf16.mxu0 %v1826
      %2847 = vmatmul.mubr.bf16.gmra.mrb[0].mxu0 %v1698
      %v2848 = vpop.f32.mrb[0].mxu0
      %v2849 = vadd.f32 %v2544, %v2848
      %v2850 = vpop.f32.mrb[0].mxu0
      %v2851 = vpop.f32.mrb[0].mxu0
      %v2852 = vadd.f32 %v2547, %v2851
      %v2853 = vpop.f32.mrb[0].mxu0
      %2854 = vmatprep.mubr.bf16.mxu0 %v1838
      %2855 = vmatmul.mubr.bf16.gmra.mrb[0].mxu0 %v1700
      %v2856 = vpop.f32.mrb[0].mxu0
      %v2857 = vadd.f32 %v2552, %v2856
      %v2858 = vpop.f32.mrb[0].mxu0
      %v2859 = vpop.f32.mrb[0].mxu0
      %v2860 = vadd.f32 %v2555, %v2859
      %v2861 = vpop.f32.mrb[0].mxu0
      %2862 = vmatprep.mubr.bf16.mxu0 %v1850
      %2863 = vmatmul.mubr.bf16.gmra.mrb[0].mxu0 %v1702
      %v2864 = vpop.f32.mrb[0].mxu0
      %v2865 = vadd.f32 %v2560, %v2864
      %v2866 = vpop.f32.mrb[0].mxu0
      %v2867 = vpop.f32.mrb[0].mxu0
      %v2868 = vadd.f32 %v2563, %v2867
      %v2869 = vpop.f32.mrb[0].mxu0
      %2870 = vmatprep.mubr.bf16.mxu0 %v1862
      %2871 = vmatmul.mubr.bf16.gmra.mrb[0].mxu0 %v1704
      %v2872 = vpop.f32.mrb[0].mxu0
      %v2873 = vadd.f32 %v2568, %v2872
      %v2874 = vpop.f32.mrb[0].mxu0
      %v2875 = vpop.f32.mrb[0].mxu0
      %v2876 = vadd.f32 %v2571, %v2875
      %v2877 = vpop.f32.mrb[0].mxu0
      %2878 = vmatprep.mubr.bf16.mxu0 %v1874
      %2879 = vmatmul.mubr.bf16.gmra.mrb[0].mxu0 %v1706
      %v2880 = vpop.f32.mrb[0].mxu0
      %v2881 = vadd.f32 %v2576, %v2880
      %v2882 = vpop.f32.mrb[0].mxu0
      %v2883 = vpop.f32.mrb[0].mxu0
      %v2884 = vadd.f32 %v2579, %v2883
      %v2885 = vpop.f32.mrb[0].mxu0
      %2886 = vmatprep.mubr.bf16.mxu0 %v1886
      %2887 = vmatmul.mubr.bf16.gmra.mrb[0].mxu0 %v1708
      %v2888 = vpop.f32.mrb[0].mxu0
      %v2889 = vadd.f32 %v2584, %v2888
      %v2890 = vpop.f32.mrb[0].mxu0
      %v2891 = vpop.f32.mrb[0].mxu0
      %v2892 = vadd.f32 %v2587, %v2891
      %v2893 = vpop.f32.mrb[0].mxu0
      %2894 = vmatprep.mubr.bf16.mxu0 %v1898
      %2895 = vmatmul.mubr.bf16.gmra.mrb[0].mxu0 %v1710
      %v2896 = vpop.f32.mrb[0].mxu0
      %v2897 = vadd.f32 %v2592, %v2896
      %v2898 = vpop.f32.mrb[0].mxu0
      %v2899 = vpop.f32.mrb[0].mxu0
      %v2900 = vadd.f32 %v2595, %v2899
      %v2901 = vpop.f32.mrb[0].mxu0
      %2902 = vmatprep.mubr.bf16.mxu0 %v1910
      %2903 = vmatmul.mubr.bf16.gmra.mrb[0].mxu0 %v1712
      %v2904 = vpop.f32.mrb[0].mxu0
      %v2905 = vadd.f32 %v2600, %v2904
      %v2906 = vpop.f32.mrb[0].mxu0
      %v2907 = vpop.f32.mrb[0].mxu0
      %v2908 = vadd.f32 %v2603, %v2907
      %v2909 = vpop.f32.mrb[0].mxu0
      %2910 = vdwg.mxu0
      %2911 = vmatprep.subr.bf16.mxu0 0
      %2912 = vmatpush1.bf16.msra.mxu0 %v2718
      %2913 = vmatprep.subr.bf16.mxu0 0
      %2914 = vmatpush1.bf16.msra.mxu0 %v2719
      %2915 = vmatprep.subr.bf16.mxu0 0
      %2916 = vmatpush1.bf16.msra.mxu0 %v2720
      %2917 = vmatprep.subr.bf16.mxu0 0
      %2918 = vmatpush1.bf16.msra.mxu0 %v2721
      %2919 = vmatprep.subr.bf16.mxu0 0
      %2920 = vmatpush1.bf16.msra.mxu0 %v2722
      %2921 = vmatprep.subr.bf16.mxu0 0
      %2922 = vmatpush1.bf16.msra.mxu0 %v2723
      %2923 = vmatprep.subr.bf16.mxu0 0
      %2924 = vmatpush1.bf16.msra.mxu0 %v2724
      %2925 = vmatprep.subr.bf16.mxu0 0
      %2926 = vmatpush1.bf16.msra.mxu0 %v2725
      %2927 = vmatprep.subr.bf16.mxu0 0
      %2928 = vmatpush1.bf16.msra.mxu0 0
      %2929 = vmatprep.subr.bf16.mxu0 0
      %2930 = vmatpush1.bf16.msra.mxu0 0
      %2931 = vmatprep.subr.bf16.mxu0 0
      %2932 = vmatpush1.bf16.msra.mxu0 0
      %2933 = vmatprep.subr.bf16.mxu0 0
      %2934 = vmatpush1.bf16.msra.mxu0 0
      %2935 = vmatprep.subr.bf16.mxu0 0
      %2936 = vmatpush1.bf16.msra.mxu0 0
      %2937 = vmatprep.subr.bf16.mxu0 0
      %2938 = vmatpush1.bf16.msra.mxu0 0
      %2939 = vmatprep.subr.bf16.mxu0 0
      %2940 = vmatpush1.bf16.msra.mxu0 0
      %2941 = vmatprep.subr.bf16.mxu0 0
      %2942 = vmatpush1.bf16.msra.mxu0 0
      %2943 = vmatprep.mubr.bf16.mxu0 0
      %2944 = vmatmul.mubr.bf16.gmra.mrb[0].mxu0 %v1962
      %v2945 = vpop.f32.mrb[0].mxu0
      %v2946 = vadd.f32 %v2785, %v2945
      %v2947 = vpop.f32.mrb[0].mxu0
      %v2948 = vpop.f32.mrb[0].mxu0
      %v2949 = vadd.f32 %v2788, %v2948
      %v2950 = vpop.f32.mrb[0].mxu0
      %2951 = vmatprep.mubr.bf16.mxu0 0
      %2952 = vmatmul.mubr.bf16.gmra.mrb[0].mxu0 %v1965
      %v2953 = vpop.f32.mrb[0].mxu0
      %v2954 = vadd.f32 %v2793, %v2953
      %v2955 = vpop.f32.mrb[0].mxu0
      %v2956 = vpop.f32.mrb[0].mxu0
      %v2957 = vadd.f32 %v2796, %v2956
      %v2958 = vpop.f32.mrb[0].mxu0
      %2959 = vmatprep.mubr.bf16.mxu0 0
      %2960 = vmatmul.mubr.bf16.gmra.mrb[0].mxu0 %v1968
      %v2961 = vpop.f32.mrb[0].mxu0
      %v2962 = vadd.f32 %v2801, %v2961
      %v2963 = vpop.f32.mrb[0].mxu0
      %v2964 = vpop.f32.mrb[0].mxu0
      %v2965 = vadd.f32 %v2804, %v2964
      %v2966 = vpop.f32.mrb[0].mxu0
      %2967 = vmatprep.mubr.bf16.mxu0 0
      %2968 = vmatmul.mubr.bf16.gmra.mrb[0].mxu0 %v1971
      %v2969 = vpop.f32.mrb[0].mxu0
      %v2970 = vadd.f32 %v2809, %v2969
      %v2971 = vpop.f32.mrb[0].mxu0
      %v2972 = vpop.f32.mrb[0].mxu0
      %v2973 = vadd.f32 %v2812, %v2972
      %v2974 = vpop.f32.mrb[0].mxu0
      %2975 = vmatprep.mubr.bf16.mxu0 0
      %2976 = vmatmul.mubr.bf16.gmra.mrb[0].mxu0 %v1974
      %v2977 = vpop.f32.mrb[0].mxu0
      %v2978 = vadd.f32 %v2817, %v2977
      %v2979 = vpop.f32.mrb[0].mxu0
      %v2980 = vpop.f32.mrb[0].mxu0
      %v2981 = vadd.f32 %v2820, %v2980
      %v2982 = vpop.f32.mrb[0].mxu0
      %2983 = vmatprep.mubr.bf16.mxu0 0
      %2984 = vmatmul.mubr.bf16.gmra.mrb[0].mxu0 %v1977
      %v2985 = vpop.f32.mrb[0].mxu0
      %v2986 = vadd.f32 %v2825, %v2985
      %v2987 = vpop.f32.mrb[0].mxu0
      %v2988 = vpop.f32.mrb[0].mxu0
      %v2989 = vadd.f32 %v2828, %v2988
      %v2990 = vpop.f32.mrb[0].mxu0
      %2991 = vmatprep.mubr.bf16.mxu0 0
      %2992 = vmatmul.mubr.bf16.gmra.mrb[0].mxu0 %v1980
      %v2993 = vpop.f32.mrb[0].mxu0
      %v2994 = vadd.f32 %v2833, %v2993
      %v2995 = vpop.f32.mrb[0].mxu0
      %v2996 = vpop.f32.mrb[0].mxu0
      %v2997 = vadd.f32 %v2836, %v2996
      %v2998 = vpop.f32.mrb[0].mxu0
      %2999 = vmatprep.mubr.bf16.mxu0 0
      %3000 = vmatmul.mubr.bf16.gmra.mrb[0].mxu0 %v1983
      %v3001 = vpop.f32.mrb[0].mxu0
      %v3002 = vadd.f32 %v2841, %v3001
      %v3003 = vpop.f32.mrb[0].mxu0
      %v3004 = vpop.f32.mrb[0].mxu0
      %v3005 = vadd.f32 %v2844, %v3004
      %v3006 = vpop.f32.mrb[0].mxu0
      %3007 = vmatprep.mubr.bf16.mxu0 0
      %3008 = vmatmul.mubr.bf16.gmra.mrb[0].mxu0 %v1986
      %v3009 = vpop.f32.mrb[0].mxu0
      %v3010 = vadd.f32 %v2849, %v3009
      %v3011 = vpop.f32.mrb[0].mxu0
      %v3012 = vpop.f32.mrb[0].mxu0
      %v3013 = vadd.f32 %v2852, %v3012
      %v3014 = vpop.f32.mrb[0].mxu0
      %3015 = vmatprep.mubr.bf16.mxu0 0
      %3016 = vmatmul.mubr.bf16.gmra.mrb[0].mxu0 %v1989
      %v3017 = vpop.f32.mrb[0].mxu0
      %v3018 = vadd.f32 %v2857, %v3017
      %v3019 = vpop.f32.mrb[0].mxu0
      %v3020 = vpop.f32.mrb[0].mxu0
      %v3021 = vadd.f32 %v2860, %v3020
      %v3022 = vpop.f32.mrb[0].mxu0
      %3023 = vmatprep.mubr.bf16.mxu0 0
      %3024 = vmatmul.mubr.bf16.gmra.mrb[0].mxu0 %v1992
      %v3025 = vpop.f32.mrb[0].mxu0
      %v3026 = vadd.f32 %v2865, %v3025
      %v3027 = vpop.f32.mrb[0].mxu0
      %v3028 = vpop.f32.mrb[0].mxu0
      %v3029 = vadd.f32 %v2868, %v3028
      %v3030 = vpop.f32.mrb[0].mxu0
      %3031 = vmatprep.mubr.bf16.mxu0 0
      %3032 = vmatmul.mubr.bf16.gmra.mrb[0].mxu0 %v1995
      %v3033 = vpop.f32.mrb[0].mxu0
      %v3034 = vadd.f32 %v2873, %v3033
      %v3035 = vpop.f32.mrb[0].mxu0
      %v3036 = vpop.f32.mrb[0].mxu0
      %v3037 = vadd.f32 %v2876, %v3036
      %v3038 = vpop.f32.mrb[0].mxu0
      %3039 = vmatprep.mubr.bf16.mxu0 0
      %3040 = vmatmul.mubr.bf16.gmra.mrb[0].mxu0 %v1998
      %v3041 = vpop.f32.mrb[0].mxu0
      %v3042 = vadd.f32 %v2881, %v3041
      %v3043 = vpop.f32.mrb[0].mxu0
      %v3044 = vpop.f32.mrb[0].mxu0
      %v3045 = vadd.f32 %v2884, %v3044
      %v3046 = vpop.f32.mrb[0].mxu0
      %3047 = vmatprep.mubr.bf16.mxu0 0
      %3048 = vmatmul.mubr.bf16.gmra.mrb[0].mxu0 %v2001
      %v3049 = vpop.f32.mrb[0].mxu0
      %v3050 = vadd.f32 %v2889, %v3049
      %v3051 = vpop.f32.mrb[0].mxu0
      %v3052 = vpop.f32.mrb[0].mxu0
      %v3053 = vadd.f32 %v2892, %v3052
      %v3054 = vpop.f32.mrb[0].mxu0
      %3055 = vmatprep.mubr.bf16.mxu0 0
      %3056 = vmatmul.mubr.bf16.gmra.mrb[0].mxu0 %v2004
      %v3057 = vpop.f32.mrb[0].mxu0
      %v3058 = vadd.f32 %v2897, %v3057
      %v3059 = vpop.f32.mrb[0].mxu0
      %v3060 = vpop.f32.mrb[0].mxu0
      %v3061 = vadd.f32 %v2900, %v3060
      %v3062 = vpop.f32.mrb[0].mxu0
      %3063 = vmatprep.mubr.bf16.mxu0 0
      %3064 = vmatmul.mubr.bf16.gmra.mrb[0].mxu0 %v2007
      %v3065 = vpop.f32.mrb[0].mxu0
      %v3066 = vadd.f32 %v2905, %v3065
      %v3067 = vpop.f32.mrb[0].mxu0
      %v3068 = vpop.f32.mrb[0].mxu0
      %v3069 = vadd.f32 %v2908, %v3068
      %v3070 = vpop.f32.mrb[0].mxu0
      %3071 = vdwg.mxu0
      %v3073 = vshrl.u32 %v1716, 16
      %v3075 = vshll.u32 %v1716, 16
      %v3077 = vrot.slane %v3075, 1
      %v3078 = vor.u32 %v3073, %v3077
      %v3080 = vshll.u32 %v1717, 16
      %v3082 = vrot.slane %v3080, 1
      %v3083 = vsel %vm1718, %v3078, %v3082
      %v3087 = vrot.slane %v1716, 1
      %v3088 = vrot.slane %v1717, 1
      %v3089 = vsel %vm1959, %v3087, %v3088
      %s3091 = scalar_lea.vmem %s6, 384
      %v3092 = vld [vmem:[%s3091] sm:$0xf]
      %v3093 = vld [vmem:[%s3091 + $0x4] sm:$0xf]
      %v3094 = vld [vmem:[%s3091 + $0x8] sm:$0xf]
      %v3095 = vld [vmem:[%s3091 + $0xc] sm:$0xf]
      %v3096 = vld [vmem:[%s3091 + $0x10] sm:$0xf]
      %v3097 = vld [vmem:[%s3091 + $0x14] sm:$0xf]
      %v3098 = vld [vmem:[%s3091 + $0x18] sm:$0xf]
      %v3099 = vld [vmem:[%s3091 + $0x1c] sm:$0xf]
      %v3100 = vld [vmem:[%s3091 + $0x20] sm:$0xf]
      %v3101 = vld [vmem:[%s3091 + $0x24] sm:$0xf]
      %v3102 = vld [vmem:[%s3091 + $0x28] sm:$0xf]
      %v3103 = vld [vmem:[%s3091 + $0x2c] sm:$0xf]
      %v3104 = vld [vmem:[%s3091 + $0x30] sm:$0xf]
      %v3105 = vld [vmem:[%s3091 + $0x34] sm:$0xf]
      %v3106 = vld [vmem:[%s3091 + $0x38] sm:$0xf]
      %v3107 = vld [vmem:[%s3091 + $0x3c] sm:$0xf]
      %v3108 = vld [vmem:[%s3091 + $0x40] sm:$0xf]
      %v3109 = vld [vmem:[%s3091 + $0x44] sm:$0xf]
      %v3110 = vld [vmem:[%s3091 + $0x48] sm:$0xf]
      %v3111 = vld [vmem:[%s3091 + $0x4c] sm:$0xf]
      %v3112 = vld [vmem:[%s3091 + $0x50] sm:$0xf]
      %v3113 = vld [vmem:[%s3091 + $0x54] sm:$0xf]
      %v3114 = vld [vmem:[%s3091 + $0x58] sm:$0xf]
      %v3115 = vld [vmem:[%s3091 + $0x5c] sm:$0xf]
      %v3116 = vld [vmem:[%s3091 + $0x60] sm:$0xf]
      %v3117 = vld [vmem:[%s3091 + $0x64] sm:$0xf]
      %v3118 = vld [vmem:[%s3091 + $0x68] sm:$0xf]
      %v3119 = vld [vmem:[%s3091 + $0x6c] sm:$0xf]
      %v3120 = vld [vmem:[%s3091 + $0x70] sm:$0xf]
      %v3121 = vld [vmem:[%s3091 + $0x74] sm:$0xf]
      %v3122 = vld [vmem:[%s3091 + $0x78] sm:$0xf]
      %v3123 = vld [vmem:[%s3091 + $0x7c] sm:$0xf]
      %v3124 = vld [vmem:[%s3091 + $0x80] sm:$0xf]
      %v3125 = vld [vmem:[%s3091 + $0x84] sm:$0xf]
      %v3126 = vld [vmem:[%s3091 + $0x88] sm:$0xf]
      %v3127 = vld [vmem:[%s3091 + $0x8c] sm:$0xf]
      %v3128 = vld [vmem:[%s3091 + $0x90] sm:$0xf]
      %v3129 = vld [vmem:[%s3091 + $0x94] sm:$0xf]
      %v3130 = vld [vmem:[%s3091 + $0x98] sm:$0xf]
      %v3131 = vld [vmem:[%s3091 + $0x9c] sm:$0xf]
      %v3132 = vld [vmem:[%s3091 + $0xa0] sm:$0xf]
      %v3133 = vld [vmem:[%s3091 + $0xa4] sm:$0xf]
      %v3134 = vld [vmem:[%s3091 + $0xa8] sm:$0xf]
      %v3135 = vld [vmem:[%s3091 + $0xac] sm:$0xf]
      %v3136 = vld [vmem:[%s3091 + $0xb0] sm:$0xf]
      %v3137 = vld [vmem:[%s3091 + $0xb4] sm:$0xf]
      %v3138 = vld [vmem:[%s3091 + $0xb8] sm:$0xf]
      %v3139 = vld [vmem:[%s3091 + $0xbc] sm:$0xf]
      %v3188 = vunpack.c.l.b16 %v3092
      %v3189 = vunpack.c.l.b16 %v3093
      %v3190 = vunpack.c.l.b16 %v3094
      %v3191 = vunpack.c.l.b16 %v3095
      %v3192 = vunpack.c.l.b16 %v3096
      %v3193 = vunpack.c.l.b16 %v3097
      %v3194 = vunpack.c.l.b16 %v3098
      %v3195 = vunpack.c.l.b16 %v3099
      %v3196 = vunpack.c.l.b16 %v3100
      %v3197 = vunpack.c.l.b16 %v3101
      %v3198 = vunpack.c.l.b16 %v3102
      %v3199 = vunpack.c.l.b16 %v3103
      %v3200 = vunpack.c.l.b16 %v3104
      %v3201 = vunpack.c.l.b16 %v3105
      %v3202 = vunpack.c.l.b16 %v3106
      %v3203 = vunpack.c.l.b16 %v3107
      %v3204 = vunpack.c.l.b16 %v3108
      %v3205 = vunpack.c.l.b16 %v3109
      %v3206 = vunpack.c.l.b16 %v3110
      %v3207 = vunpack.c.l.b16 %v3111
      %v3208 = vunpack.c.l.b16 %v3112
      %v3209 = vunpack.c.l.b16 %v3113
      %v3210 = vunpack.c.l.b16 %v3114
      %v3211 = vunpack.c.l.b16 %v3115
      %v3212 = vunpack.c.l.b16 %v3116
      %v3213 = vunpack.c.l.b16 %v3117
      %v3214 = vunpack.c.l.b16 %v3118
      %v3215 = vunpack.c.l.b16 %v3119
      %v3216 = vunpack.c.l.b16 %v3120
      %v3217 = vunpack.c.l.b16 %v3121
      %v3218 = vunpack.c.l.b16 %v3122
      %v3219 = vunpack.c.l.b16 %v3123
      %v3220 = vunpack.c.l.b16 %v3124
      %v3221 = vunpack.c.l.b16 %v3125
      %v3222 = vunpack.c.l.b16 %v3126
      %v3223 = vunpack.c.l.b16 %v3127
      %v3224 = vunpack.c.l.b16 %v3128
      %v3225 = vunpack.c.l.b16 %v3129
      %v3226 = vunpack.c.l.b16 %v3130
      %v3227 = vunpack.c.l.b16 %v3131
      %v3228 = vunpack.c.l.b16 %v3132
      %v3229 = vunpack.c.l.b16 %v3133
      %v3230 = vunpack.c.l.b16 %v3134
      %v3231 = vunpack.c.l.b16 %v3135
      %v3232 = vunpack.c.l.b16 %v3136
      %v3233 = vunpack.c.l.b16 %v3137
      %v3234 = vunpack.c.l.b16 %v3138
      %v3235 = vunpack.c.l.b16 %v3139
      %v3236 = vpack.c.b16 %v3189, %v3188
      %v3237 = vpack.c.b16 %v3191, %v3190
      %v3238 = vpack.c.b16 %v3193, %v3192
      %v3239 = vpack.c.b16 %v3195, %v3194
      %v3240 = vpack.c.b16 %v3197, %v3196
      %v3241 = vpack.c.b16 %v3199, %v3198
      %v3242 = vpack.c.b16 %v3201, %v3200
      %v3243 = vpack.c.b16 %v3203, %v3202
      %v3244 = vpack.c.b16 %v3205, %v3204
      %v3245 = vpack.c.b16 %v3207, %v3206
      %v3246 = vpack.c.b16 %v3209, %v3208
      %v3247 = vpack.c.b16 %v3211, %v3210
      %v3248 = vpack.c.b16 %v3213, %v3212
      %v3249 = vpack.c.b16 %v3215, %v3214
      %v3250 = vpack.c.b16 %v3217, %v3216
      %v3251 = vpack.c.b16 %v3219, %v3218
      %v3252 = vpack.c.b16 %v3221, %v3220
      %v3253 = vpack.c.b16 %v3223, %v3222
      %v3254 = vpack.c.b16 %v3225, %v3224
      %v3255 = vpack.c.b16 %v3227, %v3226
      %v3256 = vpack.c.b16 %v3229, %v3228
      %v3257 = vpack.c.b16 %v3231, %v3230
      %v3258 = vpack.c.b16 %v3233, %v3232
      %v3259 = vpack.c.b16 %v3235, %v3234
      %3284 = vmatprep.subr.bf16.mxu0 0
      %3285 = vmatpush1.bf16.msra.mxu0 %v3236
      %3286 = vmatprep.subr.bf16.mxu0 0
      %3287 = vmatpush1.bf16.msra.mxu0 %v3237
      %3288 = vmatprep.subr.bf16.mxu0 0
      %3289 = vmatpush1.bf16.msra.mxu0 %v3238
      %3290 = vmatprep.subr.bf16.mxu0 0
      %3291 = vmatpush1.bf16.msra.mxu0 %v3239
      %3292 = vmatprep.subr.bf16.mxu0 0
      %3293 = vmatpush1.bf16.msra.mxu0 %v3240
      %3294 = vmatprep.subr.bf16.mxu0 0
      %3295 = vmatpush1.bf16.msra.mxu0 %v3241
      %3296 = vmatprep.subr.bf16.mxu0 0
      %3297 = vmatpush1.bf16.msra.mxu0 %v3242
      %3298 = vmatprep.subr.bf16.mxu0 0
      %3299 = vmatpush1.bf16.msra.mxu0 %v3243
      %3300 = vmatprep.subr.bf16.mxu0 0
      %3301 = vmatpush1.bf16.msra.mxu0 %v3244
      %3302 = vmatprep.subr.bf16.mxu0 0
      %3303 = vmatpush1.bf16.msra.mxu0 %v3245
      %3304 = vmatprep.subr.bf16.mxu0 0
      %3305 = vmatpush1.bf16.msra.mxu0 %v3246
      %3306 = vmatprep.subr.bf16.mxu0 0
      %3307 = vmatpush1.bf16.msra.mxu0 %v3247
      %3308 = vmatprep.subr.bf16.mxu0 0
      %3309 = vmatpush1.bf16.msra.mxu0 %v3248
      %3310 = vmatprep.subr.bf16.mxu0 0
      %3311 = vmatpush1.bf16.msra.mxu0 %v3249
      %3312 = vmatprep.subr.bf16.mxu0 0
      %3313 = vmatpush1.bf16.msra.mxu0 %v3250
      %3314 = vmatprep.subr.bf16.mxu0 0
      %3315 = vmatpush1.bf16.msra.mxu0 %v3251
      %3316 = vmatprep.mubr.bf16.mxu0 %v1754
      %3317 = vmatmul.mubr.bf16.gmra.mrb[0].mxu0 %v1686
      %v3318 = vpop.f32.mrb[0].mxu0
      %v3319 = vadd.f32 0.0, %v3318
      %v3320 = vpop.f32.mrb[0].mxu0
      %v3321 = vpop.f32.mrb[0].mxu0
      %v3322 = vadd.f32 0.0, %v3321
      %v3323 = vpop.f32.mrb[0].mxu0
      %3324 = vmatprep.mubr.bf16.mxu0 %v1766
      %3325 = vmatmul.mubr.bf16.gmra.mrb[0].mxu0 %v1688
      %v3326 = vpop.f32.mrb[0].mxu0
      %v3327 = vadd.f32 0.0, %v3326
      %v3328 = vpop.f32.mrb[0].mxu0
      %v3329 = vpop.f32.mrb[0].mxu0
      %v3330 = vadd.f32 0.0, %v3329
      %v3331 = vpop.f32.mrb[0].mxu0
      %3332 = vmatprep.mubr.bf16.mxu0 %v1778
      %3333 = vmatmul.mubr.bf16.gmra.mrb[0].mxu0 %v1690
      %v3334 = vpop.f32.mrb[0].mxu0
      %v3335 = vadd.f32 0.0, %v3334
      %v3336 = vpop.f32.mrb[0].mxu0
      %v3337 = vpop.f32.mrb[0].mxu0
      %v3338 = vadd.f32 0.0, %v3337
      %v3339 = vpop.f32.mrb[0].mxu0
      %3340 = vmatprep.mubr.bf16.mxu0 %v1790
      %3341 = vmatmul.mubr.bf16.gmra.mrb[0].mxu0 %v1692
      %v3342 = vpop.f32.mrb[0].mxu0
      %v3343 = vadd.f32 0.0, %v3342
      %v3344 = vpop.f32.mrb[0].mxu0
      %v3345 = vpop.f32.mrb[0].mxu0
      %v3346 = vadd.f32 0.0, %v3345
      %v3347 = vpop.f32.mrb[0].mxu0
      %3348 = vmatprep.mubr.bf16.mxu0 %v1802
      %3349 = vmatmul.mubr.bf16.gmra.mrb[0].mxu0 %v1694
      %v3350 = vpop.f32.mrb[0].mxu0
      %v3351 = vadd.f32 0.0, %v3350
      %v3352 = vpop.f32.mrb[0].mxu0
      %v3353 = vpop.f32.mrb[0].mxu0
      %v3354 = vadd.f32 0.0, %v3353
      %v3355 = vpop.f32.mrb[0].mxu0
      %3356 = vmatprep.mubr.bf16.mxu0 %v1814
      %3357 = vmatmul.mubr.bf16.gmra.mrb[0].mxu0 %v1696
      %v3358 = vpop.f32.mrb[0].mxu0
      %v3359 = vadd.f32 0.0, %v3358
      %v3360 = vpop.f32.mrb[0].mxu0
      %v3361 = vpop.f32.mrb[0].mxu0
      %v3362 = vadd.f32 0.0, %v3361
      %v3363 = vpop.f32.mrb[0].mxu0
      %3364 = vmatprep.mubr.bf16.mxu0 %v1826
      %3365 = vmatmul.mubr.bf16.gmra.mrb[0].mxu0 %v1698
      %v3366 = vpop.f32.mrb[0].mxu0
      %v3367 = vadd.f32 0.0, %v3366
      %v3368 = vpop.f32.mrb[0].mxu0
      %v3369 = vpop.f32.mrb[0].mxu0
      %v3370 = vadd.f32 0.0, %v3369
      %v3371 = vpop.f32.mrb[0].mxu0
      %3372 = vmatprep.mubr.bf16.mxu0 %v1838
      %3373 = vmatmul.mubr.bf16.gmra.mrb[0].mxu0 %v1700
      %v3374 = vpop.f32.mrb[0].mxu0
      %v3375 = vadd.f32 0.0, %v3374
      %v3376 = vpop.f32.mrb[0].mxu0
      %v3377 = vpop.f32.mrb[0].mxu0
      %v3378 = vadd.f32 0.0, %v3377
      %v3379 = vpop.f32.mrb[0].mxu0
      %3380 = vmatprep.mubr.bf16.mxu0 %v1850
      %3381 = vmatmul.mubr.bf16.gmra.mrb[0].mxu0 %v1702
      %v3382 = vpop.f32.mrb[0].mxu0
      %v3383 = vadd.f32 0.0, %v3382
      %v3384 = vpop.f32.mrb[0].mxu0
      %v3385 = vpop.f32.mrb[0].mxu0
      %v3386 = vadd.f32 0.0, %v3385
      %v3387 = vpop.f32.mrb[0].mxu0
      %3388 = vmatprep.mubr.bf16.mxu0 %v1862
      %3389 = vmatmul.mubr.bf16.gmra.mrb[0].mxu0 %v1704
      %v3390 = vpop.f32.mrb[0].mxu0
      %v3391 = vadd.f32 0.0, %v3390
      %v3392 = vpop.f32.mrb[0].mxu0
      %v3393 = vpop.f32.mrb[0].mxu0
      %v3394 = vadd.f32 0.0, %v3393
      %v3395 = vpop.f32.mrb[0].mxu0
      %3396 = vmatprep.mubr.bf16.mxu0 %v1874
      %3397 = vmatmul.mubr.bf16.gmra.mrb[0].mxu0 %v1706
      %v3398 = vpop.f32.mrb[0].mxu0
      %v3399 = vadd.f32 0.0, %v3398
      %v3400 = vpop.f32.mrb[0].mxu0
      %v3401 = vpop.f32.mrb[0].mxu0
      %v3402 = vadd.f32 0.0, %v3401
      %v3403 = vpop.f32.mrb[0].mxu0
      %3404 = vmatprep.mubr.bf16.mxu0 %v1886
      %3405 = vmatmul.mubr.bf16.gmra.mrb[0].mxu0 %v1708
      %v3406 = vpop.f32.mrb[0].mxu0
      %v3407 = vadd.f32 0.0, %v3406
      %v3408 = vpop.f32.mrb[0].mxu0
      %v3409 = vpop.f32.mrb[0].mxu0
      %v3410 = vadd.f32 0.0, %v3409
      %v3411 = vpop.f32.mrb[0].mxu0
      %3412 = vmatprep.mubr.bf16.mxu0 %v1898
      %3413 = vmatmul.mubr.bf16.gmra.mrb[0].mxu0 %v1710
      %v3414 = vpop.f32.mrb[0].mxu0
      %v3415 = vadd.f32 0.0, %v3414
      %v3416 = vpop.f32.mrb[0].mxu0
      %v3417 = vpop.f32.mrb[0].mxu0
      %v3418 = vadd.f32 0.0, %v3417
      %v3419 = vpop.f32.mrb[0].mxu0
      %3420 = vmatprep.mubr.bf16.mxu0 %v1910
      %3421 = vmatmul.mubr.bf16.gmra.mrb[0].mxu0 %v1712
      %v3422 = vpop.f32.mrb[0].mxu0
      %v3423 = vadd.f32 0.0, %v3422
      %v3424 = vpop.f32.mrb[0].mxu0
      %v3425 = vpop.f32.mrb[0].mxu0
      %v3426 = vadd.f32 0.0, %v3425
      %v3427 = vpop.f32.mrb[0].mxu0
      %3428 = vmatprep.mubr.bf16.mxu0 %v2083
      %3429 = vmatmul.mubr.bf16.gmra.mrb[0].mxu0 %v1714
      %v3430 = vpop.f32.mrb[0].mxu0
      %v3431 = vadd.f32 0.0, %v3430
      %v3432 = vpop.f32.mrb[0].mxu0
      %v3433 = vpop.f32.mrb[0].mxu0
      %v3434 = vadd.f32 0.0, %v3433
      %v3435 = vpop.f32.mrb[0].mxu0
      %3436 = vmatprep.mubr.bf16.mxu0 %v3083
      %3437 = vmatmul.mubr.bf16.gmra.mrb[0].mxu0 %v1716
      %v3438 = vpop.f32.mrb[0].mxu0
      %v3439 = vadd.f32 0.0, %v3438
      %v3440 = vpop.f32.mrb[0].mxu0
      %v3441 = vpop.f32.mrb[0].mxu0
      %v3442 = vadd.f32 0.0, %v3441
      %v3443 = vpop.f32.mrb[0].mxu0
      %3444 = vdwg.mxu0
      %3445 = vmatprep.subr.bf16.mxu0 0
      %3446 = vmatpush1.bf16.msra.mxu0 %v3252
      %3447 = vmatprep.subr.bf16.mxu0 0
      %3448 = vmatpush1.bf16.msra.mxu0 %v3253
      %3449 = vmatprep.subr.bf16.mxu0 0
      %3450 = vmatpush1.bf16.msra.mxu0 %v3254
      %3451 = vmatprep.subr.bf16.mxu0 0
      %3452 = vmatpush1.bf16.msra.mxu0 %v3255
      %3453 = vmatprep.subr.bf16.mxu0 0
      %3454 = vmatpush1.bf16.msra.mxu0 %v3256
      %3455 = vmatprep.subr.bf16.mxu0 0
      %3456 = vmatpush1.bf16.msra.mxu0 %v3257
      %3457 = vmatprep.subr.bf16.mxu0 0
      %3458 = vmatpush1.bf16.msra.mxu0 %v3258
      %3459 = vmatprep.subr.bf16.mxu0 0
      %3460 = vmatpush1.bf16.msra.mxu0 %v3259
      %3461 = vmatprep.subr.bf16.mxu0 0
      %3462 = vmatpush1.bf16.msra.mxu0 0
      %3463 = vmatprep.subr.bf16.mxu0 0
      %3464 = vmatpush1.bf16.msra.mxu0 0
      %3465 = vmatprep.subr.bf16.mxu0 0
      %3466 = vmatpush1.bf16.msra.mxu0 0
      %3467 = vmatprep.subr.bf16.mxu0 0
      %3468 = vmatpush1.bf16.msra.mxu0 0
      %3469 = vmatprep.subr.bf16.mxu0 0
      %3470 = vmatpush1.bf16.msra.mxu0 0
      %3471 = vmatprep.subr.bf16.mxu0 0
      %3472 = vmatpush1.bf16.msra.mxu0 0
      %3473 = vmatprep.subr.bf16.mxu0 0
      %3474 = vmatpush1.bf16.msra.mxu0 0
      %3475 = vmatprep.subr.bf16.mxu0 0
      %3476 = vmatpush1.bf16.msra.mxu0 0
      %3477 = vmatprep.mubr.bf16.mxu0 0
      %3478 = vmatmul.mubr.bf16.gmra.mrb[0].mxu0 %v1968
      %v3479 = vpop.f32.mrb[0].mxu0
      %v3480 = vadd.f32 %v3319, %v3479
      %v3481 = vpop.f32.mrb[0].mxu0
      %v3482 = vpop.f32.mrb[0].mxu0
      %v3483 = vadd.f32 %v3322, %v3482
      %v3484 = vpop.f32.mrb[0].mxu0
      %3485 = vmatprep.mubr.bf16.mxu0 0
      %3486 = vmatmul.mubr.bf16.gmra.mrb[0].mxu0 %v1971
      %v3487 = vpop.f32.mrb[0].mxu0
      %v3488 = vadd.f32 %v3327, %v3487
      %v3489 = vpop.f32.mrb[0].mxu0
      %v3490 = vpop.f32.mrb[0].mxu0
      %v3491 = vadd.f32 %v3330, %v3490
      %v3492 = vpop.f32.mrb[0].mxu0
      %3493 = vmatprep.mubr.bf16.mxu0 0
      %3494 = vmatmul.mubr.bf16.gmra.mrb[0].mxu0 %v1974
      %v3495 = vpop.f32.mrb[0].mxu0
      %v3496 = vadd.f32 %v3335, %v3495
      %v3497 = vpop.f32.mrb[0].mxu0
      %v3498 = vpop.f32.mrb[0].mxu0
      %v3499 = vadd.f32 %v3338, %v3498
      %v3500 = vpop.f32.mrb[0].mxu0
      %3501 = vmatprep.mubr.bf16.mxu0 0
      %3502 = vmatmul.mubr.bf16.gmra.mrb[0].mxu0 %v1977
      %v3503 = vpop.f32.mrb[0].mxu0
      %v3504 = vadd.f32 %v3343, %v3503
      %v3505 = vpop.f32.mrb[0].mxu0
      %v3506 = vpop.f32.mrb[0].mxu0
      %v3507 = vadd.f32 %v3346, %v3506
      %v3508 = vpop.f32.mrb[0].mxu0
      %3509 = vmatprep.mubr.bf16.mxu0 0
      %3510 = vmatmul.mubr.bf16.gmra.mrb[0].mxu0 %v1980
      %v3511 = vpop.f32.mrb[0].mxu0
      %v3512 = vadd.f32 %v3351, %v3511
      %v3513 = vpop.f32.mrb[0].mxu0
      %v3514 = vpop.f32.mrb[0].mxu0
      %v3515 = vadd.f32 %v3354, %v3514
      %v3516 = vpop.f32.mrb[0].mxu0
      %3517 = vmatprep.mubr.bf16.mxu0 0
      %3518 = vmatmul.mubr.bf16.gmra.mrb[0].mxu0 %v1983
      %v3519 = vpop.f32.mrb[0].mxu0
      %v3520 = vadd.f32 %v3359, %v3519
      %v3521 = vpop.f32.mrb[0].mxu0
      %v3522 = vpop.f32.mrb[0].mxu0
      %v3523 = vadd.f32 %v3362, %v3522
      %v3524 = vpop.f32.mrb[0].mxu0
      %3525 = vmatprep.mubr.bf16.mxu0 0
      %3526 = vmatmul.mubr.bf16.gmra.mrb[0].mxu0 %v1986
      %v3527 = vpop.f32.mrb[0].mxu0
      %v3528 = vadd.f32 %v3367, %v3527
      %v3529 = vpop.f32.mrb[0].mxu0
      %v3530 = vpop.f32.mrb[0].mxu0
      %v3531 = vadd.f32 %v3370, %v3530
      %v3532 = vpop.f32.mrb[0].mxu0
      %3533 = vmatprep.mubr.bf16.mxu0 0
      %3534 = vmatmul.mubr.bf16.gmra.mrb[0].mxu0 %v1989
      %v3535 = vpop.f32.mrb[0].mxu0
      %v3536 = vadd.f32 %v3375, %v3535
      %v3537 = vpop.f32.mrb[0].mxu0
      %v3538 = vpop.f32.mrb[0].mxu0
      %v3539 = vadd.f32 %v3378, %v3538
      %v3540 = vpop.f32.mrb[0].mxu0
      %3541 = vmatprep.mubr.bf16.mxu0 0
      %3542 = vmatmul.mubr.bf16.gmra.mrb[0].mxu0 %v1992
      %v3543 = vpop.f32.mrb[0].mxu0
      %v3544 = vadd.f32 %v3383, %v3543
      %v3545 = vpop.f32.mrb[0].mxu0
      %v3546 = vpop.f32.mrb[0].mxu0
      %v3547 = vadd.f32 %v3386, %v3546
      %v3548 = vpop.f32.mrb[0].mxu0
      %3549 = vmatprep.mubr.bf16.mxu0 0
      %3550 = vmatmul.mubr.bf16.gmra.mrb[0].mxu0 %v1995
      %v3551 = vpop.f32.mrb[0].mxu0
      %v3552 = vadd.f32 %v3391, %v3551
      %v3553 = vpop.f32.mrb[0].mxu0
      %v3554 = vpop.f32.mrb[0].mxu0
      %v3555 = vadd.f32 %v3394, %v3554
      %v3556 = vpop.f32.mrb[0].mxu0
      %3557 = vmatprep.mubr.bf16.mxu0 0
      %3558 = vmatmul.mubr.bf16.gmra.mrb[0].mxu0 %v1998
      %v3559 = vpop.f32.mrb[0].mxu0
      %v3560 = vadd.f32 %v3399, %v3559
      %v3561 = vpop.f32.mrb[0].mxu0
      %v3562 = vpop.f32.mrb[0].mxu0
      %v3563 = vadd.f32 %v3402, %v3562
      %v3564 = vpop.f32.mrb[0].mxu0
      %3565 = vmatprep.mubr.bf16.mxu0 0
      %3566 = vmatmul.mubr.bf16.gmra.mrb[0].mxu0 %v2001
      %v3567 = vpop.f32.mrb[0].mxu0
      %v3568 = vadd.f32 %v3407, %v3567
      %v3569 = vpop.f32.mrb[0].mxu0
      %v3570 = vpop.f32.mrb[0].mxu0
      %v3571 = vadd.f32 %v3410, %v3570
      %v3572 = vpop.f32.mrb[0].mxu0
      %3573 = vmatprep.mubr.bf16.mxu0 0
      %3574 = vmatmul.mubr.bf16.gmra.mrb[0].mxu0 %v2004
      %v3575 = vpop.f32.mrb[0].mxu0
      %v3576 = vadd.f32 %v3415, %v3575
      %v3577 = vpop.f32.mrb[0].mxu0
      %v3578 = vpop.f32.mrb[0].mxu0
      %v3579 = vadd.f32 %v3418, %v3578
      %v3580 = vpop.f32.mrb[0].mxu0
      %3581 = vmatprep.mubr.bf16.mxu0 0
      %3582 = vmatmul.mubr.bf16.gmra.mrb[0].mxu0 %v2007
      %v3583 = vpop.f32.mrb[0].mxu0
      %v3584 = vadd.f32 %v3423, %v3583
      %v3585 = vpop.f32.mrb[0].mxu0
      %v3586 = vpop.f32.mrb[0].mxu0
      %v3587 = vadd.f32 %v3426, %v3586
      %v3588 = vpop.f32.mrb[0].mxu0
      %3589 = vmatprep.mubr.bf16.mxu0 0
      %3590 = vmatmul.mubr.bf16.gmra.mrb[0].mxu0 %v2089
      %v3591 = vpop.f32.mrb[0].mxu0
      %v3592 = vadd.f32 %v3431, %v3591
      %v3593 = vpop.f32.mrb[0].mxu0
      %v3594 = vpop.f32.mrb[0].mxu0
      %v3595 = vadd.f32 %v3434, %v3594
      %v3596 = vpop.f32.mrb[0].mxu0
      %3597 = vmatprep.mubr.bf16.mxu0 0
      %3598 = vmatmul.mubr.bf16.gmra.mrb[0].mxu0 %v3089
      %v3599 = vpop.f32.mrb[0].mxu0
      %v3600 = vadd.f32 %v3439, %v3599
      %v3601 = vpop.f32.mrb[0].mxu0
      %v3602 = vpop.f32.mrb[0].mxu0
      %v3603 = vadd.f32 %v3442, %v3602
      %v3604 = vpop.f32.mrb[0].mxu0
      %3605 = vdwg.mxu0
      %v3606 = vadd.f32 %v2946, %v3480
      %v3607 = vadd.f32 %v2949, %v3483
      %v3608 = vadd.f32 %v2954, %v3488
      %v3609 = vadd.f32 %v2957, %v3491
      %v3610 = vadd.f32 %v2962, %v3496
      %v3611 = vadd.f32 %v2965, %v3499
      %v3612 = vadd.f32 %v2970, %v3504
      %v3613 = vadd.f32 %v2973, %v3507
      %v3614 = vadd.f32 %v2978, %v3512
      %v3615 = vadd.f32 %v2981, %v3515
      %v3616 = vadd.f32 %v2986, %v3520
      %v3617 = vadd.f32 %v2989, %v3523
      %v3618 = vadd.f32 %v2994, %v3528
      %v3619 = vadd.f32 %v2997, %v3531
      %v3620 = vadd.f32 %v3002, %v3536
      %v3621 = vadd.f32 %v3005, %v3539
      %v3622 = vadd.f32 %v3010, %v3544
      %v3623 = vadd.f32 %v3013, %v3547
      %v3624 = vadd.f32 %v3018, %v3552
      %v3625 = vadd.f32 %v3021, %v3555
      %v3626 = vadd.f32 %v3026, %v3560
      %v3627 = vadd.f32 %v3029, %v3563
      %v3628 = vadd.f32 %v3034, %v3568
      %v3629 = vadd.f32 %v3037, %v3571
      %v3630 = vadd.f32 %v3042, %v3576
      %v3631 = vadd.f32 %v3045, %v3579
      %v3632 = vadd.f32 %v3050, %v3584
      %v3633 = vadd.f32 %v3053, %v3587
      %v3634 = vadd.f32 %v3058, %v3592
      %v3635 = vadd.f32 %v3061, %v3595
      %v3636 = vadd.f32 %v3066, %v3600
      %v3637 = vadd.f32 %v3069, %v3603
      %v3638 = vld [vmem:[%s7] sm:$0x1]
      %v3640 = vlaneseq
      %v3641 = vshrl.u32 %v3640, 7
      %v3642 = vsub.s32 0, %v3641
      %v3643 = vrot.slane %v3638, %v3642
      %v3645 = vmul.f32 %v3606, %v3643
      %v3646 = vmul.f32 %v3607, %v3643
      %v3647 = vmul.f32 %v3608, %v3643
      %v3648 = vmul.f32 %v3609, %v3643
      %v3649 = vmul.f32 %v3610, %v3643
      %v3650 = vmul.f32 %v3611, %v3643
      %v3651 = vmul.f32 %v3612, %v3643
      %v3652 = vmul.f32 %v3613, %v3643
      %v3653 = vmul.f32 %v3614, %v3643
      %v3654 = vmul.f32 %v3615, %v3643
      %v3655 = vmul.f32 %v3616, %v3643
      %v3656 = vmul.f32 %v3617, %v3643
      %v3657 = vmul.f32 %v3618, %v3643
      %v3658 = vmul.f32 %v3619, %v3643
      %v3659 = vmul.f32 %v3620, %v3643
      %v3660 = vmul.f32 %v3621, %v3643
      %v3661 = vmul.f32 %v3622, %v3643
      %v3662 = vmul.f32 %v3623, %v3643
      %v3663 = vmul.f32 %v3624, %v3643
      %v3664 = vmul.f32 %v3625, %v3643
      %v3665 = vmul.f32 %v3626, %v3643
      %v3666 = vmul.f32 %v3627, %v3643
      %v3667 = vmul.f32 %v3628, %v3643
      %v3668 = vmul.f32 %v3629, %v3643
      %v3669 = vmul.f32 %v3630, %v3643
      %v3670 = vmul.f32 %v3631, %v3643
      %v3671 = vmul.f32 %v3632, %v3643
      %v3672 = vmul.f32 %v3633, %v3643
      %v3673 = vmul.f32 %v3634, %v3643
      %v3674 = vmul.f32 %v3635, %v3643
      %v3675 = vmul.f32 %v3636, %v3643
      %v3676 = vmul.f32 %v3637, %v3643
      %v3677 = vld [vmem:[%s8] sm:$0x1]
      %v3679 = vlaneseq
      %v3680 = vshrl.u32 %v3679, 7
      %v3681 = vsub.s32 0, %v3680
      %v3682 = vrot.slane %v3677, %v3681
      %v3684 = vadd.f32 %v3645, %v3682
      %v3685 = vadd.f32 %v3646, %v3682
      %v3686 = vadd.f32 %v3647, %v3682
      %v3687 = vadd.f32 %v3648, %v3682
      %v3688 = vadd.f32 %v3649, %v3682
      %v3689 = vadd.f32 %v3650, %v3682
      %v3690 = vadd.f32 %v3651, %v3682
      %v3691 = vadd.f32 %v3652, %v3682
      %v3692 = vadd.f32 %v3653, %v3682
      %v3693 = vadd.f32 %v3654, %v3682
      %v3694 = vadd.f32 %v3655, %v3682
      %v3695 = vadd.f32 %v3656, %v3682
      %v3696 = vadd.f32 %v3657, %v3682
      %v3697 = vadd.f32 %v3658, %v3682
      %v3698 = vadd.f32 %v3659, %v3682
      %v3699 = vadd.f32 %v3660, %v3682
      %v3700 = vadd.f32 %v3661, %v3682
      %v3701 = vadd.f32 %v3662, %v3682
      %v3702 = vadd.f32 %v3663, %v3682
      %v3703 = vadd.f32 %v3664, %v3682
      %v3704 = vadd.f32 %v3665, %v3682
      %v3705 = vadd.f32 %v3666, %v3682
      %v3706 = vadd.f32 %v3667, %v3682
      %v3707 = vadd.f32 %v3668, %v3682
      %v3708 = vadd.f32 %v3669, %v3682
      %v3709 = vadd.f32 %v3670, %v3682
      %v3710 = vadd.f32 %v3671, %v3682
      %v3711 = vadd.f32 %v3672, %v3682
      %v3712 = vadd.f32 %v3673, %v3682
      %v3713 = vadd.f32 %v3674, %v3682
      %v3714 = vadd.f32 %v3675, %v3682
      %v3715 = vadd.f32 %v3676, %v3682
      %v3716 = vmax.f32 %v3684, 0.0
      %v3717 = vmax.f32 %v3685, 0.0
      %v3718 = vmax.f32 %v3686, 0.0
      %v3719 = vmax.f32 %v3687, 0.0
      %v3720 = vmax.f32 %v3688, 0.0
      %v3721 = vmax.f32 %v3689, 0.0
      %v3722 = vmax.f32 %v3690, 0.0
      %v3723 = vmax.f32 %v3691, 0.0
      %v3724 = vmax.f32 %v3692, 0.0
      %v3725 = vmax.f32 %v3693, 0.0
      %v3726 = vmax.f32 %v3694, 0.0
      %v3727 = vmax.f32 %v3695, 0.0
      %v3728 = vmax.f32 %v3696, 0.0
      %v3729 = vmax.f32 %v3697, 0.0
      %v3730 = vmax.f32 %v3698, 0.0
      %v3731 = vmax.f32 %v3699, 0.0
      %v3732 = vmax.f32 %v3700, 0.0
      %v3733 = vmax.f32 %v3701, 0.0
      %v3734 = vmax.f32 %v3702, 0.0
      %v3735 = vmax.f32 %v3703, 0.0
      %v3736 = vmax.f32 %v3704, 0.0
      %v3737 = vmax.f32 %v3705, 0.0
      %v3738 = vmax.f32 %v3706, 0.0
      %v3739 = vmax.f32 %v3707, 0.0
      %v3740 = vmax.f32 %v3708, 0.0
      %v3741 = vmax.f32 %v3709, 0.0
      %v3742 = vmax.f32 %v3710, 0.0
      %v3743 = vmax.f32 %v3711, 0.0
      %v3744 = vmax.f32 %v3712, 0.0
      %v3745 = vmax.f32 %v3713, 0.0
      %v3746 = vmax.f32 %v3714, 0.0
      %v3747 = vmax.f32 %v3715, 0.0
      %v3748 = vpack.c.bf16 %v3717, %v3716
      %v3749 = vpack.c.bf16 %v3719, %v3718
      %v3750 = vpack.c.bf16 %v3721, %v3720
      %v3751 = vpack.c.bf16 %v3723, %v3722
      %v3752 = vpack.c.bf16 %v3725, %v3724
      %v3753 = vpack.c.bf16 %v3727, %v3726
      %v3754 = vpack.c.bf16 %v3729, %v3728
      %v3755 = vpack.c.bf16 %v3731, %v3730
      %v3756 = vpack.c.bf16 %v3733, %v3732
      %v3757 = vpack.c.bf16 %v3735, %v3734
      %v3758 = vpack.c.bf16 %v3737, %v3736
      %v3759 = vpack.c.bf16 %v3739, %v3738
      %v3760 = vpack.c.bf16 %v3741, %v3740
      %v3761 = vpack.c.bf16 %v3743, %v3742
      %v3762 = vpack.c.bf16 %v3745, %v3744
      %v3763 = vpack.c.bf16 %v3747, %v3746
      %v3764 = vld [vmem:[%s9] sm:$0xf]
      %v3765 = vld [vmem:[%s9 + $0x4] sm:$0xf]
      %v3766 = vld [vmem:[%s9 + $0x8] sm:$0xf]
      %v3767 = vld [vmem:[%s9 + $0xc] sm:$0xf]
      %v3768 = vld [vmem:[%s9 + $0x10] sm:$0xf]
      %v3769 = vld [vmem:[%s9 + $0x14] sm:$0xf]
      %v3770 = vld [vmem:[%s9 + $0x18] sm:$0xf]
      %v3771 = vld [vmem:[%s9 + $0x1c] sm:$0xf]
      %v3772 = vld [vmem:[%s9 + $0x20] sm:$0xf]
      %v3773 = vld [vmem:[%s9 + $0x24] sm:$0xf]
      %v3774 = vld [vmem:[%s9 + $0x28] sm:$0xf]
      %v3775 = vld [vmem:[%s9 + $0x2c] sm:$0xf]
      %v3776 = vld [vmem:[%s9 + $0x30] sm:$0xf]
      %v3777 = vld [vmem:[%s9 + $0x34] sm:$0xf]
      %v3778 = vld [vmem:[%s9 + $0x38] sm:$0xf]
      %v3779 = vld [vmem:[%s9 + $0x3c] sm:$0xf]
      %v3780 = vld [vmem:[%s10] sm:$0x1]
      %v3782 = vlaneseq
      %v3783 = vshrl.u32 %v3782, 7
      %v3784 = vsub.s32 0, %v3783
      %v3785 = vrot.slane %v3780, %v3784
      %v3803 = vunpack.c.l.b16 %v3764
      %v3804 = vunpack.c.l.b16 %v3765
      %v3805 = vunpack.c.l.b16 %v3766
      %v3806 = vunpack.c.l.b16 %v3767
      %v3807 = vunpack.c.l.b16 %v3768
      %v3808 = vunpack.c.l.b16 %v3769
      %v3809 = vunpack.c.l.b16 %v3770
      %v3810 = vunpack.c.l.b16 %v3771
      %v3811 = vunpack.c.l.b16 %v3772
      %v3812 = vunpack.c.l.b16 %v3773
      %v3813 = vunpack.c.l.b16 %v3774
      %v3814 = vunpack.c.l.b16 %v3775
      %v3815 = vunpack.c.l.b16 %v3776
      %v3816 = vunpack.c.l.b16 %v3777
      %v3817 = vunpack.c.l.b16 %v3778
      %v3818 = vunpack.c.l.b16 %v3779
      %v3819 = vpack.c.b16 %v3804, %v3803
      %v3820 = vpack.c.b16 %v3806, %v3805
      %v3821 = vpack.c.b16 %v3808, %v3807
      %v3822 = vpack.c.b16 %v3810, %v3809
      %v3823 = vpack.c.b16 %v3812, %v3811
      %v3824 = vpack.c.b16 %v3814, %v3813
      %v3825 = vpack.c.b16 %v3816, %v3815
      %v3826 = vpack.c.b16 %v3818, %v3817
      %3835 = vmatprep.subr.bf16.mxu0 0
      %3836 = vmatpush1.bf16.msra.mxu0 %v3819
      %3837 = vmatprep.subr.bf16.mxu0 0
      %3838 = vmatpush1.bf16.msra.mxu0 %v3820
      %3839 = vmatprep.subr.bf16.mxu0 0
      %3840 = vmatpush1.bf16.msra.mxu0 %v3821
      %3841 = vmatprep.subr.bf16.mxu0 0
      %3842 = vmatpush1.bf16.msra.mxu0 %v3822
      %3843 = vmatprep.subr.bf16.mxu0 0
      %3844 = vmatpush1.bf16.msra.mxu0 %v3823
      %3845 = vmatprep.subr.bf16.mxu0 0
      %3846 = vmatpush1.bf16.msra.mxu0 %v3824
      %3847 = vmatprep.subr.bf16.mxu0 0
      %3848 = vmatpush1.bf16.msra.mxu0 %v3825
      %3849 = vmatprep.subr.bf16.mxu0 0
      %3850 = vmatpush1.bf16.msra.mxu0 %v3826
      %3851 = vmatprep.subr.bf16.mxu0 0
      %3852 = vmatpush1.bf16.msra.mxu0 0
      %3853 = vmatprep.subr.bf16.mxu0 0
      %3854 = vmatpush1.bf16.msra.mxu0 0
      %3855 = vmatprep.subr.bf16.mxu0 0
      %3856 = vmatpush1.bf16.msra.mxu0 0
      %3857 = vmatprep.subr.bf16.mxu0 0
      %3858 = vmatpush1.bf16.msra.mxu0 0
      %3859 = vmatprep.subr.bf16.mxu0 0
      %3860 = vmatpush1.bf16.msra.mxu0 0
      %3861 = vmatprep.subr.bf16.mxu0 0
      %3862 = vmatpush1.bf16.msra.mxu0 0
      %3863 = vmatprep.subr.bf16.mxu0 0
      %3864 = vmatpush1.bf16.msra.mxu0 0
      %3865 = vmatprep.subr.bf16.mxu0 0
      %3866 = vmatpush1.bf16.msra.mxu0 0
      %3867 = vmatprep.mubr.bf16.mxu0 0
      %3868 = vmatmul.mubr.bf16.gmra.mrb[0].mxu0 %v3748
      %v3869 = vpop.f32.mrb[0].mxu0
      %v3870 = vadd.f32 %v3785, %v3869
      %v3871 = vpop.f32.mrb[0].mxu0
      %v3872 = vpop.f32.mrb[0].mxu0
      %v3873 = vadd.f32 %v3785, %v3872
      %v3874 = vpop.f32.mrb[0].mxu0
      %3875 = vmatprep.mubr.bf16.mxu0 0
      %3876 = vmatmul.mubr.bf16.gmra.mrb[0].mxu0 %v3749
      %v3877 = vpop.f32.mrb[0].mxu0
      %v3878 = vadd.f32 %v3785, %v3877
      %v3879 = vpop.f32.mrb[0].mxu0
      %v3880 = vpop.f32.mrb[0].mxu0
      %v3881 = vadd.f32 %v3785, %v3880
      %v3882 = vpop.f32.mrb[0].mxu0
      %3883 = vmatprep.mubr.bf16.mxu0 0
      %3884 = vmatmul.mubr.bf16.gmra.mrb[0].mxu0 %v3750
      %v3885 = vpop.f32.mrb[0].mxu0
      %v3886 = vadd.f32 %v3785, %v3885
      %v3887 = vpop.f32.mrb[0].mxu0
      %v3888 = vpop.f32.mrb[0].mxu0
      %v3889 = vadd.f32 %v3785, %v3888
      %v3890 = vpop.f32.mrb[0].mxu0
      %3891 = vmatprep.mubr.bf16.mxu0 0
      %3892 = vmatmul.mubr.bf16.gmra.mrb[0].mxu0 %v3751
      %v3893 = vpop.f32.mrb[0].mxu0
      %v3894 = vadd.f32 %v3785, %v3893
      %v3895 = vpop.f32.mrb[0].mxu0
      %v3896 = vpop.f32.mrb[0].mxu0
      %v3897 = vadd.f32 %v3785, %v3896
      %v3898 = vpop.f32.mrb[0].mxu0
      %3899 = vmatprep.mubr.bf16.mxu0 0
      %3900 = vmatmul.mubr.bf16.gmra.mrb[0].mxu0 %v3752
      %v3901 = vpop.f32.mrb[0].mxu0
      %v3902 = vadd.f32 %v3785, %v3901
      %v3903 = vpop.f32.mrb[0].mxu0
      %v3904 = vpop.f32.mrb[0].mxu0
      %v3905 = vadd.f32 %v3785, %v3904
      %v3906 = vpop.f32.mrb[0].mxu0
      %3907 = vmatprep.mubr.bf16.mxu0 0
      %3908 = vmatmul.mubr.bf16.gmra.mrb[0].mxu0 %v3753
      %v3909 = vpop.f32.mrb[0].mxu0
      %v3910 = vadd.f32 %v3785, %v3909
      %v3911 = vpop.f32.mrb[0].mxu0
      %v3912 = vpop.f32.mrb[0].mxu0
      %v3913 = vadd.f32 %v3785, %v3912
      %v3914 = vpop.f32.mrb[0].mxu0
      %3915 = vmatprep.mubr.bf16.mxu0 0
      %3916 = vmatmul.mubr.bf16.gmra.mrb[0].mxu0 %v3754
      %v3917 = vpop.f32.mrb[0].mxu0
      %v3918 = vadd.f32 %v3785, %v3917
      %v3919 = vpop.f32.mrb[0].mxu0
      %v3920 = vpop.f32.mrb[0].mxu0
      %v3921 = vadd.f32 %v3785, %v3920
      %v3922 = vpop.f32.mrb[0].mxu0
      %3923 = vmatprep.mubr.bf16.mxu0 0
      %3924 = vmatmul.mubr.bf16.gmra.mrb[0].mxu0 %v3755
      %v3925 = vpop.f32.mrb[0].mxu0
      %v3926 = vadd.f32 %v3785, %v3925
      %v3927 = vpop.f32.mrb[0].mxu0
      %v3928 = vpop.f32.mrb[0].mxu0
      %v3929 = vadd.f32 %v3785, %v3928
      %v3930 = vpop.f32.mrb[0].mxu0
      %3931 = vmatprep.mubr.bf16.mxu0 0
      %3932 = vmatmul.mubr.bf16.gmra.mrb[0].mxu0 %v3756
      %v3933 = vpop.f32.mrb[0].mxu0
      %v3934 = vadd.f32 %v3785, %v3933
      %v3935 = vpop.f32.mrb[0].mxu0
      %v3936 = vpop.f32.mrb[0].mxu0
      %v3937 = vadd.f32 %v3785, %v3936
      %v3938 = vpop.f32.mrb[0].mxu0
      %3939 = vmatprep.mubr.bf16.mxu0 0
      %3940 = vmatmul.mubr.bf16.gmra.mrb[0].mxu0 %v3757
      %v3941 = vpop.f32.mrb[0].mxu0
      %v3942 = vadd.f32 %v3785, %v3941
      %v3943 = vpop.f32.mrb[0].mxu0
      %v3944 = vpop.f32.mrb[0].mxu0
      %v3945 = vadd.f32 %v3785, %v3944
      %v3946 = vpop.f32.mrb[0].mxu0
      %3947 = vmatprep.mubr.bf16.mxu0 0
      %3948 = vmatmul.mubr.bf16.gmra.mrb[0].mxu0 %v3758
      %v3949 = vpop.f32.mrb[0].mxu0
      %v3950 = vadd.f32 %v3785, %v3949
      %v3951 = vpop.f32.mrb[0].mxu0
      %v3952 = vpop.f32.mrb[0].mxu0
      %v3953 = vadd.f32 %v3785, %v3952
      %v3954 = vpop.f32.mrb[0].mxu0
      %3955 = vmatprep.mubr.bf16.mxu0 0
      %3956 = vmatmul.mubr.bf16.gmra.mrb[0].mxu0 %v3759
      %v3957 = vpop.f32.mrb[0].mxu0
      %v3958 = vadd.f32 %v3785, %v3957
      %v3959 = vpop.f32.mrb[0].mxu0
      %v3960 = vpop.f32.mrb[0].mxu0
      %v3961 = vadd.f32 %v3785, %v3960
      %v3962 = vpop.f32.mrb[0].mxu0
      %3963 = vmatprep.mubr.bf16.mxu0 0
      %3964 = vmatmul.mubr.bf16.gmra.mrb[0].mxu0 %v3760
      %v3965 = vpop.f32.mrb[0].mxu0
      %v3966 = vadd.f32 %v3785, %v3965
      %v3967 = vpop.f32.mrb[0].mxu0
      %v3968 = vpop.f32.mrb[0].mxu0
      %v3969 = vadd.f32 %v3785, %v3968
      %v3970 = vpop.f32.mrb[0].mxu0
      %3971 = vmatprep.mubr.bf16.mxu0 0
      %3972 = vmatmul.mubr.bf16.gmra.mrb[0].mxu0 %v3761
      %v3973 = vpop.f32.mrb[0].mxu0
      %v3974 = vadd.f32 %v3785, %v3973
      %v3975 = vpop.f32.mrb[0].mxu0
      %v3976 = vpop.f32.mrb[0].mxu0
      %v3977 = vadd.f32 %v3785, %v3976
      %v3978 = vpop.f32.mrb[0].mxu0
      %3979 = vmatprep.mubr.bf16.mxu0 0
      %3980 = vmatmul.mubr.bf16.gmra.mrb[0].mxu0 %v3762
      %v3981 = vpop.f32.mrb[0].mxu0
      %v3982 = vadd.f32 %v3785, %v3981
      %v3983 = vpop.f32.mrb[0].mxu0
      %v3984 = vpop.f32.mrb[0].mxu0
      %v3985 = vadd.f32 %v3785, %v3984
      %v3986 = vpop.f32.mrb[0].mxu0
      %3987 = vmatprep.mubr.bf16.mxu0 0
      %3988 = vmatmul.mubr.bf16.gmra.mrb[0].mxu0 %v3763
      %v3989 = vpop.f32.mrb[0].mxu0
      %v3990 = vadd.f32 %v3785, %v3989
      %v3991 = vpop.f32.mrb[0].mxu0
      %v3992 = vpop.f32.mrb[0].mxu0
      %v3993 = vadd.f32 %v3785, %v3992
      %v3994 = vpop.f32.mrb[0].mxu0
      %3995 = vdwg.mxu0
      %vm3996 = vsmask.f32 3328
      %vm3997 = vsmask.f32 7440
      %vm3998 = vmor %vm3996, %vm3997
      %v4000 = vshrl.u32 %v641, 16
      %v4002 = vrot.slane %v4000, 4
      %v4003 = vshll.u32 %v641, 16
      %v4005 = vrot.slane %v4003, 5
      %v4006 = vor.u32 %v4002, %v4005
      %v4007 = vrot.slane %v4006, 4
      %v4009 = vshll.u32 %v642, 16
      %v4011 = vrot.slane %v4009, 5
      %v4012 = vsel %vm3998, %v4007, %v4011
      %v4013 = vshrl.u32 %v642, 16
      %v4015 = vrot.slane %v4013, 4
      %v4016 = vor.u32 %v4015, %v4011
      %v4017 = vrot.slane %v4016, 4
      %v4019 = vshll.u32 %v643, 16
      %v4021 = vrot.slane %v4019, 5
      %v4022 = vsel %vm3998, %v4017, %v4021
      %v4024 = vshrl.u32 %v644, 16
      %v4026 = vrot.slane %v4024, 4
      %v4027 = vshll.u32 %v644, 16
      %v4029 = vrot.slane %v4027, 5
      %v4030 = vor.u32 %v4026, %v4029
      %v4031 = vrot.slane %v4030, 4
      %v4033 = vshll.u32 %v645, 16
      %v4035 = vrot.slane %v4033, 5
      %v4036 = vsel %vm3998, %v4031, %v4035
      %v4037 = vshrl.u32 %v645, 16
      %v4039 = vrot.slane %v4037, 4
      %v4040 = vor.u32 %v4039, %v4035
      %v4041 = vrot.slane %v4040, 4
      %v4043 = vshll.u32 %v646, 16
      %v4045 = vrot.slane %v4043, 5
      %v4046 = vsel %vm3998, %v4041, %v4045
      %v4048 = vshrl.u32 %v647, 16
      %v4050 = vrot.slane %v4048, 4
      %v4051 = vshll.u32 %v647, 16
      %v4053 = vrot.slane %v4051, 5
      %v4054 = vor.u32 %v4050, %v4053
      %v4055 = vrot.slane %v4054, 4
      %v4057 = vshll.u32 %v648, 16
      %v4059 = vrot.slane %v4057, 5
      %v4060 = vsel %vm3998, %v4055, %v4059
      %v4061 = vshrl.u32 %v648, 16
      %v4063 = vrot.slane %v4061, 4
      %v4064 = vor.u32 %v4063, %v4059
      %v4065 = vrot.slane %v4064, 4
      %v4067 = vshll.u32 %v649, 16
      %v4069 = vrot.slane %v4067, 5
      %v4070 = vsel %vm3998, %v4065, %v4069
      %v4072 = vshrl.u32 %v650, 16
      %v4074 = vrot.slane %v4072, 4
      %v4075 = vshll.u32 %v650, 16
      %v4077 = vrot.slane %v4075, 5
      %v4078 = vor.u32 %v4074, %v4077
      %v4079 = vrot.slane %v4078, 4
      %v4081 = vshll.u32 %v651, 16
      %v4083 = vrot.slane %v4081, 5
      %v4084 = vsel %vm3998, %v4079, %v4083
      %v4085 = vshrl.u32 %v651, 16
      %v4087 = vrot.slane %v4085, 4
      %v4088 = vor.u32 %v4087, %v4083
      %v4089 = vrot.slane %v4088, 4
      %v4091 = vshll.u32 %v652, 16
      %v4093 = vrot.slane %v4091, 5
      %v4094 = vsel %vm3998, %v4089, %v4093
      %v4096 = vshrl.u32 %v653, 16
      %v4098 = vrot.slane %v4096, 4
      %v4099 = vshll.u32 %v653, 16
      %v4101 = vrot.slane %v4099, 5
      %v4102 = vor.u32 %v4098, %v4101
      %v4103 = vrot.slane %v4102, 4
      %v4105 = vshll.u32 %v654, 16
      %v4107 = vrot.slane %v4105, 5
      %v4108 = vsel %vm3998, %v4103, %v4107
      %v4109 = vshrl.u32 %v654, 16
      %v4111 = vrot.slane %v4109, 4
      %v4112 = vor.u32 %v4111, %v4107
      %v4113 = vrot.slane %v4112, 4
      %v4115 = vshll.u32 %v655, 16
      %v4117 = vrot.slane %v4115, 5
      %v4118 = vsel %vm3998, %v4113, %v4117
      %v4120 = vshrl.u32 %v656, 16
      %v4122 = vrot.slane %v4120, 4
      %v4123 = vshll.u32 %v656, 16
      %v4125 = vrot.slane %v4123, 5
      %v4126 = vor.u32 %v4122, %v4125
      %v4127 = vrot.slane %v4126, 4
      %v4129 = vshll.u32 %v657, 16
      %v4131 = vrot.slane %v4129, 5
      %v4132 = vsel %vm3998, %v4127, %v4131
      %v4133 = vshrl.u32 %v657, 16
      %v4135 = vrot.slane %v4133, 4
      %v4136 = vor.u32 %v4135, %v4131
      %v4137 = vrot.slane %v4136, 4
      %v4139 = vshll.u32 %v658, 16
      %v4141 = vrot.slane %v4139, 5
      %v4142 = vsel %vm3998, %v4137, %v4141
      %v4144 = vshrl.u32 %v659, 16
      %v4146 = vrot.slane %v4144, 4
      %v4147 = vshll.u32 %v659, 16
      %v4149 = vrot.slane %v4147, 5
      %v4150 = vor.u32 %v4146, %v4149
      %v4151 = vrot.slane %v4150, 4
      %v4153 = vshll.u32 %v660, 16
      %v4155 = vrot.slane %v4153, 5
      %v4156 = vsel %vm3998, %v4151, %v4155
      %v4157 = vshrl.u32 %v660, 16
      %v4159 = vrot.slane %v4157, 4
      %v4160 = vor.u32 %v4159, %v4155
      %v4161 = vrot.slane %v4160, 4
      %v4163 = vshll.u32 %v661, 16
      %v4165 = vrot.slane %v4163, 5
      %v4166 = vsel %vm3998, %v4161, %v4165
      %v4168 = vshrl.u32 %v662, 16
      %v4170 = vrot.slane %v4168, 4
      %v4171 = vshll.u32 %v662, 16
      %v4173 = vrot.slane %v4171, 5
      %v4174 = vor.u32 %v4170, %v4173
      %v4175 = vrot.slane %v4174, 4
      %v4177 = vshll.u32 %v663, 16
      %v4179 = vrot.slane %v4177, 5
      %v4180 = vsel %vm3998, %v4175, %v4179
      %v4181 = vshrl.u32 %v663, 16
      %v4183 = vrot.slane %v4181, 4
      %v4184 = vor.u32 %v4183, %v4179
      %v4185 = vrot.slane %v4184, 4
      %v4187 = vshll.u32 %v664, 16
      %v4189 = vrot.slane %v4187, 5
      %v4190 = vsel %vm3998, %v4185, %v4189
      %v4192 = vshrl.u32 %v665, 16
      %v4194 = vrot.slane %v4192, 4
      %v4195 = vshll.u32 %v665, 16
      %v4197 = vrot.slane %v4195, 5
      %v4198 = vor.u32 %v4194, %v4197
      %v4199 = vrot.slane %v4198, 4
      %v4201 = vshll.u32 %v666, 16
      %v4203 = vrot.slane %v4201, 5
      %v4204 = vsel %vm3998, %v4199, %v4203
      %v4205 = vshrl.u32 %v666, 16
      %v4207 = vrot.slane %v4205, 4
      %v4208 = vor.u32 %v4207, %v4203
      %v4209 = vrot.slane %v4208, 4
      %v4211 = vshll.u32 %v667, 16
      %v4213 = vrot.slane %v4211, 5
      %v4214 = vsel %vm3998, %v4209, %v4213
      %v4216 = vshrl.u32 %v668, 16
      %v4218 = vrot.slane %v4216, 4
      %v4219 = vshll.u32 %v668, 16
      %v4221 = vrot.slane %v4219, 5
      %v4222 = vor.u32 %v4218, %v4221
      %v4223 = vrot.slane %v4222, 4
      %v4225 = vshll.u32 %v669, 16
      %v4227 = vrot.slane %v4225, 5
      %v4228 = vsel %vm3998, %v4223, %v4227
      %v4229 = vshrl.u32 %v669, 16
      %v4231 = vrot.slane %v4229, 4
      %v4232 = vor.u32 %v4231, %v4227
      %v4233 = vrot.slane %v4232, 4
      %v4235 = vshll.u32 %v670, 16
      %v4237 = vrot.slane %v4235, 5
      %v4238 = vsel %vm3998, %v4233, %v4237
      %v4240 = vshrl.u32 %v671, 16
      %v4242 = vrot.slane %v4240, 4
      %v4243 = vshll.u32 %v671, 16
      %v4245 = vrot.slane %v4243, 5
      %v4246 = vor.u32 %v4242, %v4245
      %v4247 = vrot.slane %v4246, 4
      %v4249 = vshll.u32 %v672, 16
      %v4251 = vrot.slane %v4249, 5
      %v4252 = vsel %vm3998, %v4247, %v4251
      %v4253 = vshrl.u32 %v672, 16
      %v4255 = vrot.slane %v4253, 4
      %v4256 = vor.u32 %v4255, %v4251
      %v4257 = vrot.slane %v4256, 4
      %v4259 = vshll.u32 %v673, 16
      %v4261 = vrot.slane %v4259, 5
      %v4262 = vsel %vm3998, %v4257, %v4261
      %v4264 = vshrl.u32 %v674, 16
      %v4266 = vrot.slane %v4264, 4
      %v4267 = vshll.u32 %v674, 16
      %v4269 = vrot.slane %v4267, 5
      %v4270 = vor.u32 %v4266, %v4269
      %v4271 = vrot.slane %v4270, 4
      %v4273 = vshll.u32 %v675, 16
      %v4275 = vrot.slane %v4273, 5
      %v4276 = vsel %vm3998, %v4271, %v4275
      %v4277 = vshrl.u32 %v675, 16
      %v4279 = vrot.slane %v4277, 4
      %v4280 = vor.u32 %v4279, %v4275
      %v4281 = vrot.slane %v4280, 4
      %v4283 = vshll.u32 %v676, 16
      %v4285 = vrot.slane %v4283, 5
      %v4286 = vsel %vm3998, %v4281, %v4285
      %v4288 = vshrl.u32 %v677, 16
      %v4290 = vrot.slane %v4288, 4
      %v4291 = vshll.u32 %v677, 16
      %v4293 = vrot.slane %v4291, 5
      %v4294 = vor.u32 %v4290, %v4293
      %v4295 = vrot.slane %v4294, 4
      %v4297 = vshll.u32 %v678, 16
      %v4299 = vrot.slane %v4297, 5
      %v4300 = vsel %vm3998, %v4295, %v4299
      %v4301 = vshrl.u32 %v678, 16
      %v4303 = vrot.slane %v4301, 4
      %v4304 = vor.u32 %v4303, %v4299
      %v4305 = vrot.slane %v4304, 4
      %v4307 = vshll.u32 %v679, 16
      %v4309 = vrot.slane %v4307, 5
      %v4310 = vsel %vm3998, %v4305, %v4309
      %v4312 = vshrl.u32 %v680, 16
      %v4314 = vrot.slane %v4312, 4
      %v4315 = vshll.u32 %v680, 16
      %v4317 = vrot.slane %v4315, 5
      %v4318 = vor.u32 %v4314, %v4317
      %v4319 = vrot.slane %v4318, 4
      %v4321 = vshll.u32 %v681, 16
      %v4323 = vrot.slane %v4321, 5
      %v4324 = vsel %vm3998, %v4319, %v4323
      %v4325 = vshrl.u32 %v681, 16
      %v4327 = vrot.slane %v4325, 4
      %v4328 = vor.u32 %v4327, %v4323
      %v4329 = vrot.slane %v4328, 4
      %v4331 = vshll.u32 %v682, 16
      %v4333 = vrot.slane %v4331, 5
      %v4334 = vsel %vm3998, %v4329, %v4333
      %v4336 = vshrl.u32 %v683, 16
      %v4338 = vrot.slane %v4336, 4
      %v4339 = vshll.u32 %v683, 16
      %v4341 = vrot.slane %v4339, 5
      %v4342 = vor.u32 %v4338, %v4341
      %v4343 = vrot.slane %v4342, 4
      %v4345 = vshll.u32 %v684, 16
      %v4347 = vrot.slane %v4345, 5
      %v4348 = vsel %vm3998, %v4343, %v4347
      %v4349 = vshrl.u32 %v684, 16
      %v4351 = vrot.slane %v4349, 4
      %v4352 = vor.u32 %v4351, %v4347
      %v4353 = vrot.slane %v4352, 4
      %v4355 = vshll.u32 %v685, 16
      %v4357 = vrot.slane %v4355, 5
      %v4358 = vsel %vm3998, %v4353, %v4357
      %v4360 = vshrl.u32 %v686, 16
      %v4362 = vrot.slane %v4360, 4
      %v4363 = vshll.u32 %v686, 16
      %v4365 = vrot.slane %v4363, 5
      %v4366 = vor.u32 %v4362, %v4365
      %v4367 = vrot.slane %v4366, 4
      %v4369 = vshll.u32 %v687, 16
      %v4371 = vrot.slane %v4369, 5
      %v4372 = vsel %vm3998, %v4367, %v4371
      %v4373 = vshrl.u32 %v687, 16
      %v4375 = vrot.slane %v4373, 4
      %v4376 = vor.u32 %v4375, %v4371
      %v4377 = vrot.slane %v4376, 4
      %v4379 = vshll.u32 %v688, 16
      %v4381 = vrot.slane %v4379, 5
      %v4382 = vsel %vm3998, %v4377, %v4381
      %v4383 = vld [vmem:[%s11] sm:$0xf]
      %v4384 = vld [vmem:[%s11 + $0x4] sm:$0xf]
      %v4385 = vld [vmem:[%s11 + $0x8] sm:$0xf]
      %v4386 = vld [vmem:[%s11 + $0xc] sm:$0xf]
      %v4387 = vld [vmem:[%s11 + $0x10] sm:$0xf]
      %v4388 = vld [vmem:[%s11 + $0x14] sm:$0xf]
      %v4389 = vld [vmem:[%s11 + $0x18] sm:$0xf]
      %v4390 = vld [vmem:[%s11 + $0x1c] sm:$0xf]
      %v4391 = vld [vmem:[%s11 + $0x20] sm:$0xf]
      %v4392 = vld [vmem:[%s11 + $0x24] sm:$0xf]
      %v4393 = vld [vmem:[%s11 + $0x28] sm:$0xf]
      %v4394 = vld [vmem:[%s11 + $0x2c] sm:$0xf]
      %v4395 = vld [vmem:[%s11 + $0x30] sm:$0xf]
      %v4396 = vld [vmem:[%s11 + $0x34] sm:$0xf]
      %v4397 = vld [vmem:[%s11 + $0x38] sm:$0xf]
      %v4398 = vld [vmem:[%s11 + $0x3c] sm:$0xf]
      %v4399 = vunpack.c.l.b16 %v4012
      %v4400 = vunpack.c.l.b16 %v4022
      %v4401 = vunpack.c.l.b16 %v4036
      %v4402 = vunpack.c.l.b16 %v4046
      %v4403 = vunpack.c.l.b16 %v4060
      %v4404 = vunpack.c.l.b16 %v4070
      %v4405 = vunpack.c.l.b16 %v4084
      %v4406 = vunpack.c.l.b16 %v4094
      %v4407 = vunpack.c.l.b16 %v4108
      %v4408 = vunpack.c.l.b16 %v4118
      %v4409 = vunpack.c.l.b16 %v4132
      %v4410 = vunpack.c.l.b16 %v4142
      %v4411 = vunpack.c.l.b16 %v4156
      %v4412 = vunpack.c.l.b16 %v4166
      %v4413 = vunpack.c.l.b16 %v4180
      %v4414 = vunpack.c.l.b16 %v4190
      %v4415 = vunpack.c.l.b16 %v4204
      %v4416 = vunpack.c.l.b16 %v4214
      %v4417 = vunpack.c.l.b16 %v4228
      %v4418 = vunpack.c.l.b16 %v4238
      %v4419 = vunpack.c.l.b16 %v4252
      %v4420 = vunpack.c.l.b16 %v4262
      %v4421 = vunpack.c.l.b16 %v4276
      %v4422 = vunpack.c.l.b16 %v4286
      %v4423 = vunpack.c.l.b16 %v4300
      %v4424 = vunpack.c.l.b16 %v4310
      %v4425 = vunpack.c.l.b16 %v4324
      %v4426 = vunpack.c.l.b16 %v4334
      %v4427 = vunpack.c.l.b16 %v4348
      %v4428 = vunpack.c.l.b16 %v4358
      %v4429 = vunpack.c.l.b16 %v4372
      %v4430 = vunpack.c.l.b16 %v4382
      %v4431 = vpack.c.b16 %v4400, %v4399
      %v4432 = vpack.c.b16 %v4402, %v4401
      %v4433 = vpack.c.b16 %v4404, %v4403
      %v4434 = vpack.c.b16 %v4406, %v4405
      %v4435 = vpack.c.b16 %v4408, %v4407
      %v4436 = vpack.c.b16 %v4410, %v4409
      %v4437 = vpack.c.b16 %v4412, %v4411
      %v4438 = vpack.c.b16 %v4414, %v4413
      %v4439 = vpack.c.b16 %v4416, %v4415
      %v4440 = vpack.c.b16 %v4418, %v4417
      %v4441 = vpack.c.b16 %v4420, %v4419
      %v4442 = vpack.c.b16 %v4422, %v4421
      %v4443 = vpack.c.b16 %v4424, %v4423
      %v4444 = vpack.c.b16 %v4426, %v4425
      %v4445 = vpack.c.b16 %v4428, %v4427
      %v4446 = vpack.c.b16 %v4430, %v4429
      %v4479 = vunpack.c.l.b16 %v4383
      %v4480 = vunpack.c.l.b16 %v4384
      %v4481 = vunpack.c.l.b16 %v4385
      %v4482 = vunpack.c.l.b16 %v4386
      %v4483 = vunpack.c.l.b16 %v4387
      %v4484 = vunpack.c.l.b16 %v4388
      %v4485 = vunpack.c.l.b16 %v4389
      %v4486 = vunpack.c.l.b16 %v4390
      %v4487 = vunpack.c.l.b16 %v4391
      %v4488 = vunpack.c.l.b16 %v4392
      %v4489 = vunpack.c.l.b16 %v4393
      %v4490 = vunpack.c.l.b16 %v4394
      %v4491 = vunpack.c.l.b16 %v4395
      %v4492 = vunpack.c.l.b16 %v4396
      %v4493 = vunpack.c.l.b16 %v4397
      %v4494 = vunpack.c.l.b16 %v4398
      %v4495 = vpack.c.b16 %v4480, %v4479
      %v4496 = vpack.c.b16 %v4482, %v4481
      %v4497 = vpack.c.b16 %v4484, %v4483
      %v4498 = vpack.c.b16 %v4486, %v4485
      %v4499 = vpack.c.b16 %v4488, %v4487
      %v4500 = vpack.c.b16 %v4490, %v4489
      %v4501 = vpack.c.b16 %v4492, %v4491
      %v4502 = vpack.c.b16 %v4494, %v4493
      %4511 = vmatprep.subr.bf16.mxu0 0
      %4512 = vmatpush1.bf16.msra.mxu0 %v4495
      %4513 = vmatprep.subr.bf16.mxu0 0
      %4514 = vmatpush1.bf16.msra.mxu0 %v4496
      %4515 = vmatprep.subr.bf16.mxu0 0
      %4516 = vmatpush1.bf16.msra.mxu0 %v4497
      %4517 = vmatprep.subr.bf16.mxu0 0
      %4518 = vmatpush1.bf16.msra.mxu0 %v4498
      %4519 = vmatprep.subr.bf16.mxu0 0
      %4520 = vmatpush1.bf16.msra.mxu0 %v4499
      %4521 = vmatprep.subr.bf16.mxu0 0
      %4522 = vmatpush1.bf16.msra.mxu0 %v4500
      %4523 = vmatprep.subr.bf16.mxu0 0
      %4524 = vmatpush1.bf16.msra.mxu0 %v4501
      %4525 = vmatprep.subr.bf16.mxu0 0
      %4526 = vmatpush1.bf16.msra.mxu0 %v4502
      %4527 = vmatprep.subr.bf16.mxu0 0
      %4528 = vmatpush1.bf16.msra.mxu0 0
      %4529 = vmatprep.subr.bf16.mxu0 0
      %4530 = vmatpush1.bf16.msra.mxu0 0
      %4531 = vmatprep.subr.bf16.mxu0 0
      %4532 = vmatpush1.bf16.msra.mxu0 0
      %4533 = vmatprep.subr.bf16.mxu0 0
      %4534 = vmatpush1.bf16.msra.mxu0 0
      %4535 = vmatprep.subr.bf16.mxu0 0
      %4536 = vmatpush1.bf16.msra.mxu0 0
      %4537 = vmatprep.subr.bf16.mxu0 0
      %4538 = vmatpush1.bf16.msra.mxu0 0
      %4539 = vmatprep.subr.bf16.mxu0 0
      %4540 = vmatpush1.bf16.msra.mxu0 0
      %4541 = vmatprep.subr.bf16.mxu0 0
      %4542 = vmatpush1.bf16.msra.mxu0 0
      %4543 = vmatprep.mubr.bf16.mxu0 0
      %4544 = vmatmul.mubr.bf16.gmra.mrb[0].mxu0 %v4431
      %v4545 = vpop.f32.mrb[0].mxu0
      %v4546 = vadd.f32 0.0, %v4545
      %v4547 = vpop.f32.mrb[0].mxu0
      %v4548 = vpop.f32.mrb[0].mxu0
      %v4549 = vadd.f32 0.0, %v4548
      %v4550 = vpop.f32.mrb[0].mxu0
      %4551 = vmatprep.mubr.bf16.mxu0 0
      %4552 = vmatmul.mubr.bf16.gmra.mrb[0].mxu0 %v4432
      %v4553 = vpop.f32.mrb[0].mxu0
      %v4554 = vadd.f32 0.0, %v4553
      %v4555 = vpop.f32.mrb[0].mxu0
      %v4556 = vpop.f32.mrb[0].mxu0
      %v4557 = vadd.f32 0.0, %v4556
      %v4558 = vpop.f32.mrb[0].mxu0
      %4559 = vmatprep.mubr.bf16.mxu0 0
      %4560 = vmatmul.mubr.bf16.gmra.mrb[0].mxu0 %v4433
      %v4561 = vpop.f32.mrb[0].mxu0
      %v4562 = vadd.f32 0.0, %v4561
      %v4563 = vpop.f32.mrb[0].mxu0
      %v4564 = vpop.f32.mrb[0].mxu0
      %v4565 = vadd.f32 0.0, %v4564
      %v4566 = vpop.f32.mrb[0].mxu0
      %4567 = vmatprep.mubr.bf16.mxu0 0
      %4568 = vmatmul.mubr.bf16.gmra.mrb[0].mxu0 %v4434
      %v4569 = vpop.f32.mrb[0].mxu0
      %v4570 = vadd.f32 0.0, %v4569
      %v4571 = vpop.f32.mrb[0].mxu0
      %v4572 = vpop.f32.mrb[0].mxu0
      %v4573 = vadd.f32 0.0, %v4572
      %v4574 = vpop.f32.mrb[0].mxu0
      %4575 = vmatprep.mubr.bf16.mxu0 0
      %4576 = vmatmul.mubr.bf16.gmra.mrb[0].mxu0 %v4435
      %v4577 = vpop.f32.mrb[0].mxu0
      %v4578 = vadd.f32 0.0, %v4577
      %v4579 = vpop.f32.mrb[0].mxu0
      %v4580 = vpop.f32.mrb[0].mxu0
      %v4581 = vadd.f32 0.0, %v4580
      %v4582 = vpop.f32.mrb[0].mxu0
      %4583 = vmatprep.mubr.bf16.mxu0 0
      %4584 = vmatmul.mubr.bf16.gmra.mrb[0].mxu0 %v4436
      %v4585 = vpop.f32.mrb[0].mxu0
      %v4586 = vadd.f32 0.0, %v4585
      %v4587 = vpop.f32.mrb[0].mxu0
      %v4588 = vpop.f32.mrb[0].mxu0
      %v4589 = vadd.f32 0.0, %v4588
      %v4590 = vpop.f32.mrb[0].mxu0
      %4591 = vmatprep.mubr.bf16.mxu0 0
      %4592 = vmatmul.mubr.bf16.gmra.mrb[0].mxu0 %v4437
      %v4593 = vpop.f32.mrb[0].mxu0
      %v4594 = vadd.f32 0.0, %v4593
      %v4595 = vpop.f32.mrb[0].mxu0
      %v4596 = vpop.f32.mrb[0].mxu0
      %v4597 = vadd.f32 0.0, %v4596
      %v4598 = vpop.f32.mrb[0].mxu0
      %4599 = vmatprep.mubr.bf16.mxu0 0
      %4600 = vmatmul.mubr.bf16.gmra.mrb[0].mxu0 %v4438
      %v4601 = vpop.f32.mrb[0].mxu0
      %v4602 = vadd.f32 0.0, %v4601
      %v4603 = vpop.f32.mrb[0].mxu0
      %v4604 = vpop.f32.mrb[0].mxu0
      %v4605 = vadd.f32 0.0, %v4604
      %v4606 = vpop.f32.mrb[0].mxu0
      %4607 = vmatprep.mubr.bf16.mxu0 0
      %4608 = vmatmul.mubr.bf16.gmra.mrb[0].mxu0 %v4439
      %v4609 = vpop.f32.mrb[0].mxu0
      %v4610 = vadd.f32 0.0, %v4609
      %v4611 = vpop.f32.mrb[0].mxu0
      %v4612 = vpop.f32.mrb[0].mxu0
      %v4613 = vadd.f32 0.0, %v4612
      %v4614 = vpop.f32.mrb[0].mxu0
      %4615 = vmatprep.mubr.bf16.mxu0 0
      %4616 = vmatmul.mubr.bf16.gmra.mrb[0].mxu0 %v4440
      %v4617 = vpop.f32.mrb[0].mxu0
      %v4618 = vadd.f32 0.0, %v4617
      %v4619 = vpop.f32.mrb[0].mxu0
      %v4620 = vpop.f32.mrb[0].mxu0
      %v4621 = vadd.f32 0.0, %v4620
      %v4622 = vpop.f32.mrb[0].mxu0
      %4623 = vmatprep.mubr.bf16.mxu0 0
      %4624 = vmatmul.mubr.bf16.gmra.mrb[0].mxu0 %v4441
      %v4625 = vpop.f32.mrb[0].mxu0
      %v4626 = vadd.f32 0.0, %v4625
      %v4627 = vpop.f32.mrb[0].mxu0
      %v4628 = vpop.f32.mrb[0].mxu0
      %v4629 = vadd.f32 0.0, %v4628
      %v4630 = vpop.f32.mrb[0].mxu0
      %4631 = vmatprep.mubr.bf16.mxu0 0
      %4632 = vmatmul.mubr.bf16.gmra.mrb[0].mxu0 %v4442
      %v4633 = vpop.f32.mrb[0].mxu0
      %v4634 = vadd.f32 0.0, %v4633
      %v4635 = vpop.f32.mrb[0].mxu0
      %v4636 = vpop.f32.mrb[0].mxu0
      %v4637 = vadd.f32 0.0, %v4636
      %v4638 = vpop.f32.mrb[0].mxu0
      %4639 = vmatprep.mubr.bf16.mxu0 0
      %4640 = vmatmul.mubr.bf16.gmra.mrb[0].mxu0 %v4443
      %v4641 = vpop.f32.mrb[0].mxu0
      %v4642 = vadd.f32 0.0, %v4641
      %v4643 = vpop.f32.mrb[0].mxu0
      %v4644 = vpop.f32.mrb[0].mxu0
      %v4645 = vadd.f32 0.0, %v4644
      %v4646 = vpop.f32.mrb[0].mxu0
      %4647 = vmatprep.mubr.bf16.mxu0 0
      %4648 = vmatmul.mubr.bf16.gmra.mrb[0].mxu0 %v4444
      %v4649 = vpop.f32.mrb[0].mxu0
      %v4650 = vadd.f32 0.0, %v4649
      %v4651 = vpop.f32.mrb[0].mxu0
      %v4652 = vpop.f32.mrb[0].mxu0
      %v4653 = vadd.f32 0.0, %v4652
      %v4654 = vpop.f32.mrb[0].mxu0
      %4655 = vmatprep.mubr.bf16.mxu0 0
      %4656 = vmatmul.mubr.bf16.gmra.mrb[0].mxu0 %v4445
      %v4657 = vpop.f32.mrb[0].mxu0
      %v4658 = vadd.f32 0.0, %v4657
      %v4659 = vpop.f32.mrb[0].mxu0
      %v4660 = vpop.f32.mrb[0].mxu0
      %v4661 = vadd.f32 0.0, %v4660
      %v4662 = vpop.f32.mrb[0].mxu0
      %4663 = vmatprep.mubr.bf16.mxu0 0
      %4664 = vmatmul.mubr.bf16.gmra.mrb[0].mxu0 %v4446
      %v4665 = vpop.f32.mrb[0].mxu0
      %v4666 = vadd.f32 0.0, %v4665
      %v4667 = vpop.f32.mrb[0].mxu0
      %v4668 = vpop.f32.mrb[0].mxu0
      %v4669 = vadd.f32 0.0, %v4668
      %v4670 = vpop.f32.mrb[0].mxu0
      %4671 = vdwg.mxu0
      %v4672 = vadd.f32 %v3870, %v4546
      %v4673 = vadd.f32 %v3873, %v4549
      %v4674 = vadd.f32 %v3878, %v4554
      %v4675 = vadd.f32 %v3881, %v4557
      %v4676 = vadd.f32 %v3886, %v4562
      %v4677 = vadd.f32 %v3889, %v4565
      %v4678 = vadd.f32 %v3894, %v4570
      %v4679 = vadd.f32 %v3897, %v4573
      %v4680 = vadd.f32 %v3902, %v4578
      %v4681 = vadd.f32 %v3905, %v4581
      %v4682 = vadd.f32 %v3910, %v4586
      %v4683 = vadd.f32 %v3913, %v4589
      %v4684 = vadd.f32 %v3918, %v4594
      %v4685 = vadd.f32 %v3921, %v4597
      %v4686 = vadd.f32 %v3926, %v4602
      %v4687 = vadd.f32 %v3929, %v4605
      %v4688 = vadd.f32 %v3934, %v4610
      %v4689 = vadd.f32 %v3937, %v4613
      %v4690 = vadd.f32 %v3942, %v4618
      %v4691 = vadd.f32 %v3945, %v4621
      %v4692 = vadd.f32 %v3950, %v4626
      %v4693 = vadd.f32 %v3953, %v4629
      %v4694 = vadd.f32 %v3958, %v4634
      %v4695 = vadd.f32 %v3961, %v4637
      %v4696 = vadd.f32 %v3966, %v4642
      %v4697 = vadd.f32 %v3969, %v4645
      %v4698 = vadd.f32 %v3974, %v4650
      %v4699 = vadd.f32 %v3977, %v4653
      %v4700 = vadd.f32 %v3982, %v4658
      %v4701 = vadd.f32 %v3985, %v4661
      %v4702 = vadd.f32 %v3990, %v4666
      %v4703 = vadd.f32 %v3993, %v4669
      %4704 = vst [vmem:[%s391] sm:$0xff] %v4672
      %4705 = vst [vmem:[%s391 + $0x8] sm:$0xff] %v4673
      %4706 = vst [vmem:[%s391 + $0x10] sm:$0xff] %v4674
      %4707 = vst [vmem:[%s391 + $0x18] sm:$0xff] %v4675
      %4708 = vst [vmem:[%s391 + $0x20] sm:$0xff] %v4676
      %4709 = vst [vmem:[%s391 + $0x28] sm:$0xff] %v4677
      %4710 = vst [vmem:[%s391 + $0x30] sm:$0xff] %v4678
      %4711 = vst [vmem:[%s391 + $0x38] sm:$0xff] %v4679
      %4712 = vst [vmem:[%s391 + $0x40] sm:$0xff] %v4680
      %4713 = vst [vmem:[%s391 + $0x48] sm:$0xff] %v4681
      %4714 = vst [vmem:[%s391 + $0x50] sm:$0xff] %v4682
      %4715 = vst [vmem:[%s391 + $0x58] sm:$0xff] %v4683
      %4716 = vst [vmem:[%s391 + $0x60] sm:$0xff] %v4684
      %4717 = vst [vmem:[%s391 + $0x68] sm:$0xff] %v4685
      %4718 = vst [vmem:[%s391 + $0x70] sm:$0xff] %v4686
      %4719 = vst [vmem:[%s391 + $0x78] sm:$0xff] %v4687
      %4720 = vst [vmem:[%s391 + $0x80] sm:$0xff] %v4688
      %4721 = vst [vmem:[%s391 + $0x88] sm:$0xff] %v4689
      %4722 = vst [vmem:[%s391 + $0x90] sm:$0xff] %v4690
      %4723 = vst [vmem:[%s391 + $0x98] sm:$0xff] %v4691
      %4724 = vst [vmem:[%s391 + $0xa0] sm:$0xff] %v4692
      %4725 = vst [vmem:[%s391 + $0xa8] sm:$0xff] %v4693
      %4726 = vst [vmem:[%s391 + $0xb0] sm:$0xff] %v4694
      %4727 = vst [vmem:[%s391 + $0xb8] sm:$0xff] %v4695
      %4728 = vst [vmem:[%s391 + $0xc0] sm:$0xff] %v4696
      %4729 = vst [vmem:[%s391 + $0xc8] sm:$0xff] %v4697
      %4730 = vst [vmem:[%s391 + $0xd0] sm:$0xff] %v4698
      %4731 = vst [vmem:[%s391 + $0xd8] sm:$0xff] %v4699
      %4732 = vst [vmem:[%s391 + $0xe0] sm:$0xff] %v4700
      %4733 = vst [vmem:[%s391 + $0xe8] sm:$0xff] %v4701
      %4734 = vst [vmem:[%s391 + $0xf0] sm:$0xff] %v4702
      %4735 = vst [vmem:[%s391 + $0xf8] sm:$0xff] %v4703
      %s4736 = smul.u32 16, %s28
      %p4737 = scmp.lt.s32.totalorder %s27, 1
      %s4738 = scalar_select %p4737, %s27, 1
      %p4739 = scmp.lt.s32.totalorder %s4736, 15
      %s4740 = scalar_select %p4739, %s4736, 15
      %s4741 = smul.addr %s4740, 2
      %s4742 = smul.addr %s4738, 32
      %s4743 = sadd.s32 %s4741, %s4742
      %s4744 = smul.addr %s4743, 8
      %s4745 = scalar_lea.vmem %s12, %s4744
      // Predicated region
      $region141: #{residual_forward.1} parent=63 // pred_check
        %p4746 = pneg %p286
      $region142: #{residual_forward.1} parent=63 // pred_check_branch
        %4748 = sbr.rel (%p4746) target = $region144
      $region143: #{residual_forward.1} parent=63 // pred_region
        %s4749 = smul.u32 16, %s28
      $region144: #{residual_forward.1} parent=63 // pred_fallthru
        _
    $region64: #{residual_forward.1} parent=5 // pred_fallthru
      _
    %p4750 = scmp.le.s32.totalorder 2, %s18
    // Predicated region
    $region145: #{residual_forward.1} parent=5 // pred_check
      %p4751 = pneg %p4750
    $region146: #{residual_forward.1} parent=5 // pred_check_branch
      %4753 = sbr.rel (%p4751) target = $region148
    $region147: #{residual_forward.1} parent=5 // pred_region
      %s4754 = ssub.s32 %s18, 2
      // Predicated region
      $region149: #{residual_forward.1} parent=147 // pred_check
        %p4755 = pneg %p292
      $region150: #{residual_forward.1} parent=147 // pred_check_branch
        %4757 = sbr.rel (%p4755) target = $region152
      $region151: #{residual_forward.1} parent=147 // pred_region
        %s4758 = smul.u32 16, %s30
        %p4759 = scmp.lt.s32.totalorder %s29, 1
        %s4760 = scalar_select %p4759, %s29, 1
        %p4761 = scmp.lt.s32.totalorder %s4758, 15
        %s4762 = scalar_select %p4761, %s4758, 15
        %s4763 = smul.addr %s4762, 2
        %s4764 = smul.addr %s4760, 32
        %s4765 = sadd.s32 %s4763, %s4764
        %s4766 = smul.addr %s4765, 8
        %s4767 = scalar_lea.vmem %s12, %s4766
      $region152: #{residual_forward.1} parent=147 // pred_fallthru
        _
    $region148: #{residual_forward.1} parent=5 // pred_fallthru
      _
  $region6: #{residual_forward.1} parent=0 // loop_footer
    %s22 = sadd.s32 1, %s18
  $region7: #{residual_forward.1} parent=0 // loop_footer_branch
    %17 = sbr.rel target = $region3
  $region8: #{residual_forward.1} parent=0 // loop_exit
    _
  %4768 = vsyncmov [#allocation3]
  %s4769 = vpop.sfrf %4768
  %p4770 = scmp.eq.s32.totalorder %s4769, 0
  %p4771 = pneg %p4770
  %4773 = shalt.err (%p4771)
  %s4774 = scalar_lea.sflag [#allocation3], 1
  %4775 = vsyncmov %s4774
  %s4776 = vpop.sfrf %4775
  %p4777 = scmp.eq.s32.totalorder %s4776, 0
  %p4778 = pneg %p4777
  %4780 = shalt.err (%p4778)

</llo_original>
